<compile_context>
chip_gen: v7x
topology: tpu7x:2x2x1
jax: 0.10.0
libtpu: 0.0.40
codegen_flags: <defaults>
</compile_context>

<pallas_src>
import jax
import jax.numpy as jnp
import numpy as np
from jax.experimental import pallas as pl
from jax.experimental.pallas import tpu as pltpu


def _round_up(x, m):
    return ((x + m - 1) // m) * m


def _in_pp(feature_dim, has_view):
    # Per-point input chunk: [features | view_dirs(3) | pad].  Rounded up so that
    # P * in_pp stays sublane-aligned for any points_per_row >= 4.
    return _round_up(feature_dim + (3 if has_view else 0), 4)


def _make_kernel(num_layers, skip_set, P, in_pp, hidden_dim, has_view):
    H, V = hidden_dim, hidden_dim // 2
    PIN, PH, PV = P * in_pp, P * H, P * V
    PHD = PH + P            # fused-head output width: [latents (P*H) | densities (P)]
    PRGB = P * 3

    def kernel(*refs):
        if has_view:
            inp_ref, w_ref, b_ref, main_ref, rgb_ref = refs
        else:
            inp_ref, w_ref, b_ref, main_ref = refs

        def W(slot, din, dout):            # static window of the resident packed weights
            return w_ref[slot, :din, :dout]

        def B(bslot, dout):                # f32 [1, dout] broadcast bias
            return b_ref[bslot:bslot + 1, :dout]

        slot = 0
        bslot = 0

        # Trunk layer 0.  inp_ref is re-read at each use so the MXU streams straight
        # from the pipelined VMEM input buffer (no long-lived packed-input value).
        y = jnp.dot(inp_ref[...], W(slot, PIN, PH),
                    preferred_element_type=jnp.float32) + B(bslot, PH)
        slot += 1
        bslot += 1
        x = jax.nn.relu(y).astype(jnp.bfloat16)

        for i in range(1, num_layers):
            y = jnp.dot(x, W(slot, PH, PH), preferred_element_type=jnp.float32)
            slot += 1
            if i in skip_set:
                # cat([x, features]) @ Wi == x @ Wi_hidden + packed_input @ Wi_feat
                # (dirs/pad rows of the block-diagonal feature slot are zero).
                y = y + jnp.dot(inp_ref[...], W(slot, PIN, PH),
                                preferred_element_type=jnp.float32)
                slot += 1
            y = y + B(bslot, PH)
            bslot += 1
            x = jax.nn.relu(y).astype(jnp.bfloat16)

        # Fused density + feature head: one matmul.  Output cols [:PH] = all latents
        # (block-diag feature_head), cols [PH:PH+P] = all densities (block-diag density_head).
        head = jnp.dot(x, W(slot, PH, PHD),
                       preferred_element_type=jnp.float32) + B(bslot, PHD)
        slot += 1
        bslot += 1
        main_ref[...] = head.astype(main_ref.dtype)     # single lane-packed bf16 store

        if has_view:
            latent_bf = head[:, :PH].astype(jnp.bfloat16)   # vreg-aligned column slice
            # cat([latent, view_dirs]) @ Wv1 == latent @ Wv1_lat + packed_input @ Wv1_dirs
            h = (jnp.dot(latent_bf, W(slot, PH, PV), preferred_element_type=jnp.float32)
                 + jnp.dot(inp_ref[...], W(slot + 1, PIN, PV),
                           preferred_element_type=jnp.float32)
                 + B(bslot, PV))
            slot += 2
            bslot += 1
            h = jax.nn.relu(h).astype(jnp.bfloat16)
            rgb = jax.nn.sigmoid(
                jnp.dot(h, W(slot, PV, PRGB), preferred_element_type=jnp.float32)
                + B(bslot, PRGB))
            rgb_ref[...] = rgb.astype(rgb_ref.dtype)

    return kernel


def pack_params(params, *, feature_dim, hidden_dim, num_layers, skip_connections,
                has_view, P):
    """Pack all Linear weights/biases into one bf16 block-diagonal weight-slot array
    plus one f32 bias array (both kept resident in VMEM)."""
    H, F = hidden_dim, feature_dim
    in_pp = _in_pp(F, has_view)
    skip_set = frozenset(skip_connections)
    n = len(params) // 2
    Ws = [params[2 * i] for i in range(n)]
    Bs = [params[2 * i + 1].reshape(-1) for i in range(n)]
    eye = jnp.eye(P, dtype=jnp.float32)

    def bdiag(block):                       # P copies of the per-point block on the diagonal
        return jnp.kron(eye, block.astype(jnp.float32))

    def embed_rows(mat, rows, off):         # place mat at rows [off:off+r] of a zero block
        return jnp.zeros((rows, mat.shape[1]), jnp.float32).at[
            off:off + mat.shape[0], :].set(mat)

    slots = []      # list of [P*din, P*dout] f32 matrices
    biases = []     # list of 1-D f32 vectors

    # trunk layer 0: dots against the full packed input; dirs/pad rows are zero.
    slots.append(bdiag(embed_rows(Ws[0], in_pp, 0)))
    biases.append(jnp.tile(Bs[0], P))
    for i in range(1, num_layers):
        Wi = Ws[i]
        if i in skip_set:
            slots.append(bdiag(Wi[:H, :]))                            # hidden part
            slots.append(bdiag(embed_rows(Wi[H:H + F, :], in_pp, 0)))  # feature part
        else:
            slots.append(bdiag(Wi))
        biases.append(jnp.tile(Bs[i], P))

    Wd, bias_d = Ws[num_layers], Bs[num_layers]                 # density head [H, 1]
    Wf, bias_f = Ws[num_layers + 1], Bs[num_layers + 1]         # feature head [H, H]
    # fused head: cols [:P*H] = latents, cols [P*H:P*H+P] = densities.
    slots.append(jnp.concatenate([bdiag(Wf), bdiag(Wd)], axis=1))
    biases.append(jnp.concatenate([jnp.tile(bias_f, P), jnp.tile(bias_d, P)]))

    if has_view:
        Wv1, bv1 = Ws[num_layers + 2], Bs[num_layers + 2]       # [H+3, V]
        Wv2, bv2 = Ws[num_layers + 3], Bs[num_layers + 3]       # [V, 3]
        slots.append(bdiag(Wv1[:H, :]))                         # latent part
        slots.append(bdiag(embed_rows(Wv1[H:H + 3, :], in_pp, F)))   # view-dirs part
        slots.append(bdiag(Wv2))
        biases.append(jnp.tile(bv1, P))
        biases.append(jnp.tile(bv2, P))

    max_in = max(s.shape[0] for s in slots)
    max_out = max(s.shape[1] for s in slots)
    w_all = jnp.zeros((len(slots), max_in, max_out), jnp.float32)
    for k, s in enumerate(slots):
        w_all = w_all.at[k, :s.shape[0], :s.shape[1]].set(s)
    w_all = w_all.astype(jnp.bfloat16)

    max_b = max(b.shape[0] for b in biases)
    b_all = jnp.zeros((len(biases), max_b), jnp.float32)
    for k, b in enumerate(biases):
        b_all = b_all.at[k, :b.shape[0]].set(b)
    return w_all, b_all


def init_params(key, feature_dim, hidden_dim, num_layers, skip_connections):
    """Deterministic synthetic parameters (shapes follow the forward-pass semantics)."""
    dims = [(feature_dim, hidden_dim)]
    for i in range(1, num_layers):
        in_dim = hidden_dim + feature_dim if i in skip_connections else hidden_dim
        dims.append((in_dim, hidden_dim))
    dims.append((hidden_dim, 1))                      # density_head
    dims.append((hidden_dim, hidden_dim))             # feature_head
    dims.append((hidden_dim + 3, hidden_dim // 2))    # view_layers[0]
    dims.append((hidden_dim // 2, 3))                 # view_layers[2]

    params = []
    for (din, dout) in dims:
        key, k1, k2 = jax.random.split(key, 3)
        bound = 1.0 / float(np.sqrt(din))
        Wm = jax.random.uniform(k1, (din, dout), jnp.float32, -bound, bound)
        bv = jax.random.uniform(k2, (1, dout), jnp.float32, -bound, bound)
        params += [Wm, bv]
    return params


def pyramid_nerf_forward(features, view_dirs, params, *, feature_dim, hidden_dim,
                         num_layers, skip_connections, points_per_row=8, tile_rows=256):
    # points_per_row: 8 fills the 256-wide MXU on v6e/v7x; use 4 on v5e if desired.
    H, F, V = hidden_dim, feature_dim, hidden_dim // 2
    P = points_per_row
    has_view = view_dirs is not None
    in_pp = _in_pp(F, has_view)
    PIN, PH = P * in_pp, P * H
    PHD, PRGB = PH + P, P * 3
    skip_set = frozenset(skip_connections)

    N = features.shape[0]
    pts_per_tile = P * tile_rows
    n_tiles = max(1, pl.cdiv(N, pts_per_tile))
    n_rows = n_tiles * tile_rows
    N_pad = n_rows * P

    # Single fused packing pass: concat -> bf16 -> pad -> free contiguous reshape.
    per_pt = features if not has_view else jnp.concatenate([features, view_dirs], axis=-1)
    per_pt = per_pt.astype(jnp.bfloat16)
    per_pt = jnp.pad(per_pt, ((0, N_pad - N), (0, in_pp - per_pt.shape[1])))
    inp = per_pt.reshape(n_rows, PIN)

    w_all, b_all = pack_params(params, feature_dim=F, hidden_dim=H, num_layers=num_layers,
                               skip_connections=skip_connections, has_view=has_view, P=P)
    kernel = _make_kernel(num_layers, skip_set, P, in_pp, H, has_view)

    # Advisory cost estimate for the XLA scheduler.
    n_skip = sum(1 for i in skip_set if 1 <= i < num_layers)
    per_pt_flops = in_pp * H + (num_layers - 1) * H * H + n_skip * in_pp * H + H * (H + 1)
    if has_view:
        per_pt_flops += H * V + in_pp * V + V * 3
    out_bytes = N_pad * (H + 1) * 2 + (N_pad * 3 * 2 if has_view else 0)
    cost = pl.CostEstimate(
        flops=2 * N_pad * per_pt_flops,
        transcendentals=(3 * N_pad) if has_view else 0,
        bytes_accessed=N_pad * in_pp * 2 + out_bytes
        + int(w_all.size) * 2 + int(b_all.size) * 4,
    )

    out_shape = [jax.ShapeDtypeStruct((n_rows, PHD), jnp.bfloat16)]
    out_specs = [pl.BlockSpec((tile_rows, PHD), lambda i: (i, 0))]
    if has_view:
        out_shape.append(jax.ShapeDtypeStruct((n_rows, PRGB), jnp.bfloat16))
        out_specs.append(pl.BlockSpec((tile_rows, PRGB), lambda i: (i, 0)))

    outs = pl.pallas_call(
        kernel,
        grid=(n_tiles,),
        in_specs=[
            pl.BlockSpec((tile_rows, PIN), lambda i: (i, 0)),
            pl.BlockSpec(w_all.shape, lambda i: (0, 0, 0)),   # resident packed weights
            pl.BlockSpec(b_all.shape, lambda i: (0, 0)),      # resident packed biases
        ],
        out_specs=out_specs,
        out_shape=out_shape,
        compiler_params=pltpu.CompilerParams(dimension_semantics=("parallel",)),
        cost_estimate=cost,
    )(inp, w_all, b_all)

    out_main = outs[0]
    latent = out_main[:, :PH].reshape(N_pad, H)[:N].astype(jnp.float32)
    density = out_main[:, PH:PH + P].reshape(N_pad, 1)[:N].astype(jnp.float32)
    if has_view:
        rgb = outs[1].reshape(N_pad, 3)[:N].astype(jnp.float32)
    else:
        # Matches torch.zeros_like(density.expand(-1, 3)); view head is skipped in-kernel.
        rgb = jnp.zeros((N, 3), density.dtype)
    return {"rgb": rgb, "density": density, "features": latent}


def reference_forward(features, view_dirs, params, *, hidden_dim, num_layers, skip_connections):
    """Pure-JAX f32 reference mirroring the PyTorch forward."""
    def lin(x, i):
        return x @ params[2 * i] + params[2 * i + 1]

    x = jax.nn.relu(lin(features, 0))
    for i in range(1, num_layers):
        if i in skip_connections:
            x = jnp.concatenate([x, features], axis=-1)
        x = jax.nn.relu(lin(x, i))
    density = lin(x, num_layers)
    latent = lin(x, num_layers + 1)
    if view_dirs is not None:
        v = jnp.concatenate([latent, view_dirs], axis=-1)
        h = jax.nn.relu(lin(v, num_layers + 2))
        rgb = jax.nn.sigmoid(lin(h, num_layers + 3))
    else:
        rgb = jnp.zeros((features.shape[0], 3), density.dtype)
    return {"rgb": rgb, "density": density, "features": latent}


if __name__ == "__main__":
    feature_dim = 32
    hidden_dim = 32
    num_layers = 4
    skip_connections = [2]
    N = 4096            # 2 grid steps at points_per_row=8, tile_rows=256 (v7x megacore)

    key = jax.random.PRNGKey(0)
    kf, kv, kp = jax.random.split(key, 3)
    features = jax.random.normal(kf, (N, feature_dim), jnp.float32)
    view_dirs = jax.random.normal(kv, (N, 3), jnp.float32)
    view_dirs = view_dirs / jnp.linalg.norm(view_dirs, axis=-1, keepdims=True)

    params = init_params(kp, feature_dim, hidden_dim, num_layers, skip_connections)

    out = pyramid_nerf_forward(
        features, view_dirs, params,
        feature_dim=feature_dim, hidden_dim=hidden_dim,
        num_layers=num_layers, skip_connections=skip_connections)
    jax.block_until_ready(out)

    ref = reference_forward(
        features, view_dirs, params,
        hidden_dim=hidden_dim, num_layers=num_layers, skip_connections=skip_connections)

    # bf16 weights/activations/outputs with f32 accumulation -> relaxed tolerances.
    tol = dict(rtol=3e-2, atol=3e-2)
    np.testing.assert_allclose(np.asarray(out["rgb"]), np.asarray(ref["rgb"]), **tol)
    np.testing.assert_allclose(np.asarray(out["density"]), np.asarray(ref["density"]), **tol)
    np.testing.assert_allclose(np.asarray(out["features"]), np.asarray(ref["features"]), **tol)

    # Also exercise the view_dirs=None path (separate kernel variant, no view head).
    out_none = pyramid_nerf_forward(
        features, None, params,
        feature_dim=feature_dim, hidden_dim=hidden_dim,
        num_layers=num_layers, skip_connections=skip_connections)
    jax.block_until_ready(out_none)
    ref_none = reference_forward(
        features, None, params,
        hidden_dim=hidden_dim, num_layers=num_layers, skip_connections=skip_connections)
    assert bool(jnp.all(out_none["rgb"] == 0.0))
    np.testing.assert_allclose(np.asarray(out_none["density"]), np.asarray(ref_none["density"]), **tol)
    np.testing.assert_allclose(np.asarray(out_none["features"]), np.asarray(ref_none["features"]), **tol)

    print("KERNEL_OK")
</pallas_src>

<mosaic_0001>
module attributes {stable_mosaic.version = 11 : i64} {
  func.func @kernel(%arg0: i32, %arg1: memref<256x288xbf16, #tpu.memory_space<vmem>>, %arg2: memref<9x288x264xbf16, #tpu.memory_space<vmem>>, %arg3: memref<7x264xf32, #tpu.memory_space<vmem>>, %arg4: memref<256x264xbf16, #tpu.memory_space<vmem>>, %arg5: memref<256x24xbf16, #tpu.memory_space<vmem>>) attributes {dimension_semantics = [#tpu.dimension_semantics<parallel>], iteration_bounds = array<i64: 2>, scalar_prefetch = 0 : i64, scratch_operands = 0 : i64, tpu.core_type = #tpu.core_type<tc>, window_params = [{transform_indices = @transform_0, window_bounds = array<i64: 256, 288>}, {pipeline_mode = #tpu.pipeline_mode<synchronous>, transform_indices = @transform_1, window_bounds = array<i64: 9, 288, 264>}, {pipeline_mode = #tpu.pipeline_mode<synchronous>, transform_indices = @transform_2, window_bounds = array<i64: 7, 264>}, {transform_indices = @transform_3, window_bounds = array<i64: 256, 264>}, {transform_indices = @transform_4, window_bounds = array<i64: 256, 24>}]} {
    %c0 = arith.constant 0 : index
    %c0_0 = arith.constant 0 : index
    %0 = vector.load %arg1[%c0, %c0_0] : memref<256x288xbf16, #tpu.memory_space<vmem>>, vector<256x288xbf16>
    %c0_1 = arith.constant 0 : index
    %c0_2 = arith.constant 0 : index
    %c0_3 = arith.constant 0 : index
    %1 = vector.load %arg2[%c0_1, %c0_2, %c0_3] : memref<9x288x264xbf16, #tpu.memory_space<vmem>>, vector<1x288x256xbf16>
    %2 = vector.shape_cast %1 : vector<1x288x256xbf16> to vector<288x256xbf16>
    %cst = arith.constant dense<0.000000e+00> : vector<256x256xf32>
    %3 = tpu.matmul %0, %2, %cst {dimension_numbers = #tpu.dot_dimension_numbers<[1], [0], [0], [1], [0, 0, 1, 1], [], []>} : vector<256x288xbf16>, vector<288x256xbf16>, vector<256x256xf32> -> vector<256x256xf32>
    %c0_4 = arith.constant 0 : index
    %c0_5 = arith.constant 0 : index
    %4 = vector.load %arg3[%c0_4, %c0_5] : memref<7x264xf32, #tpu.memory_space<vmem>>, vector<1x256xf32>
    %5 = vector.broadcast %4 : vector<1x256xf32> to vector<256x256xf32>
    %6 = arith.addf %3, %5 : vector<256x256xf32>
    %cst_6 = arith.constant 0.000000e+00 : f32
    %7 = vector.broadcast %cst_6 : f32 to vector<256x256xf32>
    %8 = arith.maximumf %6, %7 : vector<256x256xf32>
    %9 = arith.truncf %8 : vector<256x256xf32> to vector<256x256xbf16>
    %c1 = arith.constant 1 : index
    %c0_7 = arith.constant 0 : index
    %c0_8 = arith.constant 0 : index
    %10 = vector.load %arg2[%c1, %c0_7, %c0_8] : memref<9x288x264xbf16, #tpu.memory_space<vmem>>, vector<1x256x256xbf16>
    %11 = vector.shape_cast %10 : vector<1x256x256xbf16> to vector<256x256xbf16>
    %cst_9 = arith.constant dense<0.000000e+00> : vector<256x256xf32>
    %12 = tpu.matmul %9, %11, %cst_9 {dimension_numbers = #tpu.dot_dimension_numbers<[1], [0], [0], [1], [0, 0, 1, 1], [], []>} : vector<256x256xbf16>, vector<256x256xbf16>, vector<256x256xf32> -> vector<256x256xf32>
    %c1_10 = arith.constant 1 : index
    %c0_11 = arith.constant 0 : index
    %13 = vector.load %arg3[%c1_10, %c0_11] : memref<7x264xf32, #tpu.memory_space<vmem>>, vector<1x256xf32>
    %14 = vector.broadcast %13 : vector<1x256xf32> to vector<256x256xf32>
    %15 = arith.addf %12, %14 : vector<256x256xf32>
    %cst_12 = arith.constant 0.000000e+00 : f32
    %16 = vector.broadcast %cst_12 : f32 to vector<256x256xf32>
    %17 = arith.maximumf %15, %16 : vector<256x256xf32>
    %18 = arith.truncf %17 : vector<256x256xf32> to vector<256x256xbf16>
    %c2 = arith.constant 2 : index
    %c0_13 = arith.constant 0 : index
    %c0_14 = arith.constant 0 : index
    %19 = vector.load %arg2[%c2, %c0_13, %c0_14] : memref<9x288x264xbf16, #tpu.memory_space<vmem>>, vector<1x256x256xbf16>
    %20 = vector.shape_cast %19 : vector<1x256x256xbf16> to vector<256x256xbf16>
    %cst_15 = arith.constant dense<0.000000e+00> : vector<256x256xf32>
    %21 = tpu.matmul %18, %20, %cst_15 {dimension_numbers = #tpu.dot_dimension_numbers<[1], [0], [0], [1], [0, 0, 1, 1], [], []>} : vector<256x256xbf16>, vector<256x256xbf16>, vector<256x256xf32> -> vector<256x256xf32>
    %c0_16 = arith.constant 0 : index
    %c0_17 = arith.constant 0 : index
    %22 = vector.load %arg1[%c0_16, %c0_17] : memref<256x288xbf16, #tpu.memory_space<vmem>>, vector<256x288xbf16>
    %c3 = arith.constant 3 : index
    %c0_18 = arith.constant 0 : index
    %c0_19 = arith.constant 0 : index
    %23 = vector.load %arg2[%c3, %c0_18, %c0_19] : memref<9x288x264xbf16, #tpu.memory_space<vmem>>, vector<1x288x256xbf16>
    %24 = vector.shape_cast %23 : vector<1x288x256xbf16> to vector<288x256xbf16>
    %cst_20 = arith.constant dense<0.000000e+00> : vector<256x256xf32>
    %25 = tpu.matmul %22, %24, %cst_20 {dimension_numbers = #tpu.dot_dimension_numbers<[1], [0], [0], [1], [0, 0, 1, 1], [], []>} : vector<256x288xbf16>, vector<288x256xbf16>, vector<256x256xf32> -> vector<256x256xf32>
    %26 = arith.addf %21, %25 : vector<256x256xf32>
    %c2_21 = arith.constant 2 : index
    %c0_22 = arith.constant 0 : index
    %27 = vector.load %arg3[%c2_21, %c0_22] : memref<7x264xf32, #tpu.memory_space<vmem>>, vector<1x256xf32>
    %28 = vector.broadcast %27 : vector<1x256xf32> to vector<256x256xf32>
    %29 = arith.addf %26, %28 : vector<256x256xf32>
    %cst_23 = arith.constant 0.000000e+00 : f32
    %30 = vector.broadcast %cst_23 : f32 to vector<256x256xf32>
    %31 = arith.maximumf %29, %30 : vector<256x256xf32>
    %32 = arith.truncf %31 : vector<256x256xf32> to vector<256x256xbf16>
    %c4 = arith.constant 4 : index
    %c0_24 = arith.constant 0 : index
    %c0_25 = arith.constant 0 : index
    %33 = vector.load %arg2[%c4, %c0_24, %c0_25] : memref<9x288x264xbf16, #tpu.memory_space<vmem>>, vector<1x256x256xbf16>
    %34 = vector.shape_cast %33 : vector<1x256x256xbf16> to vector<256x256xbf16>
    %cst_26 = arith.constant dense<0.000000e+00> : vector<256x256xf32>
    %35 = tpu.matmul %32, %34, %cst_26 {dimension_numbers = #tpu.dot_dimension_numbers<[1], [0], [0], [1], [0, 0, 1, 1], [], []>} : vector<256x256xbf16>, vector<256x256xbf16>, vector<256x256xf32> -> vector<256x256xf32>
    %c3_27 = arith.constant 3 : index
    %c0_28 = arith.constant 0 : index
    %36 = vector.load %arg3[%c3_27, %c0_28] : memref<7x264xf32, #tpu.memory_space<vmem>>, vector<1x256xf32>
    %37 = vector.broadcast %36 : vector<1x256xf32> to vector<256x256xf32>
    %38 = arith.addf %35, %37 : vector<256x256xf32>
    %cst_29 = arith.constant 0.000000e+00 : f32
    %39 = vector.broadcast %cst_29 : f32 to vector<256x256xf32>
    %40 = arith.maximumf %38, %39 : vector<256x256xf32>
    %41 = arith.truncf %40 : vector<256x256xf32> to vector<256x256xbf16>
    %c5 = arith.constant 5 : index
    %c0_30 = arith.constant 0 : index
    %c0_31 = arith.constant 0 : index
    %42 = vector.load %arg2[%c5, %c0_30, %c0_31] : memref<9x288x264xbf16, #tpu.memory_space<vmem>>, vector<1x256x264xbf16>
    %43 = vector.shape_cast %42 : vector<1x256x264xbf16> to vector<256x264xbf16>
    %cst_32 = arith.constant dense<0.000000e+00> : vector<256x264xf32>
    %44 = tpu.matmul %41, %43, %cst_32 {dimension_numbers = #tpu.dot_dimension_numbers<[1], [0], [0], [1], [0, 0, 1, 1], [], []>} : vector<256x256xbf16>, vector<256x264xbf16>, vector<256x264xf32> -> vector<256x264xf32>
    %c4_33 = arith.constant 4 : index
    %c0_34 = arith.constant 0 : index
    %45 = vector.load %arg3[%c4_33, %c0_34] : memref<7x264xf32, #tpu.memory_space<vmem>>, vector<1x264xf32>
    %46 = vector.broadcast %45 : vector<1x264xf32> to vector<256x264xf32>
    %47 = arith.addf %44, %46 : vector<256x264xf32>
    %48 = arith.truncf %47 : vector<256x264xf32> to vector<256x264xbf16>
    %c0_35 = arith.constant 0 : index
    %c0_36 = arith.constant 0 : index
    %49 = vector.load %arg4[%c0_35, %c0_36] : memref<256x264xbf16, #tpu.memory_space<vmem>>, vector<256x264xbf16>
    tpu.vector_store %arg4[%c0_35, %c0_36], %48 {strides = array<i32>} : memref<256x264xbf16, #tpu.memory_space<vmem>>, vector<256x264xbf16>,
    %50 = vector.extract_strided_slice %47 {offsets = [0, 0], sizes = [256, 256], strides = [1, 1]} : vector<256x264xf32> to vector<256x256xf32>
    %51 = arith.truncf %50 : vector<256x256xf32> to vector<256x256xbf16>
    %c6 = arith.constant 6 : index
    %c0_37 = arith.constant 0 : index
    %c0_38 = arith.constant 0 : index
    %52 = vector.load %arg2[%c6, %c0_37, %c0_38] : memref<9x288x264xbf16, #tpu.memory_space<vmem>>, vector<1x256x128xbf16>
    %53 = vector.shape_cast %52 : vector<1x256x128xbf16> to vector<256x128xbf16>
    %cst_39 = arith.constant dense<0.000000e+00> : vector<256x128xf32>
    %54 = tpu.matmul %51, %53, %cst_39 {dimension_numbers = #tpu.dot_dimension_numbers<[1], [0], [0], [1], [0, 0, 1, 1], [], []>} : vector<256x256xbf16>, vector<256x128xbf16>, vector<256x128xf32> -> vector<256x128xf32>
    %c0_40 = arith.constant 0 : index
    %c0_41 = arith.constant 0 : index
    %55 = vector.load %arg1[%c0_40, %c0_41] : memref<256x288xbf16, #tpu.memory_space<vmem>>, vector<256x288xbf16>
    %c7 = arith.constant 7 : index
    %c0_42 = arith.constant 0 : index
    %c0_43 = arith.constant 0 : index
    %56 = vector.load %arg2[%c7, %c0_42, %c0_43] : memref<9x288x264xbf16, #tpu.memory_space<vmem>>, vector<1x288x128xbf16>
    %57 = vector.shape_cast %56 : vector<1x288x128xbf16> to vector<288x128xbf16>
    %cst_44 = arith.constant dense<0.000000e+00> : vector<256x128xf32>
    %58 = tpu.matmul %55, %57, %cst_44 {dimension_numbers = #tpu.dot_dimension_numbers<[1], [0], [0], [1], [0, 0, 1, 1], [], []>} : vector<256x288xbf16>, vector<288x128xbf16>, vector<256x128xf32> -> vector<256x128xf32>
    %59 = arith.addf %54, %58 : vector<256x128xf32>
    %c5_45 = arith.constant 5 : index
    %c0_46 = arith.constant 0 : index
    %60 = vector.load %arg3[%c5_45, %c0_46] : memref<7x264xf32, #tpu.memory_space<vmem>>, vector<1x128xf32>
    %61 = vector.broadcast %60 : vector<1x128xf32> to vector<256x128xf32>
    %62 = arith.addf %59, %61 : vector<256x128xf32>
    %cst_47 = arith.constant 0.000000e+00 : f32
    %63 = vector.broadcast %cst_47 : f32 to vector<256x128xf32>
    %64 = arith.maximumf %62, %63 : vector<256x128xf32>
    %65 = arith.truncf %64 : vector<256x128xf32> to vector<256x128xbf16>
    %c8 = arith.constant 8 : index
    %c0_48 = arith.constant 0 : index
    %c0_49 = arith.constant 0 : index
    %66 = vector.load %arg2[%c8, %c0_48, %c0_49] : memref<9x288x264xbf16, #tpu.memory_space<vmem>>, vector<1x128x24xbf16>
    %67 = vector.shape_cast %66 : vector<1x128x24xbf16> to vector<128x24xbf16>
    %cst_50 = arith.constant dense<0.000000e+00> : vector<256x24xf32>
    %68 = tpu.matmul %65, %67, %cst_50 {dimension_numbers = #tpu.dot_dimension_numbers<[1], [0], [0], [1], [0, 0, 1, 1], [], []>} : vector<256x128xbf16>, vector<128x24xbf16>, vector<256x24xf32> -> vector<256x24xf32>
    %c6_51 = arith.constant 6 : index
    %c0_52 = arith.constant 0 : index
    %69 = vector.load %arg3[%c6_51, %c0_52] : memref<7x264xf32, #tpu.memory_space<vmem>>, vector<1x24xf32>
    %70 = vector.broadcast %69 : vector<1x24xf32> to vector<256x24xf32>
    %71 = arith.addf %68, %70 : vector<256x24xf32>
    %72 = arith.negf %71 : vector<256x24xf32>
    %73 = math.exp %72 : vector<256x24xf32>
    %cst_53 = arith.constant 1.000000e+00 : f32
    %74 = vector.broadcast %cst_53 : f32 to vector<256x24xf32>
    %75 = arith.addf %74, %73 : vector<256x24xf32>
    %76 = arith.divf %74, %75 : vector<256x24xf32>
    %77 = arith.truncf %76 : vector<256x24xf32> to vector<256x24xbf16>
    %c0_54 = arith.constant 0 : index
    %c0_55 = arith.constant 0 : index
    %78 = vector.load %arg5[%c0_54, %c0_55] : memref<256x24xbf16, #tpu.memory_space<vmem>>, vector<256x24xbf16>
    tpu.vector_store %arg5[%c0_54, %c0_55], %77 {strides = array<i32>} : memref<256x24xbf16, #tpu.memory_space<vmem>>, vector<256x24xbf16>,
    return
  }
  func.func @transform_0(%arg0: i32) -> (i32, i32) {
    %c0_i32 = arith.constant 0 : i32
    %c0_i32_0 = arith.constant 0 : i32
    return %arg0, %c0_i32 : i32, i32
  }
  func.func @transform_1(%arg0: i32) -> (i32, i32, i32) {
    %c0_i32 = arith.constant 0 : i32
    %c0_i32_0 = arith.constant 0 : i32
    %c0_i32_1 = arith.constant 0 : i32
    %c0_i32_2 = arith.constant 0 : i32
    return %c0_i32, %c0_i32_0, %c0_i32_1 : i32, i32, i32
  }
  func.func @transform_2(%arg0: i32) -> (i32, i32) {
    %c0_i32 = arith.constant 0 : i32
    %c0_i32_0 = arith.constant 0 : i32
    %c0_i32_1 = arith.constant 0 : i32
    return %c0_i32, %c0_i32_0 : i32, i32
  }
  func.func @transform_3(%arg0: i32) -> (i32, i32) {
    %c0_i32 = arith.constant 0 : i32
    %c0_i32_0 = arith.constant 0 : i32
    return %arg0, %c0_i32 : i32, i32
  }
  func.func @transform_4(%arg0: i32) -> (i32, i32) {
    %c0_i32 = arith.constant 0 : i32
    %c0_i32_0 = arith.constant 0 : i32
    return %arg0, %c0_i32 : i32, i32
  }
}

</mosaic_0001>

<llo_original>
// kernel: tpu_custom_call.1
$region0: #{tpu_custom_call.1}
  #allocation0 [shape = 'u32[]', space=smem, size = 0x4, offset = 0x4, fixed_abs, tag = 'smem constant byte address 0x4 - core index']
  #allocation1 [shape = 'u32[144,128]{1,0:T(1,128)}', space=vmem, size = 0x12000, scoped, tag = 'internal scratch']
  %s0 = inlined_call_operand.vmem [shape: bf16[512,288], index: 0, kind: input, shape index: {}]
  %s1 = inlined_call_operand.vmem [shape: bf16[9,288,264], index: 1, kind: input, shape index: {}]
  %s2 = inlined_call_operand.vmem [shape: f32[7,264], index: 2, kind: input, shape index: {}]
  %s3 = inlined_call_operand.vmem [shape: bf16[512,264], index: 3, kind: output, shape index: {0}]
  %s4 = inlined_call_operand.vmem [shape: bf16[512,24], index: 4, kind: output, shape index: {1}]
  %5 = xla_tuple %s3, %s4
  %s6 = sld [smem:[#allocation0]]
  $region53: #{tpu_custom_call.1} parent=0
    _
  %s8 = ssub.s32 1, %s6
  %s9 = scalar_select 0, %s8, %s6
  loop: start=0, step=1, limit=4
  $region2: #{tpu_custom_call.1} parent=0 // loop_pre_header
    _
  $region3: #{tpu_custom_call.1} parent=0 // loop_header
    %s11 = sphi 0, %s15
    %p12 = scmp.ge.s32.totalorder %s11, 4
    %s21 = sphi 0, %s23
    %s24 = sphi 0, %s21
    %s25 = sphi 0, %s24
    %s41 = sphi 0, %s25
    %s45 = sphi 0, %s45
    %s47 = sphi 0, %s45
    %s48 = sphi 0, %s47
    %s62 = sphi 0, %s48
    %s66 = sphi 0, %s66
    %s68 = sphi 0, %s66
    %s69 = sphi 0, %s68
    %s83 = sphi 0, %s69
    %s89 = sphi 0, %s91
    %s92 = sphi 0, %s89
    %s93 = sphi 0, %s92
    %s109 = sphi 0, %s93
    %s115 = sphi 0, %s117
    %s118 = sphi 0, %s115
    %s119 = sphi 0, %s118
    %s135 = sphi 0, %s119
  $region4: #{tpu_custom_call.1} parent=0 // loop_header_branch
    %14 = sbr.rel (%p12) target = $region8
  $region5: #{tpu_custom_call.1} parent=0 // loop_body
    %s16 = ssub.s32 %s11, 1
    %s17 = ssub.s32 %s11, 2
    %s18 = sadd.s32 %s11, 1
    %s19 = ssub.s32 %s11, %s18
    %p20 = scmp.eq.s32.totalorder %s19, 0
    %s22 = sadd.s32 %s21, 1
    %s23 = scalar_select %p20, %s21, %s22
    %p26 = pneg %p20
    %p27 = scmp.eq.s32.totalorder %s11, 1
    %p28 = por %p26, %p27
    %p29 = scmp.ne.s32.totalorder %s21, %s24
    %p30 = scmp.eq.s32.totalorder %s11, 0
    %p31 = por %p29, %p30
    %p32 = scmp.ne.s32.totalorder %s21, %s24
    %p33 = scmp.eq.s32.totalorder %s16, 1
    %p34 = por %p32, %p33
    %p35 = scmp.ne.s32.totalorder %s24, %s25
    %p36 = scmp.eq.s32.totalorder %s16, 0
    %p37 = por %p35, %p36
    %p38 = scmp.ne.s32.totalorder %s24, %s25
    %p39 = scmp.eq.s32.totalorder %s17, 1
    %p40 = por %p38, %p39
    %p42 = scmp.ne.s32.totalorder %s25, %s41
    %p43 = scmp.eq.s32.totalorder %s17, 0
    %p44 = por %p42, %p43
    %s46 = sadd.s32 %s45, 1
    %p49 = scmp.eq.s32.totalorder %s11, 1
    %p50 = scmp.ne.s32.totalorder %s45, %s47
    %p51 = scmp.eq.s32.totalorder %s11, 0
    %p52 = por %p50, %p51
    %p53 = scmp.ne.s32.totalorder %s45, %s47
    %p54 = scmp.eq.s32.totalorder %s16, 1
    %p55 = por %p53, %p54
    %p56 = scmp.ne.s32.totalorder %s47, %s48
    %p57 = scmp.eq.s32.totalorder %s16, 0
    %p58 = por %p56, %p57
    %p59 = scmp.ne.s32.totalorder %s47, %s48
    %p60 = scmp.eq.s32.totalorder %s17, 1
    %p61 = por %p59, %p60
    %p63 = scmp.ne.s32.totalorder %s48, %s62
    %p64 = scmp.eq.s32.totalorder %s17, 0
    %p65 = por %p63, %p64
    %s67 = sadd.s32 %s66, 1
    %p70 = scmp.eq.s32.totalorder %s11, 1
    %p71 = scmp.ne.s32.totalorder %s66, %s68
    %p72 = scmp.eq.s32.totalorder %s11, 0
    %p73 = por %p71, %p72
    %p74 = scmp.ne.s32.totalorder %s66, %s68
    %p75 = scmp.eq.s32.totalorder %s16, 1
    %p76 = por %p74, %p75
    %p77 = scmp.ne.s32.totalorder %s68, %s69
    %p78 = scmp.eq.s32.totalorder %s16, 0
    %p79 = por %p77, %p78
    %p80 = scmp.ne.s32.totalorder %s68, %s69
    %p81 = scmp.eq.s32.totalorder %s17, 1
    %p82 = por %p80, %p81
    %p84 = scmp.ne.s32.totalorder %s69, %s83
    %p85 = scmp.eq.s32.totalorder %s17, 0
    %p86 = por %p84, %p85
    %s87 = ssub.s32 %s11, %s18
    %p88 = scmp.eq.s32.totalorder %s87, 0
    %s90 = sadd.s32 %s89, 1
    %s91 = scalar_select %p88, %s89, %s90
    %p94 = pneg %p88
    %p95 = scmp.eq.s32.totalorder %s11, 1
    %p96 = por %p94, %p95
    %p97 = scmp.ne.s32.totalorder %s89, %s92
    %p98 = scmp.eq.s32.totalorder %s11, 0
    %p99 = por %p97, %p98
    %p100 = scmp.ne.s32.totalorder %s89, %s92
    %p101 = scmp.eq.s32.totalorder %s16, 1
    %p102 = por %p100, %p101
    %p103 = scmp.ne.s32.totalorder %s92, %s93
    %p104 = scmp.eq.s32.totalorder %s16, 0
    %p105 = por %p103, %p104
    %p106 = scmp.ne.s32.totalorder %s92, %s93
    %p107 = scmp.eq.s32.totalorder %s17, 1
    %p108 = por %p106, %p107
    %p110 = scmp.ne.s32.totalorder %s93, %s109
    %p111 = scmp.eq.s32.totalorder %s17, 0
    %p112 = por %p110, %p111
    %s113 = ssub.s32 %s11, %s18
    %p114 = scmp.eq.s32.totalorder %s113, 0
    %s116 = sadd.s32 %s115, 1
    %s117 = scalar_select %p114, %s115, %s116
    %p120 = pneg %p114
    %p121 = scmp.eq.s32.totalorder %s11, 1
    %p122 = por %p120, %p121
    %p123 = scmp.ne.s32.totalorder %s115, %s118
    %p124 = scmp.eq.s32.totalorder %s11, 0
    %p125 = por %p123, %p124
    %p126 = scmp.ne.s32.totalorder %s115, %s118
    %p127 = scmp.eq.s32.totalorder %s16, 1
    %p128 = por %p126, %p127
    %p129 = scmp.ne.s32.totalorder %s118, %s119
    %p130 = scmp.eq.s32.totalorder %s16, 0
    %p131 = por %p129, %p130
    %p132 = scmp.ne.s32.totalorder %s118, %s119
    %p133 = scmp.eq.s32.totalorder %s17, 1
    %p134 = por %p132, %p133
    %p136 = scmp.ne.s32.totalorder %s119, %s135
    %p137 = scmp.eq.s32.totalorder %s17, 0
    %p138 = por %p136, %p137
    %p139 = scmp.le.s32.totalorder 1, %s11
    %p140 = scmp.lt.s32.totalorder %s11, 3
    %p141 = pnand %p139, %p140
    %p142 = pneg %p141
    // Predicated region
    $region9: #{tpu_custom_call.1} parent=5 // pred_check
      _
    $region10: #{tpu_custom_call.1} parent=5 // pred_check_branch
      %144 = sbr.rel (%p141) target = $region12
    $region11: #{tpu_custom_call.1} parent=5 // pred_region
      %s145 = ssub.s32 %s11, 1
      // Predicated region
      $region13: #{tpu_custom_call.1} parent=11 // pred_check
        %p146 = pneg %p58
      $region14: #{tpu_custom_call.1} parent=11 // pred_check_branch
        %148 = sbr.rel (%p146) target = $region16
      $region15: #{tpu_custom_call.1} parent=11 // pred_region
        _
      $region16: #{tpu_custom_call.1} parent=11 // pred_fallthru
        _
      // Predicated region
      $region17: #{tpu_custom_call.1} parent=11 // pred_check
        %p149 = pneg %p79
      $region18: #{tpu_custom_call.1} parent=11 // pred_check_branch
        %151 = sbr.rel (%p149) target = $region20
      $region19: #{tpu_custom_call.1} parent=11 // pred_region
        _
      $region20: #{tpu_custom_call.1} parent=11 // pred_fallthru
        _
    $region12: #{tpu_custom_call.1} parent=5 // pred_fallthru
      _
    %p152 = scmp.lt.s32.totalorder %s11, 2
    // Predicated region
    $region21: #{tpu_custom_call.1} parent=5 // pred_check
      %p153 = pneg %p152
    $region22: #{tpu_custom_call.1} parent=5 // pred_check_branch
      %155 = sbr.rel (%p153) target = $region24
    $region23: #{tpu_custom_call.1} parent=5 // pred_region
      // Predicated region
      $region25: #{tpu_custom_call.1} parent=23 // pred_check
        %p156 = pneg %p31
      $region26: #{tpu_custom_call.1} parent=23 // pred_check_branch
        %158 = sbr.rel (%p156) target = $region28
      $region27: #{tpu_custom_call.1} parent=23 // pred_region
        %s159 = smul.u32 32, %s11
        %p160 = scmp.lt.s32.totalorder %s159, 63
        %s161 = scalar_select %p160, %s159, 63
        %s162 = smul.addr %s161, 3
        %s163 = smul.addr %s162, 4
        %s164 = scalar_lea.vmem %s0, %s163
        %s165 = smul.u32 32, %s11
      $region28: #{tpu_custom_call.1} parent=23 // pred_fallthru
        _
    $region24: #{tpu_custom_call.1} parent=5 // pred_fallthru
      _
    %p166 = scmp.le.s32.totalorder 1, %s11
    %p167 = scmp.lt.s32.totalorder %s11, 3
    %p168 = pnand %p166, %p167
    %p169 = pneg %p168
    // Predicated region
    $region29: #{tpu_custom_call.1} parent=5 // pred_check
      _
    $region30: #{tpu_custom_call.1} parent=5 // pred_check_branch
      %171 = sbr.rel (%p168) target = $region32
    $region31: #{tpu_custom_call.1} parent=5 // pred_region
      %s172 = ssub.s32 %s11, 1
      %s173 = smul.u32 32, %s16
      %p174 = scmp.lt.s32.totalorder %s173, 63
      %s175 = scalar_select %p174, %s173, 63
      %s176 = smul.addr %s175, 3
      %s177 = smul.addr %s176, 4
      %s178 = scalar_lea.vmem %s0, %s177
      %p179 = pneg %p37
      %p180 = pneg %p34
      %p181 = pneg %p58
      %p182 = pneg %p55
      %p183 = pneg %p79
      %p184 = pneg %p76
      %p185 = pneg %p105
      %p186 = pneg %p102
      %s187 = smul.u32 32, %s16
      %p188 = scmp.lt.s32.totalorder %s187, 63
      %s189 = scalar_select %p188, %s187, 63
      %s190 = smul.addr %s189, 3
      %s191 = smul.addr %s190, 4
      %s192 = scalar_lea.vmem %s3, %s191
      %p193 = pneg %p131
      %p194 = pneg %p128
      %s195 = smul.u32 32, %s16
      %p196 = scmp.lt.s32.totalorder %s195, 63
      %s197 = scalar_select %p196, %s195, 63
      %s198 = smul.addr %s197, 4
      %s199 = scalar_lea.vmem %s4, %s198
      %s200 = smul.u32 32, %s16
      %p201 = scmp.lt.s32.totalorder %s200, 63
      %s202 = scalar_select %p201, %s200, 63
      %s203 = smul.addr %s202, 3
      %s204 = smul.addr %s203, 4
      %s205 = scalar_lea.vmem %s0, %s204
      %s206 = smul.u32 32, %s16
      %s207 = smul.u32 32, %s16
      %p208 = scmp.lt.s32.totalorder %s207, 63
      %s209 = scalar_select %p208, %s207, 63
      %s210 = smul.addr %s209, 3
      %s211 = smul.addr %s210, 4
      %s212 = scalar_lea.vmem %s3, %s211
      %s213 = smul.u32 32, %s16
      %s214 = smul.u32 32, %s16
      %p215 = scmp.lt.s32.totalorder %s214, 63
      %s216 = scalar_select %p215, %s214, 63
      %s217 = smul.addr %s216, 4
      %s218 = scalar_lea.vmem %s4, %s217
      %s219 = smul.u32 32, %s16
      %v221 = vld [vmem:[%s205] sm:$0xff]
      %v222 = vld [vmem:[%s205 + $0x8] sm:$0xf]
      %v223 = vld [vmem:[%s205 + $0xc] sm:$0xff]
      %v224 = vld [vmem:[%s205 + $0x14] sm:$0xf]
      %v225 = vld [vmem:[%s205 + $0x18] sm:$0xff]
      %v226 = vld [vmem:[%s205 + $0x20] sm:$0xf]
      %v227 = vld [vmem:[%s205 + $0x24] sm:$0xff]
      %v228 = vld [vmem:[%s205 + $0x2c] sm:$0xf]
      %v229 = vld [vmem:[%s205 + $0x30] sm:$0xff]
      %v230 = vld [vmem:[%s205 + $0x38] sm:$0xf]
      %v231 = vld [vmem:[%s205 + $0x3c] sm:$0xff]
      %v232 = vld [vmem:[%s205 + $0x44] sm:$0xf]
      %v233 = vld [vmem:[%s205 + $0x48] sm:$0xff]
      %v234 = vld [vmem:[%s205 + $0x50] sm:$0xf]
      %v235 = vld [vmem:[%s205 + $0x54] sm:$0xff]
      %v236 = vld [vmem:[%s205 + $0x5c] sm:$0xf]
      %v237 = vld [vmem:[%s205 + $0x60] sm:$0xff]
      %v238 = vld [vmem:[%s205 + $0x68] sm:$0xf]
      %v239 = vld [vmem:[%s205 + $0x6c] sm:$0xff]
      %v240 = vld [vmem:[%s205 + $0x74] sm:$0xf]
      %v241 = vld [vmem:[%s205 + $0x78] sm:$0xff]
      %v242 = vld [vmem:[%s205 + $0x80] sm:$0xf]
      %v243 = vld [vmem:[%s205 + $0x84] sm:$0xff]
      %v244 = vld [vmem:[%s205 + $0x8c] sm:$0xf]
      %v245 = vld [vmem:[%s205 + $0x90] sm:$0xff]
      %v246 = vld [vmem:[%s205 + $0x98] sm:$0xf]
      %v247 = vld [vmem:[%s205 + $0x9c] sm:$0xff]
      %v248 = vld [vmem:[%s205 + $0xa4] sm:$0xf]
      %v249 = vld [vmem:[%s205 + $0xa8] sm:$0xff]
      %v250 = vld [vmem:[%s205 + $0xb0] sm:$0xf]
      %v251 = vld [vmem:[%s205 + $0xb4] sm:$0xff]
      %v252 = vld [vmem:[%s205 + $0xbc] sm:$0xf]
      %v253 = vld [vmem:[%s205 + $0xc0] sm:$0xff]
      %v254 = vld [vmem:[%s205 + $0xc8] sm:$0xf]
      %v255 = vld [vmem:[%s205 + $0xcc] sm:$0xff]
      %v256 = vld [vmem:[%s205 + $0xd4] sm:$0xf]
      %v257 = vld [vmem:[%s205 + $0xd8] sm:$0xff]
      %v258 = vld [vmem:[%s205 + $0xe0] sm:$0xf]
      %v259 = vld [vmem:[%s205 + $0xe4] sm:$0xff]
      %v260 = vld [vmem:[%s205 + $0xec] sm:$0xf]
      %v261 = vld [vmem:[%s205 + $0xf0] sm:$0xff]
      %v262 = vld [vmem:[%s205 + $0xf8] sm:$0xf]
      %v263 = vld [vmem:[%s205 + $0xfc] sm:$0xff]
      %v264 = vld [vmem:[%s205 + $0x104] sm:$0xf]
      %v265 = vld [vmem:[%s205 + $0x108] sm:$0xff]
      %v266 = vld [vmem:[%s205 + $0x110] sm:$0xf]
      %v267 = vld [vmem:[%s205 + $0x114] sm:$0xff]
      %v268 = vld [vmem:[%s205 + $0x11c] sm:$0xf]
      %v269 = vld [vmem:[%s205 + $0x120] sm:$0xff]
      %v270 = vld [vmem:[%s205 + $0x128] sm:$0xf]
      %v271 = vld [vmem:[%s205 + $0x12c] sm:$0xff]
      %v272 = vld [vmem:[%s205 + $0x134] sm:$0xf]
      %v273 = vld [vmem:[%s205 + $0x138] sm:$0xff]
      %v274 = vld [vmem:[%s205 + $0x140] sm:$0xf]
      %v275 = vld [vmem:[%s205 + $0x144] sm:$0xff]
      %v276 = vld [vmem:[%s205 + $0x14c] sm:$0xf]
      %v277 = vld [vmem:[%s205 + $0x150] sm:$0xff]
      %v278 = vld [vmem:[%s205 + $0x158] sm:$0xf]
      %v279 = vld [vmem:[%s205 + $0x15c] sm:$0xff]
      %v280 = vld [vmem:[%s205 + $0x164] sm:$0xf]
      %v281 = vld [vmem:[%s205 + $0x168] sm:$0xff]
      %v282 = vld [vmem:[%s205 + $0x170] sm:$0xf]
      %v283 = vld [vmem:[%s205 + $0x174] sm:$0xff]
      %v284 = vld [vmem:[%s205 + $0x17c] sm:$0xf]
      %v285 = vld [vmem:[%s1] sm:$0xff]
      %v286 = vld [vmem:[%s1 + $0xc] sm:$0xff]
      %v287 = vld [vmem:[%s1 + $0x18] sm:$0xff]
      %v288 = vld [vmem:[%s1 + $0x24] sm:$0xff]
      %v289 = vld [vmem:[%s1 + $0x30] sm:$0xff]
      %v290 = vld [vmem:[%s1 + $0x3c] sm:$0xff]
      %v291 = vld [vmem:[%s1 + $0x48] sm:$0xff]
      %v292 = vld [vmem:[%s1 + $0x54] sm:$0xff]
      %v293 = vld [vmem:[%s1 + $0x60] sm:$0xff]
      %v294 = vld [vmem:[%s1 + $0x6c] sm:$0xff]
      %v295 = vld [vmem:[%s1 + $0x78] sm:$0xff]
      %v296 = vld [vmem:[%s1 + $0x84] sm:$0xff]
      %v297 = vld [vmem:[%s1 + $0x90] sm:$0xff]
      %v298 = vld [vmem:[%s1 + $0x9c] sm:$0xff]
      %v299 = vld [vmem:[%s1 + $0xa8] sm:$0xff]
      %v300 = vld [vmem:[%s1 + $0xb4] sm:$0xff]
      %v301 = vld [vmem:[%s1 + $0xc0] sm:$0xff]
      %v302 = vld [vmem:[%s1 + $0xcc] sm:$0xff]
      %v303 = vld [vmem:[%s1 + $0xd8] sm:$0xff]
      %v304 = vld [vmem:[%s1 + $0xe4] sm:$0xff]
      %v305 = vld [vmem:[%s1 + $0xf0] sm:$0xff]
      %v306 = vld [vmem:[%s1 + $0xfc] sm:$0xff]
      %v307 = vld [vmem:[%s1 + $0x108] sm:$0xff]
      %v308 = vld [vmem:[%s1 + $0x114] sm:$0xff]
      %v309 = vld [vmem:[%s1 + $0x120] sm:$0xff]
      %v310 = vld [vmem:[%s1 + $0x12c] sm:$0xff]
      %v311 = vld [vmem:[%s1 + $0x138] sm:$0xff]
      %v312 = vld [vmem:[%s1 + $0x144] sm:$0xff]
      %v313 = vld [vmem:[%s1 + $0x150] sm:$0xff]
      %v314 = vld [vmem:[%s1 + $0x15c] sm:$0xff]
      %v315 = vld [vmem:[%s1 + $0x168] sm:$0xff]
      %v316 = vld [vmem:[%s1 + $0x174] sm:$0xff]
      %v317 = vld [vmem:[%s1 + $0x180] sm:$0xff]
      %v318 = vld [vmem:[%s1 + $0x18c] sm:$0xff]
      %v319 = vld [vmem:[%s1 + $0x198] sm:$0xff]
      %v320 = vld [vmem:[%s1 + $0x1a4] sm:$0xff]
      %v321 = vld [vmem:[%s2] ss:$8 sm:$0x3]
      %v323 = vlaneseq
      %v324 = vshrl.u32 %v323, 7
      %v325 = vsub.s32 0, %v324
      %v326 = vrot.slane %v321, %v325
      %v327 = vlaneseq
      %v328 = vshrl.u32 %v327, 7
      %v329 = vsub.s32 1, %v328
      %v330 = vrot.slane %v321, %v329
      %v397 = vunpack.c.l.b16 %v221
      %v398 = vunpack.c.h.b16 %v221
      %v399 = vunpack.c.l.b16 %v222
      %v400 = vunpack.c.l.b16 %v223
      %v401 = vunpack.c.h.b16 %v223
      %v402 = vunpack.c.l.b16 %v224
      %v403 = vunpack.c.l.b16 %v225
      %v404 = vunpack.c.h.b16 %v225
      %v405 = vunpack.c.l.b16 %v226
      %v406 = vunpack.c.l.b16 %v227
      %v407 = vunpack.c.h.b16 %v227
      %v408 = vunpack.c.l.b16 %v228
      %v409 = vunpack.c.l.b16 %v229
      %v410 = vunpack.c.h.b16 %v229
      %v411 = vunpack.c.l.b16 %v230
      %v412 = vunpack.c.l.b16 %v231
      %v413 = vunpack.c.h.b16 %v231
      %v414 = vunpack.c.l.b16 %v232
      %v415 = vunpack.c.l.b16 %v233
      %v416 = vunpack.c.h.b16 %v233
      %v417 = vunpack.c.l.b16 %v234
      %v418 = vunpack.c.l.b16 %v235
      %v419 = vunpack.c.h.b16 %v235
      %v420 = vunpack.c.l.b16 %v236
      %v421 = vunpack.c.l.b16 %v237
      %v422 = vunpack.c.h.b16 %v237
      %v423 = vunpack.c.l.b16 %v238
      %v424 = vunpack.c.l.b16 %v239
      %v425 = vunpack.c.h.b16 %v239
      %v426 = vunpack.c.l.b16 %v240
      %v427 = vunpack.c.l.b16 %v241
      %v428 = vunpack.c.h.b16 %v241
      %v429 = vunpack.c.l.b16 %v242
      %v430 = vunpack.c.l.b16 %v243
      %v431 = vunpack.c.h.b16 %v243
      %v432 = vunpack.c.l.b16 %v244
      %v433 = vunpack.c.l.b16 %v245
      %v434 = vunpack.c.h.b16 %v245
      %v435 = vunpack.c.l.b16 %v246
      %v436 = vunpack.c.l.b16 %v247
      %v437 = vunpack.c.h.b16 %v247
      %v438 = vunpack.c.l.b16 %v248
      %v439 = vunpack.c.l.b16 %v249
      %v440 = vunpack.c.h.b16 %v249
      %v441 = vunpack.c.l.b16 %v250
      %v442 = vunpack.c.l.b16 %v251
      %v443 = vunpack.c.h.b16 %v251
      %v444 = vunpack.c.l.b16 %v252
      %v445 = vunpack.c.l.b16 %v253
      %v446 = vunpack.c.h.b16 %v253
      %v447 = vunpack.c.l.b16 %v254
      %v448 = vunpack.c.l.b16 %v255
      %v449 = vunpack.c.h.b16 %v255
      %v450 = vunpack.c.l.b16 %v256
      %v451 = vunpack.c.l.b16 %v257
      %v452 = vunpack.c.h.b16 %v257
      %v453 = vunpack.c.l.b16 %v258
      %v454 = vunpack.c.l.b16 %v259
      %v455 = vunpack.c.h.b16 %v259
      %v456 = vunpack.c.l.b16 %v260
      %v457 = vunpack.c.l.b16 %v261
      %v458 = vunpack.c.h.b16 %v261
      %v459 = vunpack.c.l.b16 %v262
      %v460 = vunpack.c.l.b16 %v263
      %v461 = vunpack.c.h.b16 %v263
      %v462 = vunpack.c.l.b16 %v264
      %v463 = vunpack.c.l.b16 %v265
      %v464 = vunpack.c.h.b16 %v265
      %v465 = vunpack.c.l.b16 %v266
      %v466 = vunpack.c.l.b16 %v267
      %v467 = vunpack.c.h.b16 %v267
      %v468 = vunpack.c.l.b16 %v268
      %v469 = vunpack.c.l.b16 %v269
      %v470 = vunpack.c.h.b16 %v269
      %v471 = vunpack.c.l.b16 %v270
      %v472 = vunpack.c.l.b16 %v271
      %v473 = vunpack.c.h.b16 %v271
      %v474 = vunpack.c.l.b16 %v272
      %v475 = vunpack.c.l.b16 %v273
      %v476 = vunpack.c.h.b16 %v273
      %v477 = vunpack.c.l.b16 %v274
      %v478 = vunpack.c.l.b16 %v275
      %v479 = vunpack.c.h.b16 %v275
      %v480 = vunpack.c.l.b16 %v276
      %v481 = vunpack.c.l.b16 %v277
      %v482 = vunpack.c.h.b16 %v277
      %v483 = vunpack.c.l.b16 %v278
      %v484 = vunpack.c.l.b16 %v279
      %v485 = vunpack.c.h.b16 %v279
      %v486 = vunpack.c.l.b16 %v280
      %v487 = vunpack.c.l.b16 %v281
      %v488 = vunpack.c.h.b16 %v281
      %v489 = vunpack.c.l.b16 %v282
      %v490 = vunpack.c.l.b16 %v283
      %v491 = vunpack.c.h.b16 %v283
      %v492 = vunpack.c.l.b16 %v284
      %v493 = vpack.c.b16 %v400, %v397
      %v494 = vpack.c.b16 %v401, %v398
      %v495 = vpack.c.b16 %v402, %v399
      %v496 = vpack.c.b16 %v406, %v403
      %v497 = vpack.c.b16 %v407, %v404
      %v498 = vpack.c.b16 %v408, %v405
      %v499 = vpack.c.b16 %v412, %v409
      %v500 = vpack.c.b16 %v413, %v410
      %v501 = vpack.c.b16 %v414, %v411
      %v502 = vpack.c.b16 %v418, %v415
      %v503 = vpack.c.b16 %v419, %v416
      %v504 = vpack.c.b16 %v420, %v417
      %v505 = vpack.c.b16 %v424, %v421
      %v506 = vpack.c.b16 %v425, %v422
      %v507 = vpack.c.b16 %v426, %v423
      %v508 = vpack.c.b16 %v430, %v427
      %v509 = vpack.c.b16 %v431, %v428
      %v510 = vpack.c.b16 %v432, %v429
      %v511 = vpack.c.b16 %v436, %v433
      %v512 = vpack.c.b16 %v437, %v434
      %v513 = vpack.c.b16 %v438, %v435
      %v514 = vpack.c.b16 %v442, %v439
      %v515 = vpack.c.b16 %v443, %v440
      %v516 = vpack.c.b16 %v444, %v441
      %v517 = vpack.c.b16 %v448, %v445
      %v518 = vpack.c.b16 %v449, %v446
      %v519 = vpack.c.b16 %v450, %v447
      %v520 = vpack.c.b16 %v454, %v451
      %v521 = vpack.c.b16 %v455, %v452
      %v522 = vpack.c.b16 %v456, %v453
      %v523 = vpack.c.b16 %v460, %v457
      %v524 = vpack.c.b16 %v461, %v458
      %v525 = vpack.c.b16 %v462, %v459
      %v526 = vpack.c.b16 %v466, %v463
      %v527 = vpack.c.b16 %v467, %v464
      %v528 = vpack.c.b16 %v468, %v465
      %v529 = vpack.c.b16 %v472, %v469
      %v530 = vpack.c.b16 %v473, %v470
      %v531 = vpack.c.b16 %v474, %v471
      %v532 = vpack.c.b16 %v478, %v475
      %v533 = vpack.c.b16 %v479, %v476
      %v534 = vpack.c.b16 %v480, %v477
      %v535 = vpack.c.b16 %v484, %v481
      %v536 = vpack.c.b16 %v485, %v482
      %v537 = vpack.c.b16 %v486, %v483
      %v538 = vpack.c.b16 %v490, %v487
      %v539 = vpack.c.b16 %v491, %v488
      %v540 = vpack.c.b16 %v492, %v489
      %v609 = vunpack.c.l.b16 %v285
      %v610 = vunpack.c.h.b16 %v285
      %v611 = vunpack.c.l.b16 %v286
      %v612 = vunpack.c.h.b16 %v286
      %v613 = vunpack.c.l.b16 %v287
      %v614 = vunpack.c.h.b16 %v287
      %v615 = vunpack.c.l.b16 %v288
      %v616 = vunpack.c.h.b16 %v288
      %v617 = vunpack.c.l.b16 %v289
      %v618 = vunpack.c.h.b16 %v289
      %v619 = vunpack.c.l.b16 %v290
      %v620 = vunpack.c.h.b16 %v290
      %v621 = vunpack.c.l.b16 %v291
      %v622 = vunpack.c.h.b16 %v291
      %v623 = vunpack.c.l.b16 %v292
      %v624 = vunpack.c.h.b16 %v292
      %v625 = vunpack.c.l.b16 %v293
      %v626 = vunpack.c.h.b16 %v293
      %v627 = vunpack.c.l.b16 %v294
      %v628 = vunpack.c.h.b16 %v294
      %v629 = vunpack.c.l.b16 %v295
      %v630 = vunpack.c.h.b16 %v295
      %v631 = vunpack.c.l.b16 %v296
      %v632 = vunpack.c.h.b16 %v296
      %v633 = vunpack.c.l.b16 %v297
      %v634 = vunpack.c.h.b16 %v297
      %v635 = vunpack.c.l.b16 %v298
      %v636 = vunpack.c.h.b16 %v298
      %v637 = vunpack.c.l.b16 %v299
      %v638 = vunpack.c.h.b16 %v299
      %v639 = vunpack.c.l.b16 %v300
      %v640 = vunpack.c.h.b16 %v300
      %v641 = vunpack.c.l.b16 %v301
      %v642 = vunpack.c.h.b16 %v301
      %v643 = vunpack.c.l.b16 %v302
      %v644 = vunpack.c.h.b16 %v302
      %v645 = vunpack.c.l.b16 %v303
      %v646 = vunpack.c.h.b16 %v303
      %v647 = vunpack.c.l.b16 %v304
      %v648 = vunpack.c.h.b16 %v304
      %v649 = vunpack.c.l.b16 %v305
      %v650 = vunpack.c.h.b16 %v305
      %v651 = vunpack.c.l.b16 %v306
      %v652 = vunpack.c.h.b16 %v306
      %v653 = vunpack.c.l.b16 %v307
      %v654 = vunpack.c.h.b16 %v307
      %v655 = vunpack.c.l.b16 %v308
      %v656 = vunpack.c.h.b16 %v308
      %v657 = vunpack.c.l.b16 %v309
      %v658 = vunpack.c.h.b16 %v309
      %v659 = vunpack.c.l.b16 %v310
      %v660 = vunpack.c.h.b16 %v310
      %v661 = vunpack.c.l.b16 %v311
      %v662 = vunpack.c.h.b16 %v311
      %v663 = vunpack.c.l.b16 %v312
      %v664 = vunpack.c.h.b16 %v312
      %v665 = vunpack.c.l.b16 %v313
      %v666 = vunpack.c.h.b16 %v313
      %v667 = vunpack.c.l.b16 %v314
      %v668 = vunpack.c.h.b16 %v314
      %v669 = vunpack.c.l.b16 %v315
      %v670 = vunpack.c.h.b16 %v315
      %v671 = vunpack.c.l.b16 %v316
      %v672 = vunpack.c.h.b16 %v316
      %v673 = vunpack.c.l.b16 %v317
      %v674 = vunpack.c.h.b16 %v317
      %v675 = vunpack.c.l.b16 %v318
      %v676 = vunpack.c.h.b16 %v318
      %v677 = vunpack.c.l.b16 %v319
      %v678 = vunpack.c.h.b16 %v319
      %v679 = vunpack.c.l.b16 %v320
      %v680 = vunpack.c.h.b16 %v320
      %v681 = vpack.c.b16 %v611, %v609
      %v682 = vpack.c.b16 %v612, %v610
      %v683 = vpack.c.b16 %v615, %v613
      %v684 = vpack.c.b16 %v616, %v614
      %v685 = vpack.c.b16 %v619, %v617
      %v686 = vpack.c.b16 %v620, %v618
      %v687 = vpack.c.b16 %v623, %v621
      %v688 = vpack.c.b16 %v624, %v622
      %v689 = vpack.c.b16 %v627, %v625
      %v690 = vpack.c.b16 %v628, %v626
      %v691 = vpack.c.b16 %v631, %v629
      %v692 = vpack.c.b16 %v632, %v630
      %v693 = vpack.c.b16 %v635, %v633
      %v694 = vpack.c.b16 %v636, %v634
      %v695 = vpack.c.b16 %v639, %v637
      %v696 = vpack.c.b16 %v640, %v638
      %v697 = vpack.c.b16 %v643, %v641
      %v698 = vpack.c.b16 %v644, %v642
      %v699 = vpack.c.b16 %v647, %v645
      %v700 = vpack.c.b16 %v648, %v646
      %v701 = vpack.c.b16 %v651, %v649
      %v702 = vpack.c.b16 %v652, %v650
      %v703 = vpack.c.b16 %v655, %v653
      %v704 = vpack.c.b16 %v656, %v654
      %v705 = vpack.c.b16 %v659, %v657
      %v706 = vpack.c.b16 %v660, %v658
      %v707 = vpack.c.b16 %v663, %v661
      %v708 = vpack.c.b16 %v664, %v662
      %v709 = vpack.c.b16 %v667, %v665
      %v710 = vpack.c.b16 %v668, %v666
      %v711 = vpack.c.b16 %v671, %v669
      %v712 = vpack.c.b16 %v672, %v670
      %v713 = vpack.c.b16 %v675, %v673
      %v714 = vpack.c.b16 %v676, %v674
      %v715 = vpack.c.b16 %v679, %v677
      %v716 = vpack.c.b16 %v680, %v678
      %vm753 = vcmask 261120
      %v755 = vsel %vm753, %v495, 0
      %v758 = vsel %vm753, %v498, 0
      %v761 = vsel %vm753, %v501, 0
      %v764 = vsel %vm753, %v504, 0
      %v767 = vsel %vm753, %v507, 0
      %v770 = vsel %vm753, %v510, 0
      %v773 = vsel %vm753, %v513, 0
      %v776 = vsel %vm753, %v516, 0
      %v779 = vsel %vm753, %v519, 0
      %v782 = vsel %vm753, %v522, 0
      %v785 = vsel %vm753, %v525, 0
      %v788 = vsel %vm753, %v528, 0
      %v791 = vsel %vm753, %v531, 0
      %v794 = vsel %vm753, %v534, 0
      %v797 = vsel %vm753, %v537, 0
      %v800 = vsel %vm753, %v540, 0
      %802 = vmatprep.subr.bf16.mxu0 %v682
      %803 = vmatpush1.bf16.msra.mxu0 %v681
      %804 = vmatprep.subr.bf16.mxu0 %v684
      %805 = vmatpush1.bf16.msra.mxu0 %v683
      %806 = vmatprep.subr.bf16.mxu0 %v686
      %807 = vmatpush1.bf16.msra.mxu0 %v685
      %808 = vmatprep.subr.bf16.mxu0 %v688
      %809 = vmatpush1.bf16.msra.mxu0 %v687
      %810 = vmatprep.subr.bf16.mxu0 %v690
      %811 = vmatpush1.bf16.msra.mxu0 %v689
      %812 = vmatprep.subr.bf16.mxu0 %v692
      %813 = vmatpush1.bf16.msra.mxu0 %v691
      %814 = vmatprep.subr.bf16.mxu0 %v694
      %815 = vmatpush1.bf16.msra.mxu0 %v693
      %816 = vmatprep.subr.bf16.mxu0 %v696
      %817 = vmatpush1.bf16.msra.mxu0 %v695
      %818 = vmatprep.subr.bf16.mxu0 %v698
      %819 = vmatpush1.bf16.msra.mxu0 %v697
      %820 = vmatprep.subr.bf16.mxu0 %v700
      %821 = vmatpush1.bf16.msra.mxu0 %v699
      %822 = vmatprep.subr.bf16.mxu0 %v702
      %823 = vmatpush1.bf16.msra.mxu0 %v701
      %824 = vmatprep.subr.bf16.mxu0 %v704
      %825 = vmatpush1.bf16.msra.mxu0 %v703
      %826 = vmatprep.subr.bf16.mxu0 %v706
      %827 = vmatpush1.bf16.msra.mxu0 %v705
      %828 = vmatprep.subr.bf16.mxu0 %v708
      %829 = vmatpush1.bf16.msra.mxu0 %v707
      %830 = vmatprep.subr.bf16.mxu0 %v710
      %831 = vmatpush1.bf16.msra.mxu0 %v709
      %832 = vmatprep.subr.bf16.mxu0 %v712
      %833 = vmatpush1.bf16.msra.mxu0 %v711
      %834 = vmatprep.mubr.bf16.mxu0 %v494
      %835 = vmatmul.mubr.bf16.gmra.mrb[0].mxu0 %v493
      %v836 = vpop.f32.mrb[0].mxu0
      %v837 = vadd.f32 %v326, %v836
      %v838 = vpop.f32.mrb[0].mxu0
      %v839 = vadd.f32 %v330, %v838
      %v840 = vpop.f32.mrb[0].mxu0
      %v841 = vadd.f32 %v326, %v840
      %v842 = vpop.f32.mrb[0].mxu0
      %v843 = vadd.f32 %v330, %v842
      %844 = vmatprep.mubr.bf16.mxu0 %v497
      %845 = vmatmul.mubr.bf16.gmra.mrb[0].mxu0 %v496
      %v846 = vpop.f32.mrb[0].mxu0
      %v847 = vadd.f32 %v326, %v846
      %v848 = vpop.f32.mrb[0].mxu0
      %v849 = vadd.f32 %v330, %v848
      %v850 = vpop.f32.mrb[0].mxu0
      %v851 = vadd.f32 %v326, %v850
      %v852 = vpop.f32.mrb[0].mxu0
      %v853 = vadd.f32 %v330, %v852
      %854 = vmatprep.mubr.bf16.mxu0 %v500
      %855 = vmatmul.mubr.bf16.gmra.mrb[0].mxu0 %v499
      %v856 = vpop.f32.mrb[0].mxu0
      %v857 = vadd.f32 %v326, %v856
      %v858 = vpop.f32.mrb[0].mxu0
      %v859 = vadd.f32 %v330, %v858
      %v860 = vpop.f32.mrb[0].mxu0
      %v861 = vadd.f32 %v326, %v860
      %v862 = vpop.f32.mrb[0].mxu0
      %v863 = vadd.f32 %v330, %v862
      %864 = vmatprep.mubr.bf16.mxu0 %v503
      %865 = vmatmul.mubr.bf16.gmra.mrb[0].mxu0 %v502
      %v866 = vpop.f32.mrb[0].mxu0
      %v867 = vadd.f32 %v326, %v866
      %v868 = vpop.f32.mrb[0].mxu0
      %v869 = vadd.f32 %v330, %v868
      %v870 = vpop.f32.mrb[0].mxu0
      %v871 = vadd.f32 %v326, %v870
      %v872 = vpop.f32.mrb[0].mxu0
      %v873 = vadd.f32 %v330, %v872
      %874 = vmatprep.mubr.bf16.mxu0 %v506
      %875 = vmatmul.mubr.bf16.gmra.mrb[0].mxu0 %v505
      %v876 = vpop.f32.mrb[0].mxu0
      %v877 = vadd.f32 %v326, %v876
      %v878 = vpop.f32.mrb[0].mxu0
      %v879 = vadd.f32 %v330, %v878
      %v880 = vpop.f32.mrb[0].mxu0
      %v881 = vadd.f32 %v326, %v880
      %v882 = vpop.f32.mrb[0].mxu0
      %v883 = vadd.f32 %v330, %v882
      %884 = vmatprep.mubr.bf16.mxu0 %v509
      %885 = vmatmul.mubr.bf16.gmra.mrb[0].mxu0 %v508
      %v886 = vpop.f32.mrb[0].mxu0
      %v887 = vadd.f32 %v326, %v886
      %v888 = vpop.f32.mrb[0].mxu0
      %v889 = vadd.f32 %v330, %v888
      %v890 = vpop.f32.mrb[0].mxu0
      %v891 = vadd.f32 %v326, %v890
      %v892 = vpop.f32.mrb[0].mxu0
      %v893 = vadd.f32 %v330, %v892
      %894 = vmatprep.mubr.bf16.mxu0 %v512
      %895 = vmatmul.mubr.bf16.gmra.mrb[0].mxu0 %v511
      %v896 = vpop.f32.mrb[0].mxu0
      %v897 = vadd.f32 %v326, %v896
      %v898 = vpop.f32.mrb[0].mxu0
      %v899 = vadd.f32 %v330, %v898
      %v900 = vpop.f32.mrb[0].mxu0
      %v901 = vadd.f32 %v326, %v900
      %v902 = vpop.f32.mrb[0].mxu0
      %v903 = vadd.f32 %v330, %v902
      %904 = vmatprep.mubr.bf16.mxu0 %v515
      %905 = vmatmul.mubr.bf16.gmra.mrb[0].mxu0 %v514
      %v906 = vpop.f32.mrb[0].mxu0
      %v907 = vadd.f32 %v326, %v906
      %v908 = vpop.f32.mrb[0].mxu0
      %v909 = vadd.f32 %v330, %v908
      %v910 = vpop.f32.mrb[0].mxu0
      %v911 = vadd.f32 %v326, %v910
      %v912 = vpop.f32.mrb[0].mxu0
      %v913 = vadd.f32 %v330, %v912
      %914 = vmatprep.mubr.bf16.mxu0 %v518
      %915 = vmatmul.mubr.bf16.gmra.mrb[0].mxu0 %v517
      %v916 = vpop.f32.mrb[0].mxu0
      %v917 = vadd.f32 %v326, %v916
      %v918 = vpop.f32.mrb[0].mxu0
      %v919 = vadd.f32 %v330, %v918
      %v920 = vpop.f32.mrb[0].mxu0
      %v921 = vadd.f32 %v326, %v920
      %v922 = vpop.f32.mrb[0].mxu0
      %v923 = vadd.f32 %v330, %v922
      %924 = vmatprep.mubr.bf16.mxu0 %v521
      %925 = vmatmul.mubr.bf16.gmra.mrb[0].mxu0 %v520
      %v926 = vpop.f32.mrb[0].mxu0
      %v927 = vadd.f32 %v326, %v926
      %v928 = vpop.f32.mrb[0].mxu0
      %v929 = vadd.f32 %v330, %v928
      %v930 = vpop.f32.mrb[0].mxu0
      %v931 = vadd.f32 %v326, %v930
      %v932 = vpop.f32.mrb[0].mxu0
      %v933 = vadd.f32 %v330, %v932
      %934 = vmatprep.mubr.bf16.mxu0 %v524
      %935 = vmatmul.mubr.bf16.gmra.mrb[0].mxu0 %v523
      %v936 = vpop.f32.mrb[0].mxu0
      %v937 = vadd.f32 %v326, %v936
      %v938 = vpop.f32.mrb[0].mxu0
      %v939 = vadd.f32 %v330, %v938
      %v940 = vpop.f32.mrb[0].mxu0
      %v941 = vadd.f32 %v326, %v940
      %v942 = vpop.f32.mrb[0].mxu0
      %v943 = vadd.f32 %v330, %v942
      %944 = vmatprep.mubr.bf16.mxu0 %v527
      %945 = vmatmul.mubr.bf16.gmra.mrb[0].mxu0 %v526
      %v946 = vpop.f32.mrb[0].mxu0
      %v947 = vadd.f32 %v326, %v946
      %v948 = vpop.f32.mrb[0].mxu0
      %v949 = vadd.f32 %v330, %v948
      %v950 = vpop.f32.mrb[0].mxu0
      %v951 = vadd.f32 %v326, %v950
      %v952 = vpop.f32.mrb[0].mxu0
      %v953 = vadd.f32 %v330, %v952
      %954 = vmatprep.mubr.bf16.mxu0 %v530
      %955 = vmatmul.mubr.bf16.gmra.mrb[0].mxu0 %v529
      %v956 = vpop.f32.mrb[0].mxu0
      %v957 = vadd.f32 %v326, %v956
      %v958 = vpop.f32.mrb[0].mxu0
      %v959 = vadd.f32 %v330, %v958
      %v960 = vpop.f32.mrb[0].mxu0
      %v961 = vadd.f32 %v326, %v960
      %v962 = vpop.f32.mrb[0].mxu0
      %v963 = vadd.f32 %v330, %v962
      %964 = vmatprep.mubr.bf16.mxu0 %v533
      %965 = vmatmul.mubr.bf16.gmra.mrb[0].mxu0 %v532
      %v966 = vpop.f32.mrb[0].mxu0
      %v967 = vadd.f32 %v326, %v966
      %v968 = vpop.f32.mrb[0].mxu0
      %v969 = vadd.f32 %v330, %v968
      %v970 = vpop.f32.mrb[0].mxu0
      %v971 = vadd.f32 %v326, %v970
      %v972 = vpop.f32.mrb[0].mxu0
      %v973 = vadd.f32 %v330, %v972
      %974 = vmatprep.mubr.bf16.mxu0 %v536
      %975 = vmatmul.mubr.bf16.gmra.mrb[0].mxu0 %v535
      %v976 = vpop.f32.mrb[0].mxu0
      %v977 = vadd.f32 %v326, %v976
      %v978 = vpop.f32.mrb[0].mxu0
      %v979 = vadd.f32 %v330, %v978
      %v980 = vpop.f32.mrb[0].mxu0
      %v981 = vadd.f32 %v326, %v980
      %v982 = vpop.f32.mrb[0].mxu0
      %v983 = vadd.f32 %v330, %v982
      %984 = vmatprep.mubr.bf16.mxu0 %v539
      %985 = vmatmul.mubr.bf16.gmra.mrb[0].mxu0 %v538
      %v986 = vpop.f32.mrb[0].mxu0
      %v987 = vadd.f32 %v326, %v986
      %v988 = vpop.f32.mrb[0].mxu0
      %v989 = vadd.f32 %v330, %v988
      %v990 = vpop.f32.mrb[0].mxu0
      %v991 = vadd.f32 %v326, %v990
      %v992 = vpop.f32.mrb[0].mxu0
      %v993 = vadd.f32 %v330, %v992
      %994 = vdwg.mxu0
      %995 = vmatprep.subr.bf16.mxu0 %v714
      %996 = vmatpush1.bf16.msra.mxu0 %v713
      %997 = vmatprep.subr.bf16.mxu0 %v716
      %998 = vmatpush1.bf16.msra.mxu0 %v715
      %999 = vmatprep.subr.bf16.mxu0 0
      %1000 = vmatpush1.bf16.msra.mxu0 0
      %1001 = vmatprep.subr.bf16.mxu0 0
      %1002 = vmatpush1.bf16.msra.mxu0 0
      %1003 = vmatprep.subr.bf16.mxu0 0
      %1004 = vmatpush1.bf16.msra.mxu0 0
      %1005 = vmatprep.subr.bf16.mxu0 0
      %1006 = vmatpush1.bf16.msra.mxu0 0
      %1007 = vmatprep.subr.bf16.mxu0 0
      %1008 = vmatpush1.bf16.msra.mxu0 0
      %1009 = vmatprep.subr.bf16.mxu0 0
      %1010 = vmatpush1.bf16.msra.mxu0 0
      %1011 = vmatprep.subr.bf16.mxu0 0
      %1012 = vmatpush1.bf16.msra.mxu0 0
      %1013 = vmatprep.subr.bf16.mxu0 0
      %1014 = vmatpush1.bf16.msra.mxu0 0
      %1015 = vmatprep.subr.bf16.mxu0 0
      %1016 = vmatpush1.bf16.msra.mxu0 0
      %1017 = vmatprep.subr.bf16.mxu0 0
      %1018 = vmatpush1.bf16.msra.mxu0 0
      %1019 = vmatprep.subr.bf16.mxu0 0
      %1020 = vmatpush1.bf16.msra.mxu0 0
      %1021 = vmatprep.subr.bf16.mxu0 0
      %1022 = vmatpush1.bf16.msra.mxu0 0
      %1023 = vmatprep.subr.bf16.mxu0 0
      %1024 = vmatpush1.bf16.msra.mxu0 0
      %1025 = vmatprep.subr.bf16.mxu0 0
      %1026 = vmatpush1.bf16.msra.mxu0 0
      %1027 = vmatprep.mubr.bf16.mxu0 0
      %1028 = vmatmul.mubr.bf16.gmra.mrb[0].mxu0 %v755
      %v1029 = vpop.f32.mrb[0].mxu0
      %v1030 = vadd.f32 %v837, %v1029
      %v1031 = vpop.f32.mrb[0].mxu0
      %v1032 = vadd.f32 %v839, %v1031
      %v1033 = vpop.f32.mrb[0].mxu0
      %v1034 = vadd.f32 %v841, %v1033
      %v1035 = vpop.f32.mrb[0].mxu0
      %v1036 = vadd.f32 %v843, %v1035
      %1037 = vmatprep.mubr.bf16.mxu0 0
      %1038 = vmatmul.mubr.bf16.gmra.mrb[0].mxu0 %v758
      %v1039 = vpop.f32.mrb[0].mxu0
      %v1040 = vadd.f32 %v847, %v1039
      %v1041 = vpop.f32.mrb[0].mxu0
      %v1042 = vadd.f32 %v849, %v1041
      %v1043 = vpop.f32.mrb[0].mxu0
      %v1044 = vadd.f32 %v851, %v1043
      %v1045 = vpop.f32.mrb[0].mxu0
      %v1046 = vadd.f32 %v853, %v1045
      %1047 = vmatprep.mubr.bf16.mxu0 0
      %1048 = vmatmul.mubr.bf16.gmra.mrb[0].mxu0 %v761
      %v1049 = vpop.f32.mrb[0].mxu0
      %v1050 = vadd.f32 %v857, %v1049
      %v1051 = vpop.f32.mrb[0].mxu0
      %v1052 = vadd.f32 %v859, %v1051
      %v1053 = vpop.f32.mrb[0].mxu0
      %v1054 = vadd.f32 %v861, %v1053
      %v1055 = vpop.f32.mrb[0].mxu0
      %v1056 = vadd.f32 %v863, %v1055
      %1057 = vmatprep.mubr.bf16.mxu0 0
      %1058 = vmatmul.mubr.bf16.gmra.mrb[0].mxu0 %v764
      %v1059 = vpop.f32.mrb[0].mxu0
      %v1060 = vadd.f32 %v867, %v1059
      %v1061 = vpop.f32.mrb[0].mxu0
      %v1062 = vadd.f32 %v869, %v1061
      %v1063 = vpop.f32.mrb[0].mxu0
      %v1064 = vadd.f32 %v871, %v1063
      %v1065 = vpop.f32.mrb[0].mxu0
      %v1066 = vadd.f32 %v873, %v1065
      %1067 = vmatprep.mubr.bf16.mxu0 0
      %1068 = vmatmul.mubr.bf16.gmra.mrb[0].mxu0 %v767
      %v1069 = vpop.f32.mrb[0].mxu0
      %v1070 = vadd.f32 %v877, %v1069
      %v1071 = vpop.f32.mrb[0].mxu0
      %v1072 = vadd.f32 %v879, %v1071
      %v1073 = vpop.f32.mrb[0].mxu0
      %v1074 = vadd.f32 %v881, %v1073
      %v1075 = vpop.f32.mrb[0].mxu0
      %v1076 = vadd.f32 %v883, %v1075
      %1077 = vmatprep.mubr.bf16.mxu0 0
      %1078 = vmatmul.mubr.bf16.gmra.mrb[0].mxu0 %v770
      %v1079 = vpop.f32.mrb[0].mxu0
      %v1080 = vadd.f32 %v887, %v1079
      %v1081 = vpop.f32.mrb[0].mxu0
      %v1082 = vadd.f32 %v889, %v1081
      %v1083 = vpop.f32.mrb[0].mxu0
      %v1084 = vadd.f32 %v891, %v1083
      %v1085 = vpop.f32.mrb[0].mxu0
      %v1086 = vadd.f32 %v893, %v1085
      %1087 = vmatprep.mubr.bf16.mxu0 0
      %1088 = vmatmul.mubr.bf16.gmra.mrb[0].mxu0 %v773
      %v1089 = vpop.f32.mrb[0].mxu0
      %v1090 = vadd.f32 %v897, %v1089
      %v1091 = vpop.f32.mrb[0].mxu0
      %v1092 = vadd.f32 %v899, %v1091
      %v1093 = vpop.f32.mrb[0].mxu0
      %v1094 = vadd.f32 %v901, %v1093
      %v1095 = vpop.f32.mrb[0].mxu0
      %v1096 = vadd.f32 %v903, %v1095
      %1097 = vmatprep.mubr.bf16.mxu0 0
      %1098 = vmatmul.mubr.bf16.gmra.mrb[0].mxu0 %v776
      %v1099 = vpop.f32.mrb[0].mxu0
      %v1100 = vadd.f32 %v907, %v1099
      %v1101 = vpop.f32.mrb[0].mxu0
      %v1102 = vadd.f32 %v909, %v1101
      %v1103 = vpop.f32.mrb[0].mxu0
      %v1104 = vadd.f32 %v911, %v1103
      %v1105 = vpop.f32.mrb[0].mxu0
      %v1106 = vadd.f32 %v913, %v1105
      %1107 = vmatprep.mubr.bf16.mxu0 0
      %1108 = vmatmul.mubr.bf16.gmra.mrb[0].mxu0 %v779
      %v1109 = vpop.f32.mrb[0].mxu0
      %v1110 = vadd.f32 %v917, %v1109
      %v1111 = vpop.f32.mrb[0].mxu0
      %v1112 = vadd.f32 %v919, %v1111
      %v1113 = vpop.f32.mrb[0].mxu0
      %v1114 = vadd.f32 %v921, %v1113
      %v1115 = vpop.f32.mrb[0].mxu0
      %v1116 = vadd.f32 %v923, %v1115
      %1117 = vmatprep.mubr.bf16.mxu0 0
      %1118 = vmatmul.mubr.bf16.gmra.mrb[0].mxu0 %v782
      %v1119 = vpop.f32.mrb[0].mxu0
      %v1120 = vadd.f32 %v927, %v1119
      %v1121 = vpop.f32.mrb[0].mxu0
      %v1122 = vadd.f32 %v929, %v1121
      %v1123 = vpop.f32.mrb[0].mxu0
      %v1124 = vadd.f32 %v931, %v1123
      %v1125 = vpop.f32.mrb[0].mxu0
      %v1126 = vadd.f32 %v933, %v1125
      %1127 = vmatprep.mubr.bf16.mxu0 0
      %1128 = vmatmul.mubr.bf16.gmra.mrb[0].mxu0 %v785
      %v1129 = vpop.f32.mrb[0].mxu0
      %v1130 = vadd.f32 %v937, %v1129
      %v1131 = vpop.f32.mrb[0].mxu0
      %v1132 = vadd.f32 %v939, %v1131
      %v1133 = vpop.f32.mrb[0].mxu0
      %v1134 = vadd.f32 %v941, %v1133
      %v1135 = vpop.f32.mrb[0].mxu0
      %v1136 = vadd.f32 %v943, %v1135
      %1137 = vmatprep.mubr.bf16.mxu0 0
      %1138 = vmatmul.mubr.bf16.gmra.mrb[0].mxu0 %v788
      %v1139 = vpop.f32.mrb[0].mxu0
      %v1140 = vadd.f32 %v947, %v1139
      %v1141 = vpop.f32.mrb[0].mxu0
      %v1142 = vadd.f32 %v949, %v1141
      %v1143 = vpop.f32.mrb[0].mxu0
      %v1144 = vadd.f32 %v951, %v1143
      %v1145 = vpop.f32.mrb[0].mxu0
      %v1146 = vadd.f32 %v953, %v1145
      %1147 = vmatprep.mubr.bf16.mxu0 0
      %1148 = vmatmul.mubr.bf16.gmra.mrb[0].mxu0 %v791
      %v1149 = vpop.f32.mrb[0].mxu0
      %v1150 = vadd.f32 %v957, %v1149
      %v1151 = vpop.f32.mrb[0].mxu0
      %v1152 = vadd.f32 %v959, %v1151
      %v1153 = vpop.f32.mrb[0].mxu0
      %v1154 = vadd.f32 %v961, %v1153
      %v1155 = vpop.f32.mrb[0].mxu0
      %v1156 = vadd.f32 %v963, %v1155
      %1157 = vmatprep.mubr.bf16.mxu0 0
      %1158 = vmatmul.mubr.bf16.gmra.mrb[0].mxu0 %v794
      %v1159 = vpop.f32.mrb[0].mxu0
      %v1160 = vadd.f32 %v967, %v1159
      %v1161 = vpop.f32.mrb[0].mxu0
      %v1162 = vadd.f32 %v969, %v1161
      %v1163 = vpop.f32.mrb[0].mxu0
      %v1164 = vadd.f32 %v971, %v1163
      %v1165 = vpop.f32.mrb[0].mxu0
      %v1166 = vadd.f32 %v973, %v1165
      %1167 = vmatprep.mubr.bf16.mxu0 0
      %1168 = vmatmul.mubr.bf16.gmra.mrb[0].mxu0 %v797
      %v1169 = vpop.f32.mrb[0].mxu0
      %v1170 = vadd.f32 %v977, %v1169
      %v1171 = vpop.f32.mrb[0].mxu0
      %v1172 = vadd.f32 %v979, %v1171
      %v1173 = vpop.f32.mrb[0].mxu0
      %v1174 = vadd.f32 %v981, %v1173
      %v1175 = vpop.f32.mrb[0].mxu0
      %v1176 = vadd.f32 %v983, %v1175
      %1177 = vmatprep.mubr.bf16.mxu0 0
      %1178 = vmatmul.mubr.bf16.gmra.mrb[0].mxu0 %v800
      %v1179 = vpop.f32.mrb[0].mxu0
      %v1180 = vadd.f32 %v987, %v1179
      %v1181 = vpop.f32.mrb[0].mxu0
      %v1182 = vadd.f32 %v989, %v1181
      %v1183 = vpop.f32.mrb[0].mxu0
      %v1184 = vadd.f32 %v991, %v1183
      %v1185 = vpop.f32.mrb[0].mxu0
      %v1186 = vadd.f32 %v993, %v1185
      %1187 = vdwg.mxu0
      %v1188 = vmax.f32 %v1030, 0.0
      %v1189 = vmax.f32 %v1032, 0.0
      %v1190 = vmax.f32 %v1034, 0.0
      %v1191 = vmax.f32 %v1036, 0.0
      %v1192 = vmax.f32 %v1040, 0.0
      %v1193 = vmax.f32 %v1042, 0.0
      %v1194 = vmax.f32 %v1044, 0.0
      %v1195 = vmax.f32 %v1046, 0.0
      %v1196 = vmax.f32 %v1050, 0.0
      %v1197 = vmax.f32 %v1052, 0.0
      %v1198 = vmax.f32 %v1054, 0.0
      %v1199 = vmax.f32 %v1056, 0.0
      %v1200 = vmax.f32 %v1060, 0.0
      %v1201 = vmax.f32 %v1062, 0.0
      %v1202 = vmax.f32 %v1064, 0.0
      %v1203 = vmax.f32 %v1066, 0.0
      %v1204 = vmax.f32 %v1070, 0.0
      %v1205 = vmax.f32 %v1072, 0.0
      %v1206 = vmax.f32 %v1074, 0.0
      %v1207 = vmax.f32 %v1076, 0.0
      %v1208 = vmax.f32 %v1080, 0.0
      %v1209 = vmax.f32 %v1082, 0.0
      %v1210 = vmax.f32 %v1084, 0.0
      %v1211 = vmax.f32 %v1086, 0.0
      %v1212 = vmax.f32 %v1090, 0.0
      %v1213 = vmax.f32 %v1092, 0.0
      %v1214 = vmax.f32 %v1094, 0.0
      %v1215 = vmax.f32 %v1096, 0.0
      %v1216 = vmax.f32 %v1100, 0.0
      %v1217 = vmax.f32 %v1102, 0.0
      %v1218 = vmax.f32 %v1104, 0.0
      %v1219 = vmax.f32 %v1106, 0.0
      %v1220 = vmax.f32 %v1110, 0.0
      %v1221 = vmax.f32 %v1112, 0.0
      %v1222 = vmax.f32 %v1114, 0.0
      %v1223 = vmax.f32 %v1116, 0.0
      %v1224 = vmax.f32 %v1120, 0.0
      %v1225 = vmax.f32 %v1122, 0.0
      %v1226 = vmax.f32 %v1124, 0.0
      %v1227 = vmax.f32 %v1126, 0.0
      %v1228 = vmax.f32 %v1130, 0.0
      %v1229 = vmax.f32 %v1132, 0.0
      %v1230 = vmax.f32 %v1134, 0.0
      %v1231 = vmax.f32 %v1136, 0.0
      %v1232 = vmax.f32 %v1140, 0.0
      %v1233 = vmax.f32 %v1142, 0.0
      %v1234 = vmax.f32 %v1144, 0.0
      %v1235 = vmax.f32 %v1146, 0.0
      %v1236 = vmax.f32 %v1150, 0.0
      %v1237 = vmax.f32 %v1152, 0.0
      %v1238 = vmax.f32 %v1154, 0.0
      %v1239 = vmax.f32 %v1156, 0.0
      %v1240 = vmax.f32 %v1160, 0.0
      %v1241 = vmax.f32 %v1162, 0.0
      %v1242 = vmax.f32 %v1164, 0.0
      %v1243 = vmax.f32 %v1166, 0.0
      %v1244 = vmax.f32 %v1170, 0.0
      %v1245 = vmax.f32 %v1172, 0.0
      %v1246 = vmax.f32 %v1174, 0.0
      %v1247 = vmax.f32 %v1176, 0.0
      %v1248 = vmax.f32 %v1180, 0.0
      %v1249 = vmax.f32 %v1182, 0.0
      %v1250 = vmax.f32 %v1184, 0.0
      %v1251 = vmax.f32 %v1186, 0.0
      %v1252 = vpack.c.bf16 %v1190, %v1188
      %v1253 = vpack.c.bf16 %v1191, %v1189
      %v1254 = vpack.c.bf16 %v1194, %v1192
      %v1255 = vpack.c.bf16 %v1195, %v1193
      %v1256 = vpack.c.bf16 %v1198, %v1196
      %v1257 = vpack.c.bf16 %v1199, %v1197
      %v1258 = vpack.c.bf16 %v1202, %v1200
      %v1259 = vpack.c.bf16 %v1203, %v1201
      %v1260 = vpack.c.bf16 %v1206, %v1204
      %v1261 = vpack.c.bf16 %v1207, %v1205
      %v1262 = vpack.c.bf16 %v1210, %v1208
      %v1263 = vpack.c.bf16 %v1211, %v1209
      %v1264 = vpack.c.bf16 %v1214, %v1212
      %v1265 = vpack.c.bf16 %v1215, %v1213
      %v1266 = vpack.c.bf16 %v1218, %v1216
      %v1267 = vpack.c.bf16 %v1219, %v1217
      %v1268 = vpack.c.bf16 %v1222, %v1220
      %v1269 = vpack.c.bf16 %v1223, %v1221
      %v1270 = vpack.c.bf16 %v1226, %v1224
      %v1271 = vpack.c.bf16 %v1227, %v1225
      %v1272 = vpack.c.bf16 %v1230, %v1228
      %v1273 = vpack.c.bf16 %v1231, %v1229
      %v1274 = vpack.c.bf16 %v1234, %v1232
      %v1275 = vpack.c.bf16 %v1235, %v1233
      %v1276 = vpack.c.bf16 %v1238, %v1236
      %v1277 = vpack.c.bf16 %v1239, %v1237
      %v1278 = vpack.c.bf16 %v1242, %v1240
      %v1279 = vpack.c.bf16 %v1243, %v1241
      %v1280 = vpack.c.bf16 %v1246, %v1244
      %v1281 = vpack.c.bf16 %v1247, %v1245
      %v1282 = vpack.c.bf16 %v1250, %v1248
      %v1283 = vpack.c.bf16 %v1251, %v1249
      %s1284 = scalar_lea.vmem %s1, 432
      %v1285 = vld [vmem:[%s1284] sm:$0xff]
      %v1286 = vld [vmem:[%s1284 + $0xc] sm:$0xff]
      %v1287 = vld [vmem:[%s1284 + $0x18] sm:$0xff]
      %v1288 = vld [vmem:[%s1284 + $0x24] sm:$0xff]
      %v1289 = vld [vmem:[%s1284 + $0x30] sm:$0xff]
      %v1290 = vld [vmem:[%s1284 + $0x3c] sm:$0xff]
      %v1291 = vld [vmem:[%s1284 + $0x48] sm:$0xff]
      %v1292 = vld [vmem:[%s1284 + $0x54] sm:$0xff]
      %v1293 = vld [vmem:[%s1284 + $0x60] sm:$0xff]
      %v1294 = vld [vmem:[%s1284 + $0x6c] sm:$0xff]
      %v1295 = vld [vmem:[%s1284 + $0x78] sm:$0xff]
      %v1296 = vld [vmem:[%s1284 + $0x84] sm:$0xff]
      %v1297 = vld [vmem:[%s1284 + $0x90] sm:$0xff]
      %v1298 = vld [vmem:[%s1284 + $0x9c] sm:$0xff]
      %v1299 = vld [vmem:[%s1284 + $0xa8] sm:$0xff]
      %v1300 = vld [vmem:[%s1284 + $0xb4] sm:$0xff]
      %v1301 = vld [vmem:[%s1284 + $0xc0] sm:$0xff]
      %v1302 = vld [vmem:[%s1284 + $0xcc] sm:$0xff]
      %v1303 = vld [vmem:[%s1284 + $0xd8] sm:$0xff]
      %v1304 = vld [vmem:[%s1284 + $0xe4] sm:$0xff]
      %v1305 = vld [vmem:[%s1284 + $0xf0] sm:$0xff]
      %v1306 = vld [vmem:[%s1284 + $0xfc] sm:$0xff]
      %v1307 = vld [vmem:[%s1284 + $0x108] sm:$0xff]
      %v1308 = vld [vmem:[%s1284 + $0x114] sm:$0xff]
      %v1309 = vld [vmem:[%s1284 + $0x120] sm:$0xff]
      %v1310 = vld [vmem:[%s1284 + $0x12c] sm:$0xff]
      %v1311 = vld [vmem:[%s1284 + $0x138] sm:$0xff]
      %v1312 = vld [vmem:[%s1284 + $0x144] sm:$0xff]
      %v1313 = vld [vmem:[%s1284 + $0x150] sm:$0xff]
      %v1314 = vld [vmem:[%s1284 + $0x15c] sm:$0xff]
      %v1315 = vld [vmem:[%s1284 + $0x168] sm:$0xff]
      %v1316 = vld [vmem:[%s1284 + $0x174] sm:$0xff]
      %s1317 = scalar_lea.vmem %s2, 1
      %v1318 = vld [vmem:[%s1317] ss:$8 sm:$0x3]
      %v1320 = vlaneseq
      %v1321 = vshrl.u32 %v1320, 7
      %v1322 = vsub.s32 0, %v1321
      %v1323 = vrot.slane %v1318, %v1322
      %v1324 = vlaneseq
      %v1325 = vshrl.u32 %v1324, 7
      %v1326 = vsub.s32 1, %v1325
      %v1327 = vrot.slane %v1318, %v1326
      %v1362 = vunpack.c.l.b16 %v1285
      %v1363 = vunpack.c.h.b16 %v1285
      %v1364 = vunpack.c.l.b16 %v1286
      %v1365 = vunpack.c.h.b16 %v1286
      %v1366 = vunpack.c.l.b16 %v1287
      %v1367 = vunpack.c.h.b16 %v1287
      %v1368 = vunpack.c.l.b16 %v1288
      %v1369 = vunpack.c.h.b16 %v1288
      %v1370 = vunpack.c.l.b16 %v1289
      %v1371 = vunpack.c.h.b16 %v1289
      %v1372 = vunpack.c.l.b16 %v1290
      %v1373 = vunpack.c.h.b16 %v1290
      %v1374 = vunpack.c.l.b16 %v1291
      %v1375 = vunpack.c.h.b16 %v1291
      %v1376 = vunpack.c.l.b16 %v1292
      %v1377 = vunpack.c.h.b16 %v1292
      %v1378 = vunpack.c.l.b16 %v1293
      %v1379 = vunpack.c.h.b16 %v1293
      %v1380 = vunpack.c.l.b16 %v1294
      %v1381 = vunpack.c.h.b16 %v1294
      %v1382 = vunpack.c.l.b16 %v1295
      %v1383 = vunpack.c.h.b16 %v1295
      %v1384 = vunpack.c.l.b16 %v1296
      %v1385 = vunpack.c.h.b16 %v1296
      %v1386 = vunpack.c.l.b16 %v1297
      %v1387 = vunpack.c.h.b16 %v1297
      %v1388 = vunpack.c.l.b16 %v1298
      %v1389 = vunpack.c.h.b16 %v1298
      %v1390 = vunpack.c.l.b16 %v1299
      %v1391 = vunpack.c.h.b16 %v1299
      %v1392 = vunpack.c.l.b16 %v1300
      %v1393 = vunpack.c.h.b16 %v1300
      %v1394 = vunpack.c.l.b16 %v1301
      %v1395 = vunpack.c.h.b16 %v1301
      %v1396 = vunpack.c.l.b16 %v1302
      %v1397 = vunpack.c.h.b16 %v1302
      %v1398 = vunpack.c.l.b16 %v1303
      %v1399 = vunpack.c.h.b16 %v1303
      %v1400 = vunpack.c.l.b16 %v1304
      %v1401 = vunpack.c.h.b16 %v1304
      %v1402 = vunpack.c.l.b16 %v1305
      %v1403 = vunpack.c.h.b16 %v1305
      %v1404 = vunpack.c.l.b16 %v1306
      %v1405 = vunpack.c.h.b16 %v1306
      %v1406 = vunpack.c.l.b16 %v1307
      %v1407 = vunpack.c.h.b16 %v1307
      %v1408 = vunpack.c.l.b16 %v1308
      %v1409 = vunpack.c.h.b16 %v1308
      %v1410 = vunpack.c.l.b16 %v1309
      %v1411 = vunpack.c.h.b16 %v1309
      %v1412 = vunpack.c.l.b16 %v1310
      %v1413 = vunpack.c.h.b16 %v1310
      %v1414 = vunpack.c.l.b16 %v1311
      %v1415 = vunpack.c.h.b16 %v1311
      %v1416 = vunpack.c.l.b16 %v1312
      %v1417 = vunpack.c.h.b16 %v1312
      %v1418 = vunpack.c.l.b16 %v1313
      %v1419 = vunpack.c.h.b16 %v1313
      %v1420 = vunpack.c.l.b16 %v1314
      %v1421 = vunpack.c.h.b16 %v1314
      %v1422 = vunpack.c.l.b16 %v1315
      %v1423 = vunpack.c.h.b16 %v1315
      %v1424 = vunpack.c.l.b16 %v1316
      %v1425 = vunpack.c.h.b16 %v1316
      %v1426 = vpack.c.b16 %v1364, %v1362
      %v1427 = vpack.c.b16 %v1365, %v1363
      %v1428 = vpack.c.b16 %v1368, %v1366
      %v1429 = vpack.c.b16 %v1369, %v1367
      %v1430 = vpack.c.b16 %v1372, %v1370
      %v1431 = vpack.c.b16 %v1373, %v1371
      %v1432 = vpack.c.b16 %v1376, %v1374
      %v1433 = vpack.c.b16 %v1377, %v1375
      %v1434 = vpack.c.b16 %v1380, %v1378
      %v1435 = vpack.c.b16 %v1381, %v1379
      %v1436 = vpack.c.b16 %v1384, %v1382
      %v1437 = vpack.c.b16 %v1385, %v1383
      %v1438 = vpack.c.b16 %v1388, %v1386
      %v1439 = vpack.c.b16 %v1389, %v1387
      %v1440 = vpack.c.b16 %v1392, %v1390
      %v1441 = vpack.c.b16 %v1393, %v1391
      %v1442 = vpack.c.b16 %v1396, %v1394
      %v1443 = vpack.c.b16 %v1397, %v1395
      %v1444 = vpack.c.b16 %v1400, %v1398
      %v1445 = vpack.c.b16 %v1401, %v1399
      %v1446 = vpack.c.b16 %v1404, %v1402
      %v1447 = vpack.c.b16 %v1405, %v1403
      %v1448 = vpack.c.b16 %v1408, %v1406
      %v1449 = vpack.c.b16 %v1409, %v1407
      %v1450 = vpack.c.b16 %v1412, %v1410
      %v1451 = vpack.c.b16 %v1413, %v1411
      %v1452 = vpack.c.b16 %v1416, %v1414
      %v1453 = vpack.c.b16 %v1417, %v1415
      %v1454 = vpack.c.b16 %v1420, %v1418
      %v1455 = vpack.c.b16 %v1421, %v1419
      %v1456 = vpack.c.b16 %v1424, %v1422
      %v1457 = vpack.c.b16 %v1425, %v1423
      %1490 = vmatprep.subr.bf16.mxu0 %v1427
      %1491 = vmatpush1.bf16.msra.mxu0 %v1426
      %1492 = vmatprep.subr.bf16.mxu0 %v1429
      %1493 = vmatpush1.bf16.msra.mxu0 %v1428
      %1494 = vmatprep.subr.bf16.mxu0 %v1431
      %1495 = vmatpush1.bf16.msra.mxu0 %v1430
      %1496 = vmatprep.subr.bf16.mxu0 %v1433
      %1497 = vmatpush1.bf16.msra.mxu0 %v1432
      %1498 = vmatprep.subr.bf16.mxu0 %v1435
      %1499 = vmatpush1.bf16.msra.mxu0 %v1434
      %1500 = vmatprep.subr.bf16.mxu0 %v1437
      %1501 = vmatpush1.bf16.msra.mxu0 %v1436
      %1502 = vmatprep.subr.bf16.mxu0 %v1439
      %1503 = vmatpush1.bf16.msra.mxu0 %v1438
      %1504 = vmatprep.subr.bf16.mxu0 %v1441
      %1505 = vmatpush1.bf16.msra.mxu0 %v1440
      %1506 = vmatprep.subr.bf16.mxu0 %v1443
      %1507 = vmatpush1.bf16.msra.mxu0 %v1442
      %1508 = vmatprep.subr.bf16.mxu0 %v1445
      %1509 = vmatpush1.bf16.msra.mxu0 %v1444
      %1510 = vmatprep.subr.bf16.mxu0 %v1447
      %1511 = vmatpush1.bf16.msra.mxu0 %v1446
      %1512 = vmatprep.subr.bf16.mxu0 %v1449
      %1513 = vmatpush1.bf16.msra.mxu0 %v1448
      %1514 = vmatprep.subr.bf16.mxu0 %v1451
      %1515 = vmatpush1.bf16.msra.mxu0 %v1450
      %1516 = vmatprep.subr.bf16.mxu0 %v1453
      %1517 = vmatpush1.bf16.msra.mxu0 %v1452
      %1518 = vmatprep.subr.bf16.mxu0 %v1455
      %1519 = vmatpush1.bf16.msra.mxu0 %v1454
      %1520 = vmatprep.subr.bf16.mxu0 %v1457
      %1521 = vmatpush1.bf16.msra.mxu0 %v1456
      %1522 = vmatprep.mubr.bf16.mxu0 %v1253
      %1523 = vmatmul.mubr.bf16.gmra.mrb[0].mxu0 %v1252
      %v1524 = vpop.f32.mrb[0].mxu0
      %v1525 = vadd.f32 %v1323, %v1524
      %v1526 = vpop.f32.mrb[0].mxu0
      %v1527 = vadd.f32 %v1327, %v1526
      %v1528 = vpop.f32.mrb[0].mxu0
      %v1529 = vadd.f32 %v1323, %v1528
      %v1530 = vpop.f32.mrb[0].mxu0
      %v1531 = vadd.f32 %v1327, %v1530
      %1532 = vmatprep.mubr.bf16.mxu0 %v1255
      %1533 = vmatmul.mubr.bf16.gmra.mrb[0].mxu0 %v1254
      %v1534 = vpop.f32.mrb[0].mxu0
      %v1535 = vadd.f32 %v1323, %v1534
      %v1536 = vpop.f32.mrb[0].mxu0
      %v1537 = vadd.f32 %v1327, %v1536
      %v1538 = vpop.f32.mrb[0].mxu0
      %v1539 = vadd.f32 %v1323, %v1538
      %v1540 = vpop.f32.mrb[0].mxu0
      %v1541 = vadd.f32 %v1327, %v1540
      %1542 = vmatprep.mubr.bf16.mxu0 %v1257
      %1543 = vmatmul.mubr.bf16.gmra.mrb[0].mxu0 %v1256
      %v1544 = vpop.f32.mrb[0].mxu0
      %v1545 = vadd.f32 %v1323, %v1544
      %v1546 = vpop.f32.mrb[0].mxu0
      %v1547 = vadd.f32 %v1327, %v1546
      %v1548 = vpop.f32.mrb[0].mxu0
      %v1549 = vadd.f32 %v1323, %v1548
      %v1550 = vpop.f32.mrb[0].mxu0
      %v1551 = vadd.f32 %v1327, %v1550
      %1552 = vmatprep.mubr.bf16.mxu0 %v1259
      %1553 = vmatmul.mubr.bf16.gmra.mrb[0].mxu0 %v1258
      %v1554 = vpop.f32.mrb[0].mxu0
      %v1555 = vadd.f32 %v1323, %v1554
      %v1556 = vpop.f32.mrb[0].mxu0
      %v1557 = vadd.f32 %v1327, %v1556
      %v1558 = vpop.f32.mrb[0].mxu0
      %v1559 = vadd.f32 %v1323, %v1558
      %v1560 = vpop.f32.mrb[0].mxu0
      %v1561 = vadd.f32 %v1327, %v1560
      %1562 = vmatprep.mubr.bf16.mxu0 %v1261
      %1563 = vmatmul.mubr.bf16.gmra.mrb[0].mxu0 %v1260
      %v1564 = vpop.f32.mrb[0].mxu0
      %v1565 = vadd.f32 %v1323, %v1564
      %v1566 = vpop.f32.mrb[0].mxu0
      %v1567 = vadd.f32 %v1327, %v1566
      %v1568 = vpop.f32.mrb[0].mxu0
      %v1569 = vadd.f32 %v1323, %v1568
      %v1570 = vpop.f32.mrb[0].mxu0
      %v1571 = vadd.f32 %v1327, %v1570
      %1572 = vmatprep.mubr.bf16.mxu0 %v1263
      %1573 = vmatmul.mubr.bf16.gmra.mrb[0].mxu0 %v1262
      %v1574 = vpop.f32.mrb[0].mxu0
      %v1575 = vadd.f32 %v1323, %v1574
      %v1576 = vpop.f32.mrb[0].mxu0
      %v1577 = vadd.f32 %v1327, %v1576
      %v1578 = vpop.f32.mrb[0].mxu0
      %v1579 = vadd.f32 %v1323, %v1578
      %v1580 = vpop.f32.mrb[0].mxu0
      %v1581 = vadd.f32 %v1327, %v1580
      %1582 = vmatprep.mubr.bf16.mxu0 %v1265
      %1583 = vmatmul.mubr.bf16.gmra.mrb[0].mxu0 %v1264
      %v1584 = vpop.f32.mrb[0].mxu0
      %v1585 = vadd.f32 %v1323, %v1584
      %v1586 = vpop.f32.mrb[0].mxu0
      %v1587 = vadd.f32 %v1327, %v1586
      %v1588 = vpop.f32.mrb[0].mxu0
      %v1589 = vadd.f32 %v1323, %v1588
      %v1590 = vpop.f32.mrb[0].mxu0
      %v1591 = vadd.f32 %v1327, %v1590
      %1592 = vmatprep.mubr.bf16.mxu0 %v1267
      %1593 = vmatmul.mubr.bf16.gmra.mrb[0].mxu0 %v1266
      %v1594 = vpop.f32.mrb[0].mxu0
      %v1595 = vadd.f32 %v1323, %v1594
      %v1596 = vpop.f32.mrb[0].mxu0
      %v1597 = vadd.f32 %v1327, %v1596
      %v1598 = vpop.f32.mrb[0].mxu0
      %v1599 = vadd.f32 %v1323, %v1598
      %v1600 = vpop.f32.mrb[0].mxu0
      %v1601 = vadd.f32 %v1327, %v1600
      %1602 = vmatprep.mubr.bf16.mxu0 %v1269
      %1603 = vmatmul.mubr.bf16.gmra.mrb[0].mxu0 %v1268
      %v1604 = vpop.f32.mrb[0].mxu0
      %v1605 = vadd.f32 %v1323, %v1604
      %v1606 = vpop.f32.mrb[0].mxu0
      %v1607 = vadd.f32 %v1327, %v1606
      %v1608 = vpop.f32.mrb[0].mxu0
      %v1609 = vadd.f32 %v1323, %v1608
      %v1610 = vpop.f32.mrb[0].mxu0
      %v1611 = vadd.f32 %v1327, %v1610
      %1612 = vmatprep.mubr.bf16.mxu0 %v1271
      %1613 = vmatmul.mubr.bf16.gmra.mrb[0].mxu0 %v1270
      %v1614 = vpop.f32.mrb[0].mxu0
      %v1615 = vadd.f32 %v1323, %v1614
      %v1616 = vpop.f32.mrb[0].mxu0
      %v1617 = vadd.f32 %v1327, %v1616
      %v1618 = vpop.f32.mrb[0].mxu0
      %v1619 = vadd.f32 %v1323, %v1618
      %v1620 = vpop.f32.mrb[0].mxu0
      %v1621 = vadd.f32 %v1327, %v1620
      %1622 = vmatprep.mubr.bf16.mxu0 %v1273
      %1623 = vmatmul.mubr.bf16.gmra.mrb[0].mxu0 %v1272
      %v1624 = vpop.f32.mrb[0].mxu0
      %v1625 = vadd.f32 %v1323, %v1624
      %v1626 = vpop.f32.mrb[0].mxu0
      %v1627 = vadd.f32 %v1327, %v1626
      %v1628 = vpop.f32.mrb[0].mxu0
      %v1629 = vadd.f32 %v1323, %v1628
      %v1630 = vpop.f32.mrb[0].mxu0
      %v1631 = vadd.f32 %v1327, %v1630
      %1632 = vmatprep.mubr.bf16.mxu0 %v1275
      %1633 = vmatmul.mubr.bf16.gmra.mrb[0].mxu0 %v1274
      %v1634 = vpop.f32.mrb[0].mxu0
      %v1635 = vadd.f32 %v1323, %v1634
      %v1636 = vpop.f32.mrb[0].mxu0
      %v1637 = vadd.f32 %v1327, %v1636
      %v1638 = vpop.f32.mrb[0].mxu0
      %v1639 = vadd.f32 %v1323, %v1638
      %v1640 = vpop.f32.mrb[0].mxu0
      %v1641 = vadd.f32 %v1327, %v1640
      %1642 = vmatprep.mubr.bf16.mxu0 %v1277
      %1643 = vmatmul.mubr.bf16.gmra.mrb[0].mxu0 %v1276
      %v1644 = vpop.f32.mrb[0].mxu0
      %v1645 = vadd.f32 %v1323, %v1644
      %v1646 = vpop.f32.mrb[0].mxu0
      %v1647 = vadd.f32 %v1327, %v1646
      %v1648 = vpop.f32.mrb[0].mxu0
      %v1649 = vadd.f32 %v1323, %v1648
      %v1650 = vpop.f32.mrb[0].mxu0
      %v1651 = vadd.f32 %v1327, %v1650
      %1652 = vmatprep.mubr.bf16.mxu0 %v1279
      %1653 = vmatmul.mubr.bf16.gmra.mrb[0].mxu0 %v1278
      %v1654 = vpop.f32.mrb[0].mxu0
      %v1655 = vadd.f32 %v1323, %v1654
      %v1656 = vpop.f32.mrb[0].mxu0
      %v1657 = vadd.f32 %v1327, %v1656
      %v1658 = vpop.f32.mrb[0].mxu0
      %v1659 = vadd.f32 %v1323, %v1658
      %v1660 = vpop.f32.mrb[0].mxu0
      %v1661 = vadd.f32 %v1327, %v1660
      %1662 = vmatprep.mubr.bf16.mxu0 %v1281
      %1663 = vmatmul.mubr.bf16.gmra.mrb[0].mxu0 %v1280
      %v1664 = vpop.f32.mrb[0].mxu0
      %v1665 = vadd.f32 %v1323, %v1664
      %v1666 = vpop.f32.mrb[0].mxu0
      %v1667 = vadd.f32 %v1327, %v1666
      %v1668 = vpop.f32.mrb[0].mxu0
      %v1669 = vadd.f32 %v1323, %v1668
      %v1670 = vpop.f32.mrb[0].mxu0
      %v1671 = vadd.f32 %v1327, %v1670
      %1672 = vmatprep.mubr.bf16.mxu0 %v1283
      %1673 = vmatmul.mubr.bf16.gmra.mrb[0].mxu0 %v1282
      %v1674 = vpop.f32.mrb[0].mxu0
      %v1675 = vadd.f32 %v1323, %v1674
      %v1676 = vpop.f32.mrb[0].mxu0
      %v1677 = vadd.f32 %v1327, %v1676
      %v1678 = vpop.f32.mrb[0].mxu0
      %v1679 = vadd.f32 %v1323, %v1678
      %v1680 = vpop.f32.mrb[0].mxu0
      %v1681 = vadd.f32 %v1327, %v1680
      %1682 = vdwg.mxu0
      %v1683 = vmax.f32 %v1525, 0.0
      %v1684 = vmax.f32 %v1527, 0.0
      %v1685 = vmax.f32 %v1529, 0.0
      %v1686 = vmax.f32 %v1531, 0.0
      %v1687 = vmax.f32 %v1535, 0.0
      %v1688 = vmax.f32 %v1537, 0.0
      %v1689 = vmax.f32 %v1539, 0.0
      %v1690 = vmax.f32 %v1541, 0.0
      %v1691 = vmax.f32 %v1545, 0.0
      %v1692 = vmax.f32 %v1547, 0.0
      %v1693 = vmax.f32 %v1549, 0.0
      %v1694 = vmax.f32 %v1551, 0.0
      %v1695 = vmax.f32 %v1555, 0.0
      %v1696 = vmax.f32 %v1557, 0.0
      %v1697 = vmax.f32 %v1559, 0.0
      %v1698 = vmax.f32 %v1561, 0.0
      %v1699 = vmax.f32 %v1565, 0.0
      %v1700 = vmax.f32 %v1567, 0.0
      %v1701 = vmax.f32 %v1569, 0.0
      %v1702 = vmax.f32 %v1571, 0.0
      %v1703 = vmax.f32 %v1575, 0.0
      %v1704 = vmax.f32 %v1577, 0.0
      %v1705 = vmax.f32 %v1579, 0.0
      %v1706 = vmax.f32 %v1581, 0.0
      %v1707 = vmax.f32 %v1585, 0.0
      %v1708 = vmax.f32 %v1587, 0.0
      %v1709 = vmax.f32 %v1589, 0.0
      %v1710 = vmax.f32 %v1591, 0.0
      %v1711 = vmax.f32 %v1595, 0.0
      %v1712 = vmax.f32 %v1597, 0.0
      %v1713 = vmax.f32 %v1599, 0.0
      %v1714 = vmax.f32 %v1601, 0.0
      %v1715 = vmax.f32 %v1605, 0.0
      %v1716 = vmax.f32 %v1607, 0.0
      %v1717 = vmax.f32 %v1609, 0.0
      %v1718 = vmax.f32 %v1611, 0.0
      %v1719 = vmax.f32 %v1615, 0.0
      %v1720 = vmax.f32 %v1617, 0.0
      %v1721 = vmax.f32 %v1619, 0.0
      %v1722 = vmax.f32 %v1621, 0.0
      %v1723 = vmax.f32 %v1625, 0.0
      %v1724 = vmax.f32 %v1627, 0.0
      %v1725 = vmax.f32 %v1629, 0.0
      %v1726 = vmax.f32 %v1631, 0.0
      %v1727 = vmax.f32 %v1635, 0.0
      %v1728 = vmax.f32 %v1637, 0.0
      %v1729 = vmax.f32 %v1639, 0.0
      %v1730 = vmax.f32 %v1641, 0.0
      %v1731 = vmax.f32 %v1645, 0.0
      %v1732 = vmax.f32 %v1647, 0.0
      %v1733 = vmax.f32 %v1649, 0.0
      %v1734 = vmax.f32 %v1651, 0.0
      %v1735 = vmax.f32 %v1655, 0.0
      %v1736 = vmax.f32 %v1657, 0.0
      %v1737 = vmax.f32 %v1659, 0.0
      %v1738 = vmax.f32 %v1661, 0.0
      %v1739 = vmax.f32 %v1665, 0.0
      %v1740 = vmax.f32 %v1667, 0.0
      %v1741 = vmax.f32 %v1669, 0.0
      %v1742 = vmax.f32 %v1671, 0.0
      %v1743 = vmax.f32 %v1675, 0.0
      %v1744 = vmax.f32 %v1677, 0.0
      %v1745 = vmax.f32 %v1679, 0.0
      %v1746 = vmax.f32 %v1681, 0.0
      %v1747 = vpack.c.bf16 %v1685, %v1683
      %v1748 = vpack.c.bf16 %v1686, %v1684
      %v1749 = vpack.c.bf16 %v1689, %v1687
      %v1750 = vpack.c.bf16 %v1690, %v1688
      %v1751 = vpack.c.bf16 %v1693, %v1691
      %v1752 = vpack.c.bf16 %v1694, %v1692
      %v1753 = vpack.c.bf16 %v1697, %v1695
      %v1754 = vpack.c.bf16 %v1698, %v1696
      %v1755 = vpack.c.bf16 %v1701, %v1699
      %v1756 = vpack.c.bf16 %v1702, %v1700
      %v1757 = vpack.c.bf16 %v1705, %v1703
      %v1758 = vpack.c.bf16 %v1706, %v1704
      %v1759 = vpack.c.bf16 %v1709, %v1707
      %v1760 = vpack.c.bf16 %v1710, %v1708
      %v1761 = vpack.c.bf16 %v1713, %v1711
      %v1762 = vpack.c.bf16 %v1714, %v1712
      %v1763 = vpack.c.bf16 %v1717, %v1715
      %v1764 = vpack.c.bf16 %v1718, %v1716
      %v1765 = vpack.c.bf16 %v1721, %v1719
      %v1766 = vpack.c.bf16 %v1722, %v1720
      %v1767 = vpack.c.bf16 %v1725, %v1723
      %v1768 = vpack.c.bf16 %v1726, %v1724
      %v1769 = vpack.c.bf16 %v1729, %v1727
      %v1770 = vpack.c.bf16 %v1730, %v1728
      %v1771 = vpack.c.bf16 %v1733, %v1731
      %v1772 = vpack.c.bf16 %v1734, %v1732
      %v1773 = vpack.c.bf16 %v1737, %v1735
      %v1774 = vpack.c.bf16 %v1738, %v1736
      %v1775 = vpack.c.bf16 %v1741, %v1739
      %v1776 = vpack.c.bf16 %v1742, %v1740
      %v1777 = vpack.c.bf16 %v1745, %v1743
      %v1778 = vpack.c.bf16 %v1746, %v1744
      %s1779 = scalar_lea.vmem %s1, 864
      %v1780 = vld [vmem:[%s1779] sm:$0xff]
      %v1781 = vld [vmem:[%s1779 + $0xc] sm:$0xff]
      %v1782 = vld [vmem:[%s1779 + $0x18] sm:$0xff]
      %v1783 = vld [vmem:[%s1779 + $0x24] sm:$0xff]
      %v1784 = vld [vmem:[%s1779 + $0x30] sm:$0xff]
      %v1785 = vld [vmem:[%s1779 + $0x3c] sm:$0xff]
      %v1786 = vld [vmem:[%s1779 + $0x48] sm:$0xff]
      %v1787 = vld [vmem:[%s1779 + $0x54] sm:$0xff]
      %v1788 = vld [vmem:[%s1779 + $0x60] sm:$0xff]
      %v1789 = vld [vmem:[%s1779 + $0x6c] sm:$0xff]
      %v1790 = vld [vmem:[%s1779 + $0x78] sm:$0xff]
      %v1791 = vld [vmem:[%s1779 + $0x84] sm:$0xff]
      %v1792 = vld [vmem:[%s1779 + $0x90] sm:$0xff]
      %v1793 = vld [vmem:[%s1779 + $0x9c] sm:$0xff]
      %v1794 = vld [vmem:[%s1779 + $0xa8] sm:$0xff]
      %v1795 = vld [vmem:[%s1779 + $0xb4] sm:$0xff]
      %v1796 = vld [vmem:[%s1779 + $0xc0] sm:$0xff]
      %v1797 = vld [vmem:[%s1779 + $0xcc] sm:$0xff]
      %v1798 = vld [vmem:[%s1779 + $0xd8] sm:$0xff]
      %v1799 = vld [vmem:[%s1779 + $0xe4] sm:$0xff]
      %v1800 = vld [vmem:[%s1779 + $0xf0] sm:$0xff]
      %v1801 = vld [vmem:[%s1779 + $0xfc] sm:$0xff]
      %v1802 = vld [vmem:[%s1779 + $0x108] sm:$0xff]
      %v1803 = vld [vmem:[%s1779 + $0x114] sm:$0xff]
      %v1804 = vld [vmem:[%s1779 + $0x120] sm:$0xff]
      %v1805 = vld [vmem:[%s1779 + $0x12c] sm:$0xff]
      %v1806 = vld [vmem:[%s1779 + $0x138] sm:$0xff]
      %v1807 = vld [vmem:[%s1779 + $0x144] sm:$0xff]
      %v1808 = vld [vmem:[%s1779 + $0x150] sm:$0xff]
      %v1809 = vld [vmem:[%s1779 + $0x15c] sm:$0xff]
      %v1810 = vld [vmem:[%s1779 + $0x168] sm:$0xff]
      %v1811 = vld [vmem:[%s1779 + $0x174] sm:$0xff]
      %s1812 = scalar_lea.vmem %s1, 1296
      %v1813 = vld [vmem:[%s1812] sm:$0xff]
      %v1814 = vld [vmem:[%s1812 + $0xc] sm:$0xff]
      %v1815 = vld [vmem:[%s1812 + $0x18] sm:$0xff]
      %v1816 = vld [vmem:[%s1812 + $0x24] sm:$0xff]
      %v1817 = vld [vmem:[%s1812 + $0x30] sm:$0xff]
      %v1818 = vld [vmem:[%s1812 + $0x3c] sm:$0xff]
      %v1819 = vld [vmem:[%s1812 + $0x48] sm:$0xff]
      %v1820 = vld [vmem:[%s1812 + $0x54] sm:$0xff]
      %v1821 = vld [vmem:[%s1812 + $0x60] sm:$0xff]
      %v1822 = vld [vmem:[%s1812 + $0x6c] sm:$0xff]
      %v1823 = vld [vmem:[%s1812 + $0x78] sm:$0xff]
      %v1824 = vld [vmem:[%s1812 + $0x84] sm:$0xff]
      %v1825 = vld [vmem:[%s1812 + $0x90] sm:$0xff]
      %v1826 = vld [vmem:[%s1812 + $0x9c] sm:$0xff]
      %v1827 = vld [vmem:[%s1812 + $0xa8] sm:$0xff]
      %v1828 = vld [vmem:[%s1812 + $0xb4] sm:$0xff]
      %v1829 = vld [vmem:[%s1812 + $0xc0] sm:$0xff]
      %v1830 = vld [vmem:[%s1812 + $0xcc] sm:$0xff]
      %v1831 = vld [vmem:[%s1812 + $0xd8] sm:$0xff]
      %v1832 = vld [vmem:[%s1812 + $0xe4] sm:$0xff]
      %v1833 = vld [vmem:[%s1812 + $0xf0] sm:$0xff]
      %v1834 = vld [vmem:[%s1812 + $0xfc] sm:$0xff]
      %v1835 = vld [vmem:[%s1812 + $0x108] sm:$0xff]
      %v1836 = vld [vmem:[%s1812 + $0x114] sm:$0xff]
      %v1837 = vld [vmem:[%s1812 + $0x120] sm:$0xff]
      %v1838 = vld [vmem:[%s1812 + $0x12c] sm:$0xff]
      %v1839 = vld [vmem:[%s1812 + $0x138] sm:$0xff]
      %v1840 = vld [vmem:[%s1812 + $0x144] sm:$0xff]
      %v1841 = vld [vmem:[%s1812 + $0x150] sm:$0xff]
      %v1842 = vld [vmem:[%s1812 + $0x15c] sm:$0xff]
      %v1843 = vld [vmem:[%s1812 + $0x168] sm:$0xff]
      %v1844 = vld [vmem:[%s1812 + $0x174] sm:$0xff]
      %v1845 = vld [vmem:[%s1812 + $0x180] sm:$0xff]
      %v1846 = vld [vmem:[%s1812 + $0x18c] sm:$0xff]
      %v1847 = vld [vmem:[%s1812 + $0x198] sm:$0xff]
      %v1848 = vld [vmem:[%s1812 + $0x1a4] sm:$0xff]
      %v1885 = vunpack.c.l.b16 %v1813
      %v1886 = vunpack.c.h.b16 %v1813
      %v1887 = vunpack.c.l.b16 %v1814
      %v1888 = vunpack.c.h.b16 %v1814
      %v1889 = vunpack.c.l.b16 %v1815
      %v1890 = vunpack.c.h.b16 %v1815
      %v1891 = vunpack.c.l.b16 %v1816
      %v1892 = vunpack.c.h.b16 %v1816
      %v1893 = vunpack.c.l.b16 %v1817
      %v1894 = vunpack.c.h.b16 %v1817
      %v1895 = vunpack.c.l.b16 %v1818
      %v1896 = vunpack.c.h.b16 %v1818
      %v1897 = vunpack.c.l.b16 %v1819
      %v1898 = vunpack.c.h.b16 %v1819
      %v1899 = vunpack.c.l.b16 %v1820
      %v1900 = vunpack.c.h.b16 %v1820
      %v1901 = vunpack.c.l.b16 %v1821
      %v1902 = vunpack.c.h.b16 %v1821
      %v1903 = vunpack.c.l.b16 %v1822
      %v1904 = vunpack.c.h.b16 %v1822
      %v1905 = vunpack.c.l.b16 %v1823
      %v1906 = vunpack.c.h.b16 %v1823
      %v1907 = vunpack.c.l.b16 %v1824
      %v1908 = vunpack.c.h.b16 %v1824
      %v1909 = vunpack.c.l.b16 %v1825
      %v1910 = vunpack.c.h.b16 %v1825
      %v1911 = vunpack.c.l.b16 %v1826
      %v1912 = vunpack.c.h.b16 %v1826
      %v1913 = vunpack.c.l.b16 %v1827
      %v1914 = vunpack.c.h.b16 %v1827
      %v1915 = vunpack.c.l.b16 %v1828
      %v1916 = vunpack.c.h.b16 %v1828
      %v1917 = vunpack.c.l.b16 %v1829
      %v1918 = vunpack.c.h.b16 %v1829
      %v1919 = vunpack.c.l.b16 %v1830
      %v1920 = vunpack.c.h.b16 %v1830
      %v1921 = vunpack.c.l.b16 %v1831
      %v1922 = vunpack.c.h.b16 %v1831
      %v1923 = vunpack.c.l.b16 %v1832
      %v1924 = vunpack.c.h.b16 %v1832
      %v1925 = vunpack.c.l.b16 %v1833
      %v1926 = vunpack.c.h.b16 %v1833
      %v1927 = vunpack.c.l.b16 %v1834
      %v1928 = vunpack.c.h.b16 %v1834
      %v1929 = vunpack.c.l.b16 %v1835
      %v1930 = vunpack.c.h.b16 %v1835
      %v1931 = vunpack.c.l.b16 %v1836
      %v1932 = vunpack.c.h.b16 %v1836
      %v1933 = vunpack.c.l.b16 %v1837
      %v1934 = vunpack.c.h.b16 %v1837
      %v1935 = vunpack.c.l.b16 %v1838
      %v1936 = vunpack.c.h.b16 %v1838
      %v1937 = vunpack.c.l.b16 %v1839
      %v1938 = vunpack.c.h.b16 %v1839
      %v1939 = vunpack.c.l.b16 %v1840
      %v1940 = vunpack.c.h.b16 %v1840
      %v1941 = vunpack.c.l.b16 %v1841
      %v1942 = vunpack.c.h.b16 %v1841
      %v1943 = vunpack.c.l.b16 %v1842
      %v1944 = vunpack.c.h.b16 %v1842
      %v1945 = vunpack.c.l.b16 %v1843
      %v1946 = vunpack.c.h.b16 %v1843
      %v1947 = vunpack.c.l.b16 %v1844
      %v1948 = vunpack.c.h.b16 %v1844
      %v1949 = vunpack.c.l.b16 %v1845
      %v1950 = vunpack.c.h.b16 %v1845
      %v1951 = vunpack.c.l.b16 %v1846
      %v1952 = vunpack.c.h.b16 %v1846
      %v1953 = vunpack.c.l.b16 %v1847
      %v1954 = vunpack.c.h.b16 %v1847
      %v1955 = vunpack.c.l.b16 %v1848
      %v1956 = vunpack.c.h.b16 %v1848
      %v1957 = vpack.c.b16 %v1887, %v1885
      %v1958 = vpack.c.b16 %v1888, %v1886
      %v1959 = vpack.c.b16 %v1891, %v1889
      %v1960 = vpack.c.b16 %v1892, %v1890
      %v1961 = vpack.c.b16 %v1895, %v1893
      %v1962 = vpack.c.b16 %v1896, %v1894
      %v1963 = vpack.c.b16 %v1899, %v1897
      %v1964 = vpack.c.b16 %v1900, %v1898
      %v1965 = vpack.c.b16 %v1903, %v1901
      %v1966 = vpack.c.b16 %v1904, %v1902
      %v1967 = vpack.c.b16 %v1907, %v1905
      %v1968 = vpack.c.b16 %v1908, %v1906
      %v1969 = vpack.c.b16 %v1911, %v1909
      %v1970 = vpack.c.b16 %v1912, %v1910
      %v1971 = vpack.c.b16 %v1915, %v1913
      %v1972 = vpack.c.b16 %v1916, %v1914
      %v1973 = vpack.c.b16 %v1919, %v1917
      %v1974 = vpack.c.b16 %v1920, %v1918
      %v1975 = vpack.c.b16 %v1923, %v1921
      %v1976 = vpack.c.b16 %v1924, %v1922
      %v1977 = vpack.c.b16 %v1927, %v1925
      %v1978 = vpack.c.b16 %v1928, %v1926
      %v1979 = vpack.c.b16 %v1931, %v1929
      %v1980 = vpack.c.b16 %v1932, %v1930
      %v1981 = vpack.c.b16 %v1935, %v1933
      %v1982 = vpack.c.b16 %v1936, %v1934
      %v1983 = vpack.c.b16 %v1939, %v1937
      %v1984 = vpack.c.b16 %v1940, %v1938
      %v1985 = vpack.c.b16 %v1943, %v1941
      %v1986 = vpack.c.b16 %v1944, %v1942
      %v1987 = vpack.c.b16 %v1947, %v1945
      %v1988 = vpack.c.b16 %v1948, %v1946
      %v1989 = vpack.c.b16 %v1951, %v1949
      %v1990 = vpack.c.b16 %v1952, %v1950
      %v1991 = vpack.c.b16 %v1955, %v1953
      %v1992 = vpack.c.b16 %v1956, %v1954
      %2029 = vmatprep.subr.bf16.mxu0 %v1958
      %2030 = vmatpush1.bf16.msra.mxu0 %v1957
      %2031 = vmatprep.subr.bf16.mxu0 %v1960
      %2032 = vmatpush1.bf16.msra.mxu0 %v1959
      %2033 = vmatprep.subr.bf16.mxu0 %v1962
      %2034 = vmatpush1.bf16.msra.mxu0 %v1961
      %2035 = vmatprep.subr.bf16.mxu0 %v1964
      %2036 = vmatpush1.bf16.msra.mxu0 %v1963
      %2037 = vmatprep.subr.bf16.mxu0 %v1966
      %2038 = vmatpush1.bf16.msra.mxu0 %v1965
      %2039 = vmatprep.subr.bf16.mxu0 %v1968
      %2040 = vmatpush1.bf16.msra.mxu0 %v1967
      %2041 = vmatprep.subr.bf16.mxu0 %v1970
      %2042 = vmatpush1.bf16.msra.mxu0 %v1969
      %2043 = vmatprep.subr.bf16.mxu0 %v1972
      %2044 = vmatpush1.bf16.msra.mxu0 %v1971
      %2045 = vmatprep.subr.bf16.mxu0 %v1974
      %2046 = vmatpush1.bf16.msra.mxu0 %v1973
      %2047 = vmatprep.subr.bf16.mxu0 %v1976
      %2048 = vmatpush1.bf16.msra.mxu0 %v1975
      %2049 = vmatprep.subr.bf16.mxu0 %v1978
      %2050 = vmatpush1.bf16.msra.mxu0 %v1977
      %2051 = vmatprep.subr.bf16.mxu0 %v1980
      %2052 = vmatpush1.bf16.msra.mxu0 %v1979
      %2053 = vmatprep.subr.bf16.mxu0 %v1982
      %2054 = vmatpush1.bf16.msra.mxu0 %v1981
      %2055 = vmatprep.subr.bf16.mxu0 %v1984
      %2056 = vmatpush1.bf16.msra.mxu0 %v1983
      %2057 = vmatprep.subr.bf16.mxu0 %v1986
      %2058 = vmatpush1.bf16.msra.mxu0 %v1985
      %2059 = vmatprep.subr.bf16.mxu0 %v1988
      %2060 = vmatpush1.bf16.msra.mxu0 %v1987
      %2061 = vmatprep.mubr.bf16.mxu0 %v494
      %2062 = vmatmul.mubr.bf16.gmra.mrb[0].mxu0 %v493
      %v2063 = vpop.f32.mrb[0].mxu0
      %v2064 = vadd.f32 0.0, %v2063
      %v2065 = vpop.f32.mrb[0].mxu0
      %v2066 = vadd.f32 0.0, %v2065
      %v2067 = vpop.f32.mrb[0].mxu0
      %v2068 = vadd.f32 0.0, %v2067
      %v2069 = vpop.f32.mrb[0].mxu0
      %v2070 = vadd.f32 0.0, %v2069
      %2071 = vmatprep.mubr.bf16.mxu0 %v497
      %2072 = vmatmul.mubr.bf16.gmra.mrb[0].mxu0 %v496
      %v2073 = vpop.f32.mrb[0].mxu0
      %v2074 = vadd.f32 0.0, %v2073
      %v2075 = vpop.f32.mrb[0].mxu0
      %v2076 = vadd.f32 0.0, %v2075
      %v2077 = vpop.f32.mrb[0].mxu0
      %v2078 = vadd.f32 0.0, %v2077
      %v2079 = vpop.f32.mrb[0].mxu0
      %v2080 = vadd.f32 0.0, %v2079
      %2081 = vmatprep.mubr.bf16.mxu0 %v500
      %2082 = vmatmul.mubr.bf16.gmra.mrb[0].mxu0 %v499
      %v2083 = vpop.f32.mrb[0].mxu0
      %v2084 = vadd.f32 0.0, %v2083
      %v2085 = vpop.f32.mrb[0].mxu0
      %v2086 = vadd.f32 0.0, %v2085
      %v2087 = vpop.f32.mrb[0].mxu0
      %v2088 = vadd.f32 0.0, %v2087
      %v2089 = vpop.f32.mrb[0].mxu0
      %v2090 = vadd.f32 0.0, %v2089
      %2091 = vmatprep.mubr.bf16.mxu0 %v503
      %2092 = vmatmul.mubr.bf16.gmra.mrb[0].mxu0 %v502
      %v2093 = vpop.f32.mrb[0].mxu0
      %v2094 = vadd.f32 0.0, %v2093
      %v2095 = vpop.f32.mrb[0].mxu0
      %v2096 = vadd.f32 0.0, %v2095
      %v2097 = vpop.f32.mrb[0].mxu0
      %v2098 = vadd.f32 0.0, %v2097
      %v2099 = vpop.f32.mrb[0].mxu0
      %v2100 = vadd.f32 0.0, %v2099
      %2101 = vmatprep.mubr.bf16.mxu0 %v506
      %2102 = vmatmul.mubr.bf16.gmra.mrb[0].mxu0 %v505
      %v2103 = vpop.f32.mrb[0].mxu0
      %v2104 = vadd.f32 0.0, %v2103
      %v2105 = vpop.f32.mrb[0].mxu0
      %v2106 = vadd.f32 0.0, %v2105
      %v2107 = vpop.f32.mrb[0].mxu0
      %v2108 = vadd.f32 0.0, %v2107
      %v2109 = vpop.f32.mrb[0].mxu0
      %v2110 = vadd.f32 0.0, %v2109
      %2111 = vmatprep.mubr.bf16.mxu0 %v509
      %2112 = vmatmul.mubr.bf16.gmra.mrb[0].mxu0 %v508
      %v2113 = vpop.f32.mrb[0].mxu0
      %v2114 = vadd.f32 0.0, %v2113
      %v2115 = vpop.f32.mrb[0].mxu0
      %v2116 = vadd.f32 0.0, %v2115
      %v2117 = vpop.f32.mrb[0].mxu0
      %v2118 = vadd.f32 0.0, %v2117
      %v2119 = vpop.f32.mrb[0].mxu0
      %v2120 = vadd.f32 0.0, %v2119
      %2121 = vmatprep.mubr.bf16.mxu0 %v512
      %2122 = vmatmul.mubr.bf16.gmra.mrb[0].mxu0 %v511
      %v2123 = vpop.f32.mrb[0].mxu0
      %v2124 = vadd.f32 0.0, %v2123
      %v2125 = vpop.f32.mrb[0].mxu0
      %v2126 = vadd.f32 0.0, %v2125
      %v2127 = vpop.f32.mrb[0].mxu0
      %v2128 = vadd.f32 0.0, %v2127
      %v2129 = vpop.f32.mrb[0].mxu0
      %v2130 = vadd.f32 0.0, %v2129
      %2131 = vmatprep.mubr.bf16.mxu0 %v515
      %2132 = vmatmul.mubr.bf16.gmra.mrb[0].mxu0 %v514
      %v2133 = vpop.f32.mrb[0].mxu0
      %v2134 = vadd.f32 0.0, %v2133
      %v2135 = vpop.f32.mrb[0].mxu0
      %v2136 = vadd.f32 0.0, %v2135
      %v2137 = vpop.f32.mrb[0].mxu0
      %v2138 = vadd.f32 0.0, %v2137
      %v2139 = vpop.f32.mrb[0].mxu0
      %v2140 = vadd.f32 0.0, %v2139
      %2141 = vmatprep.mubr.bf16.mxu0 %v518
      %2142 = vmatmul.mubr.bf16.gmra.mrb[0].mxu0 %v517
      %v2143 = vpop.f32.mrb[0].mxu0
      %v2144 = vadd.f32 0.0, %v2143
      %v2145 = vpop.f32.mrb[0].mxu0
      %v2146 = vadd.f32 0.0, %v2145
      %v2147 = vpop.f32.mrb[0].mxu0
      %v2148 = vadd.f32 0.0, %v2147
      %v2149 = vpop.f32.mrb[0].mxu0
      %v2150 = vadd.f32 0.0, %v2149
      %2151 = vmatprep.mubr.bf16.mxu0 %v521
      %2152 = vmatmul.mubr.bf16.gmra.mrb[0].mxu0 %v520
      %v2153 = vpop.f32.mrb[0].mxu0
      %v2154 = vadd.f32 0.0, %v2153
      %v2155 = vpop.f32.mrb[0].mxu0
      %v2156 = vadd.f32 0.0, %v2155
      %v2157 = vpop.f32.mrb[0].mxu0
      %v2158 = vadd.f32 0.0, %v2157
      %v2159 = vpop.f32.mrb[0].mxu0
      %v2160 = vadd.f32 0.0, %v2159
      %2161 = vmatprep.mubr.bf16.mxu0 %v524
      %2162 = vmatmul.mubr.bf16.gmra.mrb[0].mxu0 %v523
      %v2163 = vpop.f32.mrb[0].mxu0
      %v2164 = vadd.f32 0.0, %v2163
      %v2165 = vpop.f32.mrb[0].mxu0
      %v2166 = vadd.f32 0.0, %v2165
      %v2167 = vpop.f32.mrb[0].mxu0
      %v2168 = vadd.f32 0.0, %v2167
      %v2169 = vpop.f32.mrb[0].mxu0
      %v2170 = vadd.f32 0.0, %v2169
      %2171 = vmatprep.mubr.bf16.mxu0 %v527
      %2172 = vmatmul.mubr.bf16.gmra.mrb[0].mxu0 %v526
      %v2173 = vpop.f32.mrb[0].mxu0
      %v2174 = vadd.f32 0.0, %v2173
      %v2175 = vpop.f32.mrb[0].mxu0
      %v2176 = vadd.f32 0.0, %v2175
      %v2177 = vpop.f32.mrb[0].mxu0
      %v2178 = vadd.f32 0.0, %v2177
      %v2179 = vpop.f32.mrb[0].mxu0
      %v2180 = vadd.f32 0.0, %v2179
      %2181 = vmatprep.mubr.bf16.mxu0 %v530
      %2182 = vmatmul.mubr.bf16.gmra.mrb[0].mxu0 %v529
      %v2183 = vpop.f32.mrb[0].mxu0
      %v2184 = vadd.f32 0.0, %v2183
      %v2185 = vpop.f32.mrb[0].mxu0
      %v2186 = vadd.f32 0.0, %v2185
      %v2187 = vpop.f32.mrb[0].mxu0
      %v2188 = vadd.f32 0.0, %v2187
      %v2189 = vpop.f32.mrb[0].mxu0
      %v2190 = vadd.f32 0.0, %v2189
      %2191 = vmatprep.mubr.bf16.mxu0 %v533
      %2192 = vmatmul.mubr.bf16.gmra.mrb[0].mxu0 %v532
      %v2193 = vpop.f32.mrb[0].mxu0
      %v2194 = vadd.f32 0.0, %v2193
      %v2195 = vpop.f32.mrb[0].mxu0
      %v2196 = vadd.f32 0.0, %v2195
      %v2197 = vpop.f32.mrb[0].mxu0
      %v2198 = vadd.f32 0.0, %v2197
      %v2199 = vpop.f32.mrb[0].mxu0
      %v2200 = vadd.f32 0.0, %v2199
      %2201 = vmatprep.mubr.bf16.mxu0 %v536
      %2202 = vmatmul.mubr.bf16.gmra.mrb[0].mxu0 %v535
      %v2203 = vpop.f32.mrb[0].mxu0
      %v2204 = vadd.f32 0.0, %v2203
      %v2205 = vpop.f32.mrb[0].mxu0
      %v2206 = vadd.f32 0.0, %v2205
      %v2207 = vpop.f32.mrb[0].mxu0
      %v2208 = vadd.f32 0.0, %v2207
      %v2209 = vpop.f32.mrb[0].mxu0
      %v2210 = vadd.f32 0.0, %v2209
      %2211 = vmatprep.mubr.bf16.mxu0 %v539
      %2212 = vmatmul.mubr.bf16.gmra.mrb[0].mxu0 %v538
      %v2213 = vpop.f32.mrb[0].mxu0
      %v2214 = vadd.f32 0.0, %v2213
      %v2215 = vpop.f32.mrb[0].mxu0
      %v2216 = vadd.f32 0.0, %v2215
      %v2217 = vpop.f32.mrb[0].mxu0
      %v2218 = vadd.f32 0.0, %v2217
      %v2219 = vpop.f32.mrb[0].mxu0
      %v2220 = vadd.f32 0.0, %v2219
      %2221 = vdwg.mxu0
      %2222 = vmatprep.subr.bf16.mxu0 %v1990
      %2223 = vmatpush1.bf16.msra.mxu0 %v1989
      %2224 = vmatprep.subr.bf16.mxu0 %v1992
      %2225 = vmatpush1.bf16.msra.mxu0 %v1991
      %2226 = vmatprep.subr.bf16.mxu0 0
      %2227 = vmatpush1.bf16.msra.mxu0 0
      %2228 = vmatprep.subr.bf16.mxu0 0
      %2229 = vmatpush1.bf16.msra.mxu0 0
      %2230 = vmatprep.subr.bf16.mxu0 0
      %2231 = vmatpush1.bf16.msra.mxu0 0
      %2232 = vmatprep.subr.bf16.mxu0 0
      %2233 = vmatpush1.bf16.msra.mxu0 0
      %2234 = vmatprep.subr.bf16.mxu0 0
      %2235 = vmatpush1.bf16.msra.mxu0 0
      %2236 = vmatprep.subr.bf16.mxu0 0
      %2237 = vmatpush1.bf16.msra.mxu0 0
      %2238 = vmatprep.subr.bf16.mxu0 0
      %2239 = vmatpush1.bf16.msra.mxu0 0
      %2240 = vmatprep.subr.bf16.mxu0 0
      %2241 = vmatpush1.bf16.msra.mxu0 0
      %2242 = vmatprep.subr.bf16.mxu0 0
      %2243 = vmatpush1.bf16.msra.mxu0 0
      %2244 = vmatprep.subr.bf16.mxu0 0
      %2245 = vmatpush1.bf16.msra.mxu0 0
      %2246 = vmatprep.subr.bf16.mxu0 0
      %2247 = vmatpush1.bf16.msra.mxu0 0
      %2248 = vmatprep.subr.bf16.mxu0 0
      %2249 = vmatpush1.bf16.msra.mxu0 0
      %2250 = vmatprep.subr.bf16.mxu0 0
      %2251 = vmatpush1.bf16.msra.mxu0 0
      %2252 = vmatprep.subr.bf16.mxu0 0
      %2253 = vmatpush1.bf16.msra.mxu0 0
      %2254 = vmatprep.mubr.bf16.mxu0 0
      %2255 = vmatmul.mubr.bf16.gmra.mrb[0].mxu0 %v755
      %v2256 = vpop.f32.mrb[0].mxu0
      %v2257 = vadd.f32 %v2064, %v2256
      %v2258 = vpop.f32.mrb[0].mxu0
      %v2259 = vadd.f32 %v2066, %v2258
      %v2260 = vpop.f32.mrb[0].mxu0
      %v2261 = vadd.f32 %v2068, %v2260
      %v2262 = vpop.f32.mrb[0].mxu0
      %v2263 = vadd.f32 %v2070, %v2262
      %2264 = vmatprep.mubr.bf16.mxu0 0
      %2265 = vmatmul.mubr.bf16.gmra.mrb[0].mxu0 %v758
      %v2266 = vpop.f32.mrb[0].mxu0
      %v2267 = vadd.f32 %v2074, %v2266
      %v2268 = vpop.f32.mrb[0].mxu0
      %v2269 = vadd.f32 %v2076, %v2268
      %v2270 = vpop.f32.mrb[0].mxu0
      %v2271 = vadd.f32 %v2078, %v2270
      %v2272 = vpop.f32.mrb[0].mxu0
      %v2273 = vadd.f32 %v2080, %v2272
      %2274 = vmatprep.mubr.bf16.mxu0 0
      %2275 = vmatmul.mubr.bf16.gmra.mrb[0].mxu0 %v761
      %v2276 = vpop.f32.mrb[0].mxu0
      %v2277 = vadd.f32 %v2084, %v2276
      %v2278 = vpop.f32.mrb[0].mxu0
      %v2279 = vadd.f32 %v2086, %v2278
      %v2280 = vpop.f32.mrb[0].mxu0
      %v2281 = vadd.f32 %v2088, %v2280
      %v2282 = vpop.f32.mrb[0].mxu0
      %v2283 = vadd.f32 %v2090, %v2282
      %2284 = vmatprep.mubr.bf16.mxu0 0
      %2285 = vmatmul.mubr.bf16.gmra.mrb[0].mxu0 %v764
      %v2286 = vpop.f32.mrb[0].mxu0
      %v2287 = vadd.f32 %v2094, %v2286
      %v2288 = vpop.f32.mrb[0].mxu0
      %v2289 = vadd.f32 %v2096, %v2288
      %v2290 = vpop.f32.mrb[0].mxu0
      %v2291 = vadd.f32 %v2098, %v2290
      %v2292 = vpop.f32.mrb[0].mxu0
      %v2293 = vadd.f32 %v2100, %v2292
      %2294 = vmatprep.mubr.bf16.mxu0 0
      %2295 = vmatmul.mubr.bf16.gmra.mrb[0].mxu0 %v767
      %v2296 = vpop.f32.mrb[0].mxu0
      %v2297 = vadd.f32 %v2104, %v2296
      %v2298 = vpop.f32.mrb[0].mxu0
      %v2299 = vadd.f32 %v2106, %v2298
      %v2300 = vpop.f32.mrb[0].mxu0
      %v2301 = vadd.f32 %v2108, %v2300
      %v2302 = vpop.f32.mrb[0].mxu0
      %v2303 = vadd.f32 %v2110, %v2302
      %2304 = vmatprep.mubr.bf16.mxu0 0
      %2305 = vmatmul.mubr.bf16.gmra.mrb[0].mxu0 %v770
      %v2306 = vpop.f32.mrb[0].mxu0
      %v2307 = vadd.f32 %v2114, %v2306
      %v2308 = vpop.f32.mrb[0].mxu0
      %v2309 = vadd.f32 %v2116, %v2308
      %v2310 = vpop.f32.mrb[0].mxu0
      %v2311 = vadd.f32 %v2118, %v2310
      %v2312 = vpop.f32.mrb[0].mxu0
      %v2313 = vadd.f32 %v2120, %v2312
      %2314 = vmatprep.mubr.bf16.mxu0 0
      %2315 = vmatmul.mubr.bf16.gmra.mrb[0].mxu0 %v773
      %v2316 = vpop.f32.mrb[0].mxu0
      %v2317 = vadd.f32 %v2124, %v2316
      %v2318 = vpop.f32.mrb[0].mxu0
      %v2319 = vadd.f32 %v2126, %v2318
      %v2320 = vpop.f32.mrb[0].mxu0
      %v2321 = vadd.f32 %v2128, %v2320
      %v2322 = vpop.f32.mrb[0].mxu0
      %v2323 = vadd.f32 %v2130, %v2322
      %2324 = vmatprep.mubr.bf16.mxu0 0
      %2325 = vmatmul.mubr.bf16.gmra.mrb[0].mxu0 %v776
      %v2326 = vpop.f32.mrb[0].mxu0
      %v2327 = vadd.f32 %v2134, %v2326
      %v2328 = vpop.f32.mrb[0].mxu0
      %v2329 = vadd.f32 %v2136, %v2328
      %v2330 = vpop.f32.mrb[0].mxu0
      %v2331 = vadd.f32 %v2138, %v2330
      %v2332 = vpop.f32.mrb[0].mxu0
      %v2333 = vadd.f32 %v2140, %v2332
      %2334 = vmatprep.mubr.bf16.mxu0 0
      %2335 = vmatmul.mubr.bf16.gmra.mrb[0].mxu0 %v779
      %v2336 = vpop.f32.mrb[0].mxu0
      %v2337 = vadd.f32 %v2144, %v2336
      %v2338 = vpop.f32.mrb[0].mxu0
      %v2339 = vadd.f32 %v2146, %v2338
      %v2340 = vpop.f32.mrb[0].mxu0
      %v2341 = vadd.f32 %v2148, %v2340
      %v2342 = vpop.f32.mrb[0].mxu0
      %v2343 = vadd.f32 %v2150, %v2342
      %2344 = vmatprep.mubr.bf16.mxu0 0
      %2345 = vmatmul.mubr.bf16.gmra.mrb[0].mxu0 %v782
      %v2346 = vpop.f32.mrb[0].mxu0
      %v2347 = vadd.f32 %v2154, %v2346
      %v2348 = vpop.f32.mrb[0].mxu0
      %v2349 = vadd.f32 %v2156, %v2348
      %v2350 = vpop.f32.mrb[0].mxu0
      %v2351 = vadd.f32 %v2158, %v2350
      %v2352 = vpop.f32.mrb[0].mxu0
      %v2353 = vadd.f32 %v2160, %v2352
      %2354 = vmatprep.mubr.bf16.mxu0 0
      %2355 = vmatmul.mubr.bf16.gmra.mrb[0].mxu0 %v785
      %v2356 = vpop.f32.mrb[0].mxu0
      %v2357 = vadd.f32 %v2164, %v2356
      %v2358 = vpop.f32.mrb[0].mxu0
      %v2359 = vadd.f32 %v2166, %v2358
      %v2360 = vpop.f32.mrb[0].mxu0
      %v2361 = vadd.f32 %v2168, %v2360
      %v2362 = vpop.f32.mrb[0].mxu0
      %v2363 = vadd.f32 %v2170, %v2362
      %2364 = vmatprep.mubr.bf16.mxu0 0
      %2365 = vmatmul.mubr.bf16.gmra.mrb[0].mxu0 %v788
      %v2366 = vpop.f32.mrb[0].mxu0
      %v2367 = vadd.f32 %v2174, %v2366
      %v2368 = vpop.f32.mrb[0].mxu0
      %v2369 = vadd.f32 %v2176, %v2368
      %v2370 = vpop.f32.mrb[0].mxu0
      %v2371 = vadd.f32 %v2178, %v2370
      %v2372 = vpop.f32.mrb[0].mxu0
      %v2373 = vadd.f32 %v2180, %v2372
      %2374 = vmatprep.mubr.bf16.mxu0 0
      %2375 = vmatmul.mubr.bf16.gmra.mrb[0].mxu0 %v791
      %v2376 = vpop.f32.mrb[0].mxu0
      %v2377 = vadd.f32 %v2184, %v2376
      %v2378 = vpop.f32.mrb[0].mxu0
      %v2379 = vadd.f32 %v2186, %v2378
      %v2380 = vpop.f32.mrb[0].mxu0
      %v2381 = vadd.f32 %v2188, %v2380
      %v2382 = vpop.f32.mrb[0].mxu0
      %v2383 = vadd.f32 %v2190, %v2382
      %2384 = vmatprep.mubr.bf16.mxu0 0
      %2385 = vmatmul.mubr.bf16.gmra.mrb[0].mxu0 %v794
      %v2386 = vpop.f32.mrb[0].mxu0
      %v2387 = vadd.f32 %v2194, %v2386
      %v2388 = vpop.f32.mrb[0].mxu0
      %v2389 = vadd.f32 %v2196, %v2388
      %v2390 = vpop.f32.mrb[0].mxu0
      %v2391 = vadd.f32 %v2198, %v2390
      %v2392 = vpop.f32.mrb[0].mxu0
      %v2393 = vadd.f32 %v2200, %v2392
      %2394 = vmatprep.mubr.bf16.mxu0 0
      %2395 = vmatmul.mubr.bf16.gmra.mrb[0].mxu0 %v797
      %v2396 = vpop.f32.mrb[0].mxu0
      %v2397 = vadd.f32 %v2204, %v2396
      %v2398 = vpop.f32.mrb[0].mxu0
      %v2399 = vadd.f32 %v2206, %v2398
      %v2400 = vpop.f32.mrb[0].mxu0
      %v2401 = vadd.f32 %v2208, %v2400
      %v2402 = vpop.f32.mrb[0].mxu0
      %v2403 = vadd.f32 %v2210, %v2402
      %2404 = vmatprep.mubr.bf16.mxu0 0
      %2405 = vmatmul.mubr.bf16.gmra.mrb[0].mxu0 %v800
      %v2406 = vpop.f32.mrb[0].mxu0
      %v2407 = vadd.f32 %v2214, %v2406
      %v2408 = vpop.f32.mrb[0].mxu0
      %v2409 = vadd.f32 %v2216, %v2408
      %v2410 = vpop.f32.mrb[0].mxu0
      %v2411 = vadd.f32 %v2218, %v2410
      %v2412 = vpop.f32.mrb[0].mxu0
      %v2413 = vadd.f32 %v2220, %v2412
      %2414 = vdwg.mxu0
      %v2447 = vunpack.c.l.b16 %v1780
      %v2448 = vunpack.c.h.b16 %v1780
      %v2449 = vunpack.c.l.b16 %v1781
      %v2450 = vunpack.c.h.b16 %v1781
      %v2451 = vunpack.c.l.b16 %v1782
      %v2452 = vunpack.c.h.b16 %v1782
      %v2453 = vunpack.c.l.b16 %v1783
      %v2454 = vunpack.c.h.b16 %v1783
      %v2455 = vunpack.c.l.b16 %v1784
      %v2456 = vunpack.c.h.b16 %v1784
      %v2457 = vunpack.c.l.b16 %v1785
      %v2458 = vunpack.c.h.b16 %v1785
      %v2459 = vunpack.c.l.b16 %v1786
      %v2460 = vunpack.c.h.b16 %v1786
      %v2461 = vunpack.c.l.b16 %v1787
      %v2462 = vunpack.c.h.b16 %v1787
      %v2463 = vunpack.c.l.b16 %v1788
      %v2464 = vunpack.c.h.b16 %v1788
      %v2465 = vunpack.c.l.b16 %v1789
      %v2466 = vunpack.c.h.b16 %v1789
      %v2467 = vunpack.c.l.b16 %v1790
      %v2468 = vunpack.c.h.b16 %v1790
      %v2469 = vunpack.c.l.b16 %v1791
      %v2470 = vunpack.c.h.b16 %v1791
      %v2471 = vunpack.c.l.b16 %v1792
      %v2472 = vunpack.c.h.b16 %v1792
      %v2473 = vunpack.c.l.b16 %v1793
      %v2474 = vunpack.c.h.b16 %v1793
      %v2475 = vunpack.c.l.b16 %v1794
      %v2476 = vunpack.c.h.b16 %v1794
      %v2477 = vunpack.c.l.b16 %v1795
      %v2478 = vunpack.c.h.b16 %v1795
      %v2479 = vunpack.c.l.b16 %v1796
      %v2480 = vunpack.c.h.b16 %v1796
      %v2481 = vunpack.c.l.b16 %v1797
      %v2482 = vunpack.c.h.b16 %v1797
      %v2483 = vunpack.c.l.b16 %v1798
      %v2484 = vunpack.c.h.b16 %v1798
      %v2485 = vunpack.c.l.b16 %v1799
      %v2486 = vunpack.c.h.b16 %v1799
      %v2487 = vunpack.c.l.b16 %v1800
      %v2488 = vunpack.c.h.b16 %v1800
      %v2489 = vunpack.c.l.b16 %v1801
      %v2490 = vunpack.c.h.b16 %v1801
      %v2491 = vunpack.c.l.b16 %v1802
      %v2492 = vunpack.c.h.b16 %v1802
      %v2493 = vunpack.c.l.b16 %v1803
      %v2494 = vunpack.c.h.b16 %v1803
      %v2495 = vunpack.c.l.b16 %v1804
      %v2496 = vunpack.c.h.b16 %v1804
      %v2497 = vunpack.c.l.b16 %v1805
      %v2498 = vunpack.c.h.b16 %v1805
      %v2499 = vunpack.c.l.b16 %v1806
      %v2500 = vunpack.c.h.b16 %v1806
      %v2501 = vunpack.c.l.b16 %v1807
      %v2502 = vunpack.c.h.b16 %v1807
      %v2503 = vunpack.c.l.b16 %v1808
      %v2504 = vunpack.c.h.b16 %v1808
      %v2505 = vunpack.c.l.b16 %v1809
      %v2506 = vunpack.c.h.b16 %v1809
      %v2507 = vunpack.c.l.b16 %v1810
      %v2508 = vunpack.c.h.b16 %v1810
      %v2509 = vunpack.c.l.b16 %v1811
      %v2510 = vunpack.c.h.b16 %v1811
      %v2511 = vpack.c.b16 %v2449, %v2447
      %v2512 = vpack.c.b16 %v2450, %v2448
      %v2513 = vpack.c.b16 %v2453, %v2451
      %v2514 = vpack.c.b16 %v2454, %v2452
      %v2515 = vpack.c.b16 %v2457, %v2455
      %v2516 = vpack.c.b16 %v2458, %v2456
      %v2517 = vpack.c.b16 %v2461, %v2459
      %v2518 = vpack.c.b16 %v2462, %v2460
      %v2519 = vpack.c.b16 %v2465, %v2463
      %v2520 = vpack.c.b16 %v2466, %v2464
      %v2521 = vpack.c.b16 %v2469, %v2467
      %v2522 = vpack.c.b16 %v2470, %v2468
      %v2523 = vpack.c.b16 %v2473, %v2471
      %v2524 = vpack.c.b16 %v2474, %v2472
      %v2525 = vpack.c.b16 %v2477, %v2475
      %v2526 = vpack.c.b16 %v2478, %v2476
      %v2527 = vpack.c.b16 %v2481, %v2479
      %v2528 = vpack.c.b16 %v2482, %v2480
      %v2529 = vpack.c.b16 %v2485, %v2483
      %v2530 = vpack.c.b16 %v2486, %v2484
      %v2531 = vpack.c.b16 %v2489, %v2487
      %v2532 = vpack.c.b16 %v2490, %v2488
      %v2533 = vpack.c.b16 %v2493, %v2491
      %v2534 = vpack.c.b16 %v2494, %v2492
      %v2535 = vpack.c.b16 %v2497, %v2495
      %v2536 = vpack.c.b16 %v2498, %v2496
      %v2537 = vpack.c.b16 %v2501, %v2499
      %v2538 = vpack.c.b16 %v2502, %v2500
      %v2539 = vpack.c.b16 %v2505, %v2503
      %v2540 = vpack.c.b16 %v2506, %v2504
      %v2541 = vpack.c.b16 %v2509, %v2507
      %v2542 = vpack.c.b16 %v2510, %v2508
      %2575 = vmatprep.subr.bf16.mxu0 %v2512
      %2576 = vmatpush1.bf16.msra.mxu0 %v2511
      %2577 = vmatprep.subr.bf16.mxu0 %v2514
      %2578 = vmatpush1.bf16.msra.mxu0 %v2513
      %2579 = vmatprep.subr.bf16.mxu0 %v2516
      %2580 = vmatpush1.bf16.msra.mxu0 %v2515
      %2581 = vmatprep.subr.bf16.mxu0 %v2518
      %2582 = vmatpush1.bf16.msra.mxu0 %v2517
      %2583 = vmatprep.subr.bf16.mxu0 %v2520
      %2584 = vmatpush1.bf16.msra.mxu0 %v2519
      %2585 = vmatprep.subr.bf16.mxu0 %v2522
      %2586 = vmatpush1.bf16.msra.mxu0 %v2521
      %2587 = vmatprep.subr.bf16.mxu0 %v2524
      %2588 = vmatpush1.bf16.msra.mxu0 %v2523
      %2589 = vmatprep.subr.bf16.mxu0 %v2526
      %2590 = vmatpush1.bf16.msra.mxu0 %v2525
      %2591 = vmatprep.subr.bf16.mxu0 %v2528
      %2592 = vmatpush1.bf16.msra.mxu0 %v2527
      %2593 = vmatprep.subr.bf16.mxu0 %v2530
      %2594 = vmatpush1.bf16.msra.mxu0 %v2529
      %2595 = vmatprep.subr.bf16.mxu0 %v2532
      %2596 = vmatpush1.bf16.msra.mxu0 %v2531
      %2597 = vmatprep.subr.bf16.mxu0 %v2534
      %2598 = vmatpush1.bf16.msra.mxu0 %v2533
      %2599 = vmatprep.subr.bf16.mxu0 %v2536
      %2600 = vmatpush1.bf16.msra.mxu0 %v2535
      %2601 = vmatprep.subr.bf16.mxu0 %v2538
      %2602 = vmatpush1.bf16.msra.mxu0 %v2537
      %2603 = vmatprep.subr.bf16.mxu0 %v2540
      %2604 = vmatpush1.bf16.msra.mxu0 %v2539
      %2605 = vmatprep.subr.bf16.mxu0 %v2542
      %2606 = vmatpush1.bf16.msra.mxu0 %v2541
      %2607 = vmatprep.mubr.bf16.mxu0 %v1748
      %2608 = vmatmul.mubr.bf16.gmra.mrb[0].mxu0 %v1747
      %v2609 = vpop.f32.mrb[0].mxu0
      %v2610 = vadd.f32 %v2257, %v2609
      %v2611 = vpop.f32.mrb[0].mxu0
      %v2612 = vadd.f32 %v2259, %v2611
      %v2613 = vpop.f32.mrb[0].mxu0
      %v2614 = vadd.f32 %v2261, %v2613
      %v2615 = vpop.f32.mrb[0].mxu0
      %v2616 = vadd.f32 %v2263, %v2615
      %2617 = vmatprep.mubr.bf16.mxu0 %v1750
      %2618 = vmatmul.mubr.bf16.gmra.mrb[0].mxu0 %v1749
      %v2619 = vpop.f32.mrb[0].mxu0
      %v2620 = vadd.f32 %v2267, %v2619
      %v2621 = vpop.f32.mrb[0].mxu0
      %v2622 = vadd.f32 %v2269, %v2621
      %v2623 = vpop.f32.mrb[0].mxu0
      %v2624 = vadd.f32 %v2271, %v2623
      %v2625 = vpop.f32.mrb[0].mxu0
      %v2626 = vadd.f32 %v2273, %v2625
      %2627 = vmatprep.mubr.bf16.mxu0 %v1752
      %2628 = vmatmul.mubr.bf16.gmra.mrb[0].mxu0 %v1751
      %v2629 = vpop.f32.mrb[0].mxu0
      %v2630 = vadd.f32 %v2277, %v2629
      %v2631 = vpop.f32.mrb[0].mxu0
      %v2632 = vadd.f32 %v2279, %v2631
      %v2633 = vpop.f32.mrb[0].mxu0
      %v2634 = vadd.f32 %v2281, %v2633
      %v2635 = vpop.f32.mrb[0].mxu0
      %v2636 = vadd.f32 %v2283, %v2635
      %2637 = vmatprep.mubr.bf16.mxu0 %v1754
      %2638 = vmatmul.mubr.bf16.gmra.mrb[0].mxu0 %v1753
      %v2639 = vpop.f32.mrb[0].mxu0
      %v2640 = vadd.f32 %v2287, %v2639
      %v2641 = vpop.f32.mrb[0].mxu0
      %v2642 = vadd.f32 %v2289, %v2641
      %v2643 = vpop.f32.mrb[0].mxu0
      %v2644 = vadd.f32 %v2291, %v2643
      %v2645 = vpop.f32.mrb[0].mxu0
      %v2646 = vadd.f32 %v2293, %v2645
      %2647 = vmatprep.mubr.bf16.mxu0 %v1756
      %2648 = vmatmul.mubr.bf16.gmra.mrb[0].mxu0 %v1755
      %v2649 = vpop.f32.mrb[0].mxu0
      %v2650 = vadd.f32 %v2297, %v2649
      %v2651 = vpop.f32.mrb[0].mxu0
      %v2652 = vadd.f32 %v2299, %v2651
      %v2653 = vpop.f32.mrb[0].mxu0
      %v2654 = vadd.f32 %v2301, %v2653
      %v2655 = vpop.f32.mrb[0].mxu0
      %v2656 = vadd.f32 %v2303, %v2655
      %2657 = vmatprep.mubr.bf16.mxu0 %v1758
      %2658 = vmatmul.mubr.bf16.gmra.mrb[0].mxu0 %v1757
      %v2659 = vpop.f32.mrb[0].mxu0
      %v2660 = vadd.f32 %v2307, %v2659
      %v2661 = vpop.f32.mrb[0].mxu0
      %v2662 = vadd.f32 %v2309, %v2661
      %v2663 = vpop.f32.mrb[0].mxu0
      %v2664 = vadd.f32 %v2311, %v2663
      %v2665 = vpop.f32.mrb[0].mxu0
      %v2666 = vadd.f32 %v2313, %v2665
      %2667 = vmatprep.mubr.bf16.mxu0 %v1760
      %2668 = vmatmul.mubr.bf16.gmra.mrb[0].mxu0 %v1759
      %v2669 = vpop.f32.mrb[0].mxu0
      %v2670 = vadd.f32 %v2317, %v2669
      %v2671 = vpop.f32.mrb[0].mxu0
      %v2672 = vadd.f32 %v2319, %v2671
      %v2673 = vpop.f32.mrb[0].mxu0
      %v2674 = vadd.f32 %v2321, %v2673
      %v2675 = vpop.f32.mrb[0].mxu0
      %v2676 = vadd.f32 %v2323, %v2675
      %2677 = vmatprep.mubr.bf16.mxu0 %v1762
      %2678 = vmatmul.mubr.bf16.gmra.mrb[0].mxu0 %v1761
      %v2679 = vpop.f32.mrb[0].mxu0
      %v2680 = vadd.f32 %v2327, %v2679
      %v2681 = vpop.f32.mrb[0].mxu0
      %v2682 = vadd.f32 %v2329, %v2681
      %v2683 = vpop.f32.mrb[0].mxu0
      %v2684 = vadd.f32 %v2331, %v2683
      %v2685 = vpop.f32.mrb[0].mxu0
      %v2686 = vadd.f32 %v2333, %v2685
      %2687 = vmatprep.mubr.bf16.mxu0 %v1764
      %2688 = vmatmul.mubr.bf16.gmra.mrb[0].mxu0 %v1763
      %v2689 = vpop.f32.mrb[0].mxu0
      %v2690 = vadd.f32 %v2337, %v2689
      %v2691 = vpop.f32.mrb[0].mxu0
      %v2692 = vadd.f32 %v2339, %v2691
      %v2693 = vpop.f32.mrb[0].mxu0
      %v2694 = vadd.f32 %v2341, %v2693
      %v2695 = vpop.f32.mrb[0].mxu0
      %v2696 = vadd.f32 %v2343, %v2695
      %2697 = vmatprep.mubr.bf16.mxu0 %v1766
      %2698 = vmatmul.mubr.bf16.gmra.mrb[0].mxu0 %v1765
      %v2699 = vpop.f32.mrb[0].mxu0
      %v2700 = vadd.f32 %v2347, %v2699
      %v2701 = vpop.f32.mrb[0].mxu0
      %v2702 = vadd.f32 %v2349, %v2701
      %v2703 = vpop.f32.mrb[0].mxu0
      %v2704 = vadd.f32 %v2351, %v2703
      %v2705 = vpop.f32.mrb[0].mxu0
      %v2706 = vadd.f32 %v2353, %v2705
      %2707 = vmatprep.mubr.bf16.mxu0 %v1768
      %2708 = vmatmul.mubr.bf16.gmra.mrb[0].mxu0 %v1767
      %v2709 = vpop.f32.mrb[0].mxu0
      %v2710 = vadd.f32 %v2357, %v2709
      %v2711 = vpop.f32.mrb[0].mxu0
      %v2712 = vadd.f32 %v2359, %v2711
      %v2713 = vpop.f32.mrb[0].mxu0
      %v2714 = vadd.f32 %v2361, %v2713
      %v2715 = vpop.f32.mrb[0].mxu0
      %v2716 = vadd.f32 %v2363, %v2715
      %2717 = vmatprep.mubr.bf16.mxu0 %v1770
      %2718 = vmatmul.mubr.bf16.gmra.mrb[0].mxu0 %v1769
      %v2719 = vpop.f32.mrb[0].mxu0
      %v2720 = vadd.f32 %v2367, %v2719
      %v2721 = vpop.f32.mrb[0].mxu0
      %v2722 = vadd.f32 %v2369, %v2721
      %v2723 = vpop.f32.mrb[0].mxu0
      %v2724 = vadd.f32 %v2371, %v2723
      %v2725 = vpop.f32.mrb[0].mxu0
      %v2726 = vadd.f32 %v2373, %v2725
      %2727 = vmatprep.mubr.bf16.mxu0 %v1772
      %2728 = vmatmul.mubr.bf16.gmra.mrb[0].mxu0 %v1771
      %v2729 = vpop.f32.mrb[0].mxu0
      %v2730 = vadd.f32 %v2377, %v2729
      %v2731 = vpop.f32.mrb[0].mxu0
      %v2732 = vadd.f32 %v2379, %v2731
      %v2733 = vpop.f32.mrb[0].mxu0
      %v2734 = vadd.f32 %v2381, %v2733
      %v2735 = vpop.f32.mrb[0].mxu0
      %v2736 = vadd.f32 %v2383, %v2735
      %2737 = vmatprep.mubr.bf16.mxu0 %v1774
      %2738 = vmatmul.mubr.bf16.gmra.mrb[0].mxu0 %v1773
      %v2739 = vpop.f32.mrb[0].mxu0
      %v2740 = vadd.f32 %v2387, %v2739
      %v2741 = vpop.f32.mrb[0].mxu0
      %v2742 = vadd.f32 %v2389, %v2741
      %v2743 = vpop.f32.mrb[0].mxu0
      %v2744 = vadd.f32 %v2391, %v2743
      %v2745 = vpop.f32.mrb[0].mxu0
      %v2746 = vadd.f32 %v2393, %v2745
      %2747 = vmatprep.mubr.bf16.mxu0 %v1776
      %2748 = vmatmul.mubr.bf16.gmra.mrb[0].mxu0 %v1775
      %v2749 = vpop.f32.mrb[0].mxu0
      %v2750 = vadd.f32 %v2397, %v2749
      %v2751 = vpop.f32.mrb[0].mxu0
      %v2752 = vadd.f32 %v2399, %v2751
      %v2753 = vpop.f32.mrb[0].mxu0
      %v2754 = vadd.f32 %v2401, %v2753
      %v2755 = vpop.f32.mrb[0].mxu0
      %v2756 = vadd.f32 %v2403, %v2755
      %2757 = vmatprep.mubr.bf16.mxu0 %v1778
      %2758 = vmatmul.mubr.bf16.gmra.mrb[0].mxu0 %v1777
      %v2759 = vpop.f32.mrb[0].mxu0
      %v2760 = vadd.f32 %v2407, %v2759
      %v2761 = vpop.f32.mrb[0].mxu0
      %v2762 = vadd.f32 %v2409, %v2761
      %v2763 = vpop.f32.mrb[0].mxu0
      %v2764 = vadd.f32 %v2411, %v2763
      %v2765 = vpop.f32.mrb[0].mxu0
      %v2766 = vadd.f32 %v2413, %v2765
      %2767 = vdwg.mxu0
      %s2768 = scalar_lea.vmem %s2, 2
      %v2769 = vld [vmem:[%s2768] ss:$8 sm:$0x3]
      %v2771 = vlaneseq
      %v2772 = vshrl.u32 %v2771, 7
      %v2773 = vsub.s32 0, %v2772
      %v2774 = vrot.slane %v2769, %v2773
      %v2775 = vlaneseq
      %v2776 = vshrl.u32 %v2775, 7
      %v2777 = vsub.s32 1, %v2776
      %v2778 = vrot.slane %v2769, %v2777
      %v2781 = vadd.f32 %v2610, %v2774
      %v2782 = vadd.f32 %v2612, %v2778
      %v2783 = vadd.f32 %v2614, %v2774
      %v2784 = vadd.f32 %v2616, %v2778
      %v2785 = vadd.f32 %v2620, %v2774
      %v2786 = vadd.f32 %v2622, %v2778
      %v2787 = vadd.f32 %v2624, %v2774
      %v2788 = vadd.f32 %v2626, %v2778
      %v2789 = vadd.f32 %v2630, %v2774
      %v2790 = vadd.f32 %v2632, %v2778
      %v2791 = vadd.f32 %v2634, %v2774
      %v2792 = vadd.f32 %v2636, %v2778
      %v2793 = vadd.f32 %v2640, %v2774
      %v2794 = vadd.f32 %v2642, %v2778
      %v2795 = vadd.f32 %v2644, %v2774
      %v2796 = vadd.f32 %v2646, %v2778
      %v2797 = vadd.f32 %v2650, %v2774
      %v2798 = vadd.f32 %v2652, %v2778
      %v2799 = vadd.f32 %v2654, %v2774
      %v2800 = vadd.f32 %v2656, %v2778
      %v2801 = vadd.f32 %v2660, %v2774
      %v2802 = vadd.f32 %v2662, %v2778
      %v2803 = vadd.f32 %v2664, %v2774
      %v2804 = vadd.f32 %v2666, %v2778
      %v2805 = vadd.f32 %v2670, %v2774
      %v2806 = vadd.f32 %v2672, %v2778
      %v2807 = vadd.f32 %v2674, %v2774
      %v2808 = vadd.f32 %v2676, %v2778
      %v2809 = vadd.f32 %v2680, %v2774
      %v2810 = vadd.f32 %v2682, %v2778
      %v2811 = vadd.f32 %v2684, %v2774
      %v2812 = vadd.f32 %v2686, %v2778
      %v2813 = vadd.f32 %v2690, %v2774
      %v2814 = vadd.f32 %v2692, %v2778
      %v2815 = vadd.f32 %v2694, %v2774
      %v2816 = vadd.f32 %v2696, %v2778
      %v2817 = vadd.f32 %v2700, %v2774
      %v2818 = vadd.f32 %v2702, %v2778
      %v2819 = vadd.f32 %v2704, %v2774
      %v2820 = vadd.f32 %v2706, %v2778
      %v2821 = vadd.f32 %v2710, %v2774
      %v2822 = vadd.f32 %v2712, %v2778
      %v2823 = vadd.f32 %v2714, %v2774
      %v2824 = vadd.f32 %v2716, %v2778
      %v2825 = vadd.f32 %v2720, %v2774
      %v2826 = vadd.f32 %v2722, %v2778
      %v2827 = vadd.f32 %v2724, %v2774
      %v2828 = vadd.f32 %v2726, %v2778
      %v2829 = vadd.f32 %v2730, %v2774
      %v2830 = vadd.f32 %v2732, %v2778
      %v2831 = vadd.f32 %v2734, %v2774
      %v2832 = vadd.f32 %v2736, %v2778
      %v2833 = vadd.f32 %v2740, %v2774
      %v2834 = vadd.f32 %v2742, %v2778
      %v2835 = vadd.f32 %v2744, %v2774
      %v2836 = vadd.f32 %v2746, %v2778
      %v2837 = vadd.f32 %v2750, %v2774
      %v2838 = vadd.f32 %v2752, %v2778
      %v2839 = vadd.f32 %v2754, %v2774
      %v2840 = vadd.f32 %v2756, %v2778
      %v2841 = vadd.f32 %v2760, %v2774
      %v2842 = vadd.f32 %v2762, %v2778
      %v2843 = vadd.f32 %v2764, %v2774
      %v2844 = vadd.f32 %v2766, %v2778
      %v2845 = vmax.f32 %v2781, 0.0
      %v2846 = vmax.f32 %v2782, 0.0
      %v2847 = vmax.f32 %v2783, 0.0
      %v2848 = vmax.f32 %v2784, 0.0
      %v2849 = vmax.f32 %v2785, 0.0
      %v2850 = vmax.f32 %v2786, 0.0
      %v2851 = vmax.f32 %v2787, 0.0
      %v2852 = vmax.f32 %v2788, 0.0
      %v2853 = vmax.f32 %v2789, 0.0
      %v2854 = vmax.f32 %v2790, 0.0
      %v2855 = vmax.f32 %v2791, 0.0
      %v2856 = vmax.f32 %v2792, 0.0
      %v2857 = vmax.f32 %v2793, 0.0
      %v2858 = vmax.f32 %v2794, 0.0
      %v2859 = vmax.f32 %v2795, 0.0
      %v2860 = vmax.f32 %v2796, 0.0
      %v2861 = vmax.f32 %v2797, 0.0
      %v2862 = vmax.f32 %v2798, 0.0
      %v2863 = vmax.f32 %v2799, 0.0
      %v2864 = vmax.f32 %v2800, 0.0
      %v2865 = vmax.f32 %v2801, 0.0
      %v2866 = vmax.f32 %v2802, 0.0
      %v2867 = vmax.f32 %v2803, 0.0
      %v2868 = vmax.f32 %v2804, 0.0
      %v2869 = vmax.f32 %v2805, 0.0
      %v2870 = vmax.f32 %v2806, 0.0
      %v2871 = vmax.f32 %v2807, 0.0
      %v2872 = vmax.f32 %v2808, 0.0
      %v2873 = vmax.f32 %v2809, 0.0
      %v2874 = vmax.f32 %v2810, 0.0
      %v2875 = vmax.f32 %v2811, 0.0
      %v2876 = vmax.f32 %v2812, 0.0
      %v2877 = vmax.f32 %v2813, 0.0
      %v2878 = vmax.f32 %v2814, 0.0
      %v2879 = vmax.f32 %v2815, 0.0
      %v2880 = vmax.f32 %v2816, 0.0
      %v2881 = vmax.f32 %v2817, 0.0
      %v2882 = vmax.f32 %v2818, 0.0
      %v2883 = vmax.f32 %v2819, 0.0
      %v2884 = vmax.f32 %v2820, 0.0
      %v2885 = vmax.f32 %v2821, 0.0
      %v2886 = vmax.f32 %v2822, 0.0
      %v2887 = vmax.f32 %v2823, 0.0
      %v2888 = vmax.f32 %v2824, 0.0
      %v2889 = vmax.f32 %v2825, 0.0
      %v2890 = vmax.f32 %v2826, 0.0
      %v2891 = vmax.f32 %v2827, 0.0
      %v2892 = vmax.f32 %v2828, 0.0
      %v2893 = vmax.f32 %v2829, 0.0
      %v2894 = vmax.f32 %v2830, 0.0
      %v2895 = vmax.f32 %v2831, 0.0
      %v2896 = vmax.f32 %v2832, 0.0
      %v2897 = vmax.f32 %v2833, 0.0
      %v2898 = vmax.f32 %v2834, 0.0
      %v2899 = vmax.f32 %v2835, 0.0
      %v2900 = vmax.f32 %v2836, 0.0
      %v2901 = vmax.f32 %v2837, 0.0
      %v2902 = vmax.f32 %v2838, 0.0
      %v2903 = vmax.f32 %v2839, 0.0
      %v2904 = vmax.f32 %v2840, 0.0
      %v2905 = vmax.f32 %v2841, 0.0
      %v2906 = vmax.f32 %v2842, 0.0
      %v2907 = vmax.f32 %v2843, 0.0
      %v2908 = vmax.f32 %v2844, 0.0
      %v2909 = vpack.c.bf16 %v2847, %v2845
      %v2910 = vpack.c.bf16 %v2848, %v2846
      %v2911 = vpack.c.bf16 %v2851, %v2849
      %v2912 = vpack.c.bf16 %v2852, %v2850
      %v2913 = vpack.c.bf16 %v2855, %v2853
      %v2914 = vpack.c.bf16 %v2856, %v2854
      %v2915 = vpack.c.bf16 %v2859, %v2857
      %v2916 = vpack.c.bf16 %v2860, %v2858
      %v2917 = vpack.c.bf16 %v2863, %v2861
      %v2918 = vpack.c.bf16 %v2864, %v2862
      %v2919 = vpack.c.bf16 %v2867, %v2865
      %v2920 = vpack.c.bf16 %v2868, %v2866
      %v2921 = vpack.c.bf16 %v2871, %v2869
      %v2922 = vpack.c.bf16 %v2872, %v2870
      %v2923 = vpack.c.bf16 %v2875, %v2873
      %v2924 = vpack.c.bf16 %v2876, %v2874
      %v2925 = vpack.c.bf16 %v2879, %v2877
      %v2926 = vpack.c.bf16 %v2880, %v2878
      %v2927 = vpack.c.bf16 %v2883, %v2881
      %v2928 = vpack.c.bf16 %v2884, %v2882
      %v2929 = vpack.c.bf16 %v2887, %v2885
      %v2930 = vpack.c.bf16 %v2888, %v2886
      %v2931 = vpack.c.bf16 %v2891, %v2889
      %v2932 = vpack.c.bf16 %v2892, %v2890
      %v2933 = vpack.c.bf16 %v2895, %v2893
      %v2934 = vpack.c.bf16 %v2896, %v2894
      %v2935 = vpack.c.bf16 %v2899, %v2897
      %v2936 = vpack.c.bf16 %v2900, %v2898
      %v2937 = vpack.c.bf16 %v2903, %v2901
      %v2938 = vpack.c.bf16 %v2904, %v2902
      %v2939 = vpack.c.bf16 %v2907, %v2905
      %v2940 = vpack.c.bf16 %v2908, %v2906
      %s2941 = scalar_lea.vmem %s1, 1728
      %v2942 = vld [vmem:[%s2941] sm:$0xff]
      %v2943 = vld [vmem:[%s2941 + $0xc] sm:$0xff]
      %v2944 = vld [vmem:[%s2941 + $0x18] sm:$0xff]
      %v2945 = vld [vmem:[%s2941 + $0x24] sm:$0xff]
      %v2946 = vld [vmem:[%s2941 + $0x30] sm:$0xff]
      %v2947 = vld [vmem:[%s2941 + $0x3c] sm:$0xff]
      %v2948 = vld [vmem:[%s2941 + $0x48] sm:$0xff]
      %v2949 = vld [vmem:[%s2941 + $0x54] sm:$0xff]
      %v2950 = vld [vmem:[%s2941 + $0x60] sm:$0xff]
      %v2951 = vld [vmem:[%s2941 + $0x6c] sm:$0xff]
      %v2952 = vld [vmem:[%s2941 + $0x78] sm:$0xff]
      %v2953 = vld [vmem:[%s2941 + $0x84] sm:$0xff]
      %v2954 = vld [vmem:[%s2941 + $0x90] sm:$0xff]
      %v2955 = vld [vmem:[%s2941 + $0x9c] sm:$0xff]
      %v2956 = vld [vmem:[%s2941 + $0xa8] sm:$0xff]
      %v2957 = vld [vmem:[%s2941 + $0xb4] sm:$0xff]
      %v2958 = vld [vmem:[%s2941 + $0xc0] sm:$0xff]
      %v2959 = vld [vmem:[%s2941 + $0xcc] sm:$0xff]
      %v2960 = vld [vmem:[%s2941 + $0xd8] sm:$0xff]
      %v2961 = vld [vmem:[%s2941 + $0xe4] sm:$0xff]
      %v2962 = vld [vmem:[%s2941 + $0xf0] sm:$0xff]
      %v2963 = vld [vmem:[%s2941 + $0xfc] sm:$0xff]
      %v2964 = vld [vmem:[%s2941 + $0x108] sm:$0xff]
      %v2965 = vld [vmem:[%s2941 + $0x114] sm:$0xff]
      %v2966 = vld [vmem:[%s2941 + $0x120] sm:$0xff]
      %v2967 = vld [vmem:[%s2941 + $0x12c] sm:$0xff]
      %v2968 = vld [vmem:[%s2941 + $0x138] sm:$0xff]
      %v2969 = vld [vmem:[%s2941 + $0x144] sm:$0xff]
      %v2970 = vld [vmem:[%s2941 + $0x150] sm:$0xff]
      %v2971 = vld [vmem:[%s2941 + $0x15c] sm:$0xff]
      %v2972 = vld [vmem:[%s2941 + $0x168] sm:$0xff]
      %v2973 = vld [vmem:[%s2941 + $0x174] sm:$0xff]
      %s2974 = scalar_lea.vmem %s2, 3
      %v2975 = vld [vmem:[%s2974] ss:$8 sm:$0x3]
      %v2977 = vlaneseq
      %v2978 = vshrl.u32 %v2977, 7
      %v2979 = vsub.s32 0, %v2978
      %v2980 = vrot.slane %v2975, %v2979
      %v2981 = vlaneseq
      %v2982 = vshrl.u32 %v2981, 7
      %v2983 = vsub.s32 1, %v2982
      %v2984 = vrot.slane %v2975, %v2983
      %v3019 = vunpack.c.l.b16 %v2942
      %v3020 = vunpack.c.h.b16 %v2942
      %v3021 = vunpack.c.l.b16 %v2943
      %v3022 = vunpack.c.h.b16 %v2943
      %v3023 = vunpack.c.l.b16 %v2944
      %v3024 = vunpack.c.h.b16 %v2944
      %v3025 = vunpack.c.l.b16 %v2945
      %v3026 = vunpack.c.h.b16 %v2945
      %v3027 = vunpack.c.l.b16 %v2946
      %v3028 = vunpack.c.h.b16 %v2946
      %v3029 = vunpack.c.l.b16 %v2947
      %v3030 = vunpack.c.h.b16 %v2947
      %v3031 = vunpack.c.l.b16 %v2948
      %v3032 = vunpack.c.h.b16 %v2948
      %v3033 = vunpack.c.l.b16 %v2949
      %v3034 = vunpack.c.h.b16 %v2949
      %v3035 = vunpack.c.l.b16 %v2950
      %v3036 = vunpack.c.h.b16 %v2950
      %v3037 = vunpack.c.l.b16 %v2951
      %v3038 = vunpack.c.h.b16 %v2951
      %v3039 = vunpack.c.l.b16 %v2952
      %v3040 = vunpack.c.h.b16 %v2952
      %v3041 = vunpack.c.l.b16 %v2953
      %v3042 = vunpack.c.h.b16 %v2953
      %v3043 = vunpack.c.l.b16 %v2954
      %v3044 = vunpack.c.h.b16 %v2954
      %v3045 = vunpack.c.l.b16 %v2955
      %v3046 = vunpack.c.h.b16 %v2955
      %v3047 = vunpack.c.l.b16 %v2956
      %v3048 = vunpack.c.h.b16 %v2956
      %v3049 = vunpack.c.l.b16 %v2957
      %v3050 = vunpack.c.h.b16 %v2957
      %v3051 = vunpack.c.l.b16 %v2958
      %v3052 = vunpack.c.h.b16 %v2958
      %v3053 = vunpack.c.l.b16 %v2959
      %v3054 = vunpack.c.h.b16 %v2959
      %v3055 = vunpack.c.l.b16 %v2960
      %v3056 = vunpack.c.h.b16 %v2960
      %v3057 = vunpack.c.l.b16 %v2961
      %v3058 = vunpack.c.h.b16 %v2961
      %v3059 = vunpack.c.l.b16 %v2962
      %v3060 = vunpack.c.h.b16 %v2962
      %v3061 = vunpack.c.l.b16 %v2963
      %v3062 = vunpack.c.h.b16 %v2963
      %v3063 = vunpack.c.l.b16 %v2964
      %v3064 = vunpack.c.h.b16 %v2964
      %v3065 = vunpack.c.l.b16 %v2965
      %v3066 = vunpack.c.h.b16 %v2965
      %v3067 = vunpack.c.l.b16 %v2966
      %v3068 = vunpack.c.h.b16 %v2966
      %v3069 = vunpack.c.l.b16 %v2967
      %v3070 = vunpack.c.h.b16 %v2967
      %v3071 = vunpack.c.l.b16 %v2968
      %v3072 = vunpack.c.h.b16 %v2968
      %v3073 = vunpack.c.l.b16 %v2969
      %v3074 = vunpack.c.h.b16 %v2969
      %v3075 = vunpack.c.l.b16 %v2970
      %v3076 = vunpack.c.h.b16 %v2970
      %v3077 = vunpack.c.l.b16 %v2971
      %v3078 = vunpack.c.h.b16 %v2971
      %v3079 = vunpack.c.l.b16 %v2972
      %v3080 = vunpack.c.h.b16 %v2972
      %v3081 = vunpack.c.l.b16 %v2973
      %v3082 = vunpack.c.h.b16 %v2973
      %v3083 = vpack.c.b16 %v3021, %v3019
      %v3084 = vpack.c.b16 %v3022, %v3020
      %v3085 = vpack.c.b16 %v3025, %v3023
      %v3086 = vpack.c.b16 %v3026, %v3024
      %v3087 = vpack.c.b16 %v3029, %v3027
      %v3088 = vpack.c.b16 %v3030, %v3028
      %v3089 = vpack.c.b16 %v3033, %v3031
      %v3090 = vpack.c.b16 %v3034, %v3032
      %v3091 = vpack.c.b16 %v3037, %v3035
      %v3092 = vpack.c.b16 %v3038, %v3036
      %v3093 = vpack.c.b16 %v3041, %v3039
      %v3094 = vpack.c.b16 %v3042, %v3040
      %v3095 = vpack.c.b16 %v3045, %v3043
      %v3096 = vpack.c.b16 %v3046, %v3044
      %v3097 = vpack.c.b16 %v3049, %v3047
      %v3098 = vpack.c.b16 %v3050, %v3048
      %v3099 = vpack.c.b16 %v3053, %v3051
      %v3100 = vpack.c.b16 %v3054, %v3052
      %v3101 = vpack.c.b16 %v3057, %v3055
      %v3102 = vpack.c.b16 %v3058, %v3056
      %v3103 = vpack.c.b16 %v3061, %v3059
      %v3104 = vpack.c.b16 %v3062, %v3060
      %v3105 = vpack.c.b16 %v3065, %v3063
      %v3106 = vpack.c.b16 %v3066, %v3064
      %v3107 = vpack.c.b16 %v3069, %v3067
      %v3108 = vpack.c.b16 %v3070, %v3068
      %v3109 = vpack.c.b16 %v3073, %v3071
      %v3110 = vpack.c.b16 %v3074, %v3072
      %v3111 = vpack.c.b16 %v3077, %v3075
      %v3112 = vpack.c.b16 %v3078, %v3076
      %v3113 = vpack.c.b16 %v3081, %v3079
      %v3114 = vpack.c.b16 %v3082, %v3080
      %3147 = vmatprep.subr.bf16.mxu0 %v3084
      %3148 = vmatpush1.bf16.msra.mxu0 %v3083
      %3149 = vmatprep.subr.bf16.mxu0 %v3086
      %3150 = vmatpush1.bf16.msra.mxu0 %v3085
      %3151 = vmatprep.subr.bf16.mxu0 %v3088
      %3152 = vmatpush1.bf16.msra.mxu0 %v3087
      %3153 = vmatprep.subr.bf16.mxu0 %v3090
      %3154 = vmatpush1.bf16.msra.mxu0 %v3089
      %3155 = vmatprep.subr.bf16.mxu0 %v3092
      %3156 = vmatpush1.bf16.msra.mxu0 %v3091
      %3157 = vmatprep.subr.bf16.mxu0 %v3094
      %3158 = vmatpush1.bf16.msra.mxu0 %v3093
      %3159 = vmatprep.subr.bf16.mxu0 %v3096
      %3160 = vmatpush1.bf16.msra.mxu0 %v3095
      %3161 = vmatprep.subr.bf16.mxu0 %v3098
      %3162 = vmatpush1.bf16.msra.mxu0 %v3097
      %3163 = vmatprep.subr.bf16.mxu0 %v3100
      %3164 = vmatpush1.bf16.msra.mxu0 %v3099
      %3165 = vmatprep.subr.bf16.mxu0 %v3102
      %3166 = vmatpush1.bf16.msra.mxu0 %v3101
      %3167 = vmatprep.subr.bf16.mxu0 %v3104
      %3168 = vmatpush1.bf16.msra.mxu0 %v3103
      %3169 = vmatprep.subr.bf16.mxu0 %v3106
      %3170 = vmatpush1.bf16.msra.mxu0 %v3105
      %3171 = vmatprep.subr.bf16.mxu0 %v3108
      %3172 = vmatpush1.bf16.msra.mxu0 %v3107
      %3173 = vmatprep.subr.bf16.mxu0 %v3110
      %3174 = vmatpush1.bf16.msra.mxu0 %v3109
      %3175 = vmatprep.subr.bf16.mxu0 %v3112
      %3176 = vmatpush1.bf16.msra.mxu0 %v3111
      %3177 = vmatprep.subr.bf16.mxu0 %v3114
      %3178 = vmatpush1.bf16.msra.mxu0 %v3113
      %3179 = vmatprep.mubr.bf16.mxu0 %v2910
      %3180 = vmatmul.mubr.bf16.gmra.mrb[0].mxu0 %v2909
      %v3181 = vpop.f32.mrb[0].mxu0
      %v3182 = vadd.f32 %v2980, %v3181
      %v3183 = vpop.f32.mrb[0].mxu0
      %v3184 = vadd.f32 %v2984, %v3183
      %v3185 = vpop.f32.mrb[0].mxu0
      %v3186 = vadd.f32 %v2980, %v3185
      %v3187 = vpop.f32.mrb[0].mxu0
      %v3188 = vadd.f32 %v2984, %v3187
      %3189 = vmatprep.mubr.bf16.mxu0 %v2912
      %3190 = vmatmul.mubr.bf16.gmra.mrb[0].mxu0 %v2911
      %v3191 = vpop.f32.mrb[0].mxu0
      %v3192 = vadd.f32 %v2980, %v3191
      %v3193 = vpop.f32.mrb[0].mxu0
      %v3194 = vadd.f32 %v2984, %v3193
      %v3195 = vpop.f32.mrb[0].mxu0
      %v3196 = vadd.f32 %v2980, %v3195
      %v3197 = vpop.f32.mrb[0].mxu0
      %v3198 = vadd.f32 %v2984, %v3197
      %3199 = vmatprep.mubr.bf16.mxu0 %v2914
      %3200 = vmatmul.mubr.bf16.gmra.mrb[0].mxu0 %v2913
      %v3201 = vpop.f32.mrb[0].mxu0
      %v3202 = vadd.f32 %v2980, %v3201
      %v3203 = vpop.f32.mrb[0].mxu0
      %v3204 = vadd.f32 %v2984, %v3203
      %v3205 = vpop.f32.mrb[0].mxu0
      %v3206 = vadd.f32 %v2980, %v3205
      %v3207 = vpop.f32.mrb[0].mxu0
      %v3208 = vadd.f32 %v2984, %v3207
      %3209 = vmatprep.mubr.bf16.mxu0 %v2916
      %3210 = vmatmul.mubr.bf16.gmra.mrb[0].mxu0 %v2915
      %v3211 = vpop.f32.mrb[0].mxu0
      %v3212 = vadd.f32 %v2980, %v3211
      %v3213 = vpop.f32.mrb[0].mxu0
      %v3214 = vadd.f32 %v2984, %v3213
      %v3215 = vpop.f32.mrb[0].mxu0
      %v3216 = vadd.f32 %v2980, %v3215
      %v3217 = vpop.f32.mrb[0].mxu0
      %v3218 = vadd.f32 %v2984, %v3217
      %3219 = vmatprep.mubr.bf16.mxu0 %v2918
      %3220 = vmatmul.mubr.bf16.gmra.mrb[0].mxu0 %v2917
      %v3221 = vpop.f32.mrb[0].mxu0
      %v3222 = vadd.f32 %v2980, %v3221
      %v3223 = vpop.f32.mrb[0].mxu0
      %v3224 = vadd.f32 %v2984, %v3223
      %v3225 = vpop.f32.mrb[0].mxu0
      %v3226 = vadd.f32 %v2980, %v3225
      %v3227 = vpop.f32.mrb[0].mxu0
      %v3228 = vadd.f32 %v2984, %v3227
      %3229 = vmatprep.mubr.bf16.mxu0 %v2920
      %3230 = vmatmul.mubr.bf16.gmra.mrb[0].mxu0 %v2919
      %v3231 = vpop.f32.mrb[0].mxu0
      %v3232 = vadd.f32 %v2980, %v3231
      %v3233 = vpop.f32.mrb[0].mxu0
      %v3234 = vadd.f32 %v2984, %v3233
      %v3235 = vpop.f32.mrb[0].mxu0
      %v3236 = vadd.f32 %v2980, %v3235
      %v3237 = vpop.f32.mrb[0].mxu0
      %v3238 = vadd.f32 %v2984, %v3237
      %3239 = vmatprep.mubr.bf16.mxu0 %v2922
      %3240 = vmatmul.mubr.bf16.gmra.mrb[0].mxu0 %v2921
      %v3241 = vpop.f32.mrb[0].mxu0
      %v3242 = vadd.f32 %v2980, %v3241
      %v3243 = vpop.f32.mrb[0].mxu0
      %v3244 = vadd.f32 %v2984, %v3243
      %v3245 = vpop.f32.mrb[0].mxu0
      %v3246 = vadd.f32 %v2980, %v3245
      %v3247 = vpop.f32.mrb[0].mxu0
      %v3248 = vadd.f32 %v2984, %v3247
      %3249 = vmatprep.mubr.bf16.mxu0 %v2924
      %3250 = vmatmul.mubr.bf16.gmra.mrb[0].mxu0 %v2923
      %v3251 = vpop.f32.mrb[0].mxu0
      %v3252 = vadd.f32 %v2980, %v3251
      %v3253 = vpop.f32.mrb[0].mxu0
      %v3254 = vadd.f32 %v2984, %v3253
      %v3255 = vpop.f32.mrb[0].mxu0
      %v3256 = vadd.f32 %v2980, %v3255
      %v3257 = vpop.f32.mrb[0].mxu0
      %v3258 = vadd.f32 %v2984, %v3257
      %3259 = vmatprep.mubr.bf16.mxu0 %v2926
      %3260 = vmatmul.mubr.bf16.gmra.mrb[0].mxu0 %v2925
      %v3261 = vpop.f32.mrb[0].mxu0
      %v3262 = vadd.f32 %v2980, %v3261
      %v3263 = vpop.f32.mrb[0].mxu0
      %v3264 = vadd.f32 %v2984, %v3263
      %v3265 = vpop.f32.mrb[0].mxu0
      %v3266 = vadd.f32 %v2980, %v3265
      %v3267 = vpop.f32.mrb[0].mxu0
      %v3268 = vadd.f32 %v2984, %v3267
      %3269 = vmatprep.mubr.bf16.mxu0 %v2928
      %3270 = vmatmul.mubr.bf16.gmra.mrb[0].mxu0 %v2927
      %v3271 = vpop.f32.mrb[0].mxu0
      %v3272 = vadd.f32 %v2980, %v3271
      %v3273 = vpop.f32.mrb[0].mxu0
      %v3274 = vadd.f32 %v2984, %v3273
      %v3275 = vpop.f32.mrb[0].mxu0
      %v3276 = vadd.f32 %v2980, %v3275
      %v3277 = vpop.f32.mrb[0].mxu0
      %v3278 = vadd.f32 %v2984, %v3277
      %3279 = vmatprep.mubr.bf16.mxu0 %v2930
      %3280 = vmatmul.mubr.bf16.gmra.mrb[0].mxu0 %v2929
      %v3281 = vpop.f32.mrb[0].mxu0
      %v3282 = vadd.f32 %v2980, %v3281
      %v3283 = vpop.f32.mrb[0].mxu0
      %v3284 = vadd.f32 %v2984, %v3283
      %v3285 = vpop.f32.mrb[0].mxu0
      %v3286 = vadd.f32 %v2980, %v3285
      %v3287 = vpop.f32.mrb[0].mxu0
      %v3288 = vadd.f32 %v2984, %v3287
      %3289 = vmatprep.mubr.bf16.mxu0 %v2932
      %3290 = vmatmul.mubr.bf16.gmra.mrb[0].mxu0 %v2931
      %v3291 = vpop.f32.mrb[0].mxu0
      %v3292 = vadd.f32 %v2980, %v3291
      %v3293 = vpop.f32.mrb[0].mxu0
      %v3294 = vadd.f32 %v2984, %v3293
      %v3295 = vpop.f32.mrb[0].mxu0
      %v3296 = vadd.f32 %v2980, %v3295
      %v3297 = vpop.f32.mrb[0].mxu0
      %v3298 = vadd.f32 %v2984, %v3297
      %3299 = vmatprep.mubr.bf16.mxu0 %v2934
      %3300 = vmatmul.mubr.bf16.gmra.mrb[0].mxu0 %v2933
      %v3301 = vpop.f32.mrb[0].mxu0
      %v3302 = vadd.f32 %v2980, %v3301
      %v3303 = vpop.f32.mrb[0].mxu0
      %v3304 = vadd.f32 %v2984, %v3303
      %v3305 = vpop.f32.mrb[0].mxu0
      %v3306 = vadd.f32 %v2980, %v3305
      %v3307 = vpop.f32.mrb[0].mxu0
      %v3308 = vadd.f32 %v2984, %v3307
      %3309 = vmatprep.mubr.bf16.mxu0 %v2936
      %3310 = vmatmul.mubr.bf16.gmra.mrb[0].mxu0 %v2935
      %v3311 = vpop.f32.mrb[0].mxu0
      %v3312 = vadd.f32 %v2980, %v3311
      %v3313 = vpop.f32.mrb[0].mxu0
      %v3314 = vadd.f32 %v2984, %v3313
      %v3315 = vpop.f32.mrb[0].mxu0
      %v3316 = vadd.f32 %v2980, %v3315
      %v3317 = vpop.f32.mrb[0].mxu0
      %v3318 = vadd.f32 %v2984, %v3317
      %3319 = vmatprep.mubr.bf16.mxu0 %v2938
      %3320 = vmatmul.mubr.bf16.gmra.mrb[0].mxu0 %v2937
      %v3321 = vpop.f32.mrb[0].mxu0
      %v3322 = vadd.f32 %v2980, %v3321
      %v3323 = vpop.f32.mrb[0].mxu0
      %v3324 = vadd.f32 %v2984, %v3323
      %v3325 = vpop.f32.mrb[0].mxu0
      %v3326 = vadd.f32 %v2980, %v3325
      %v3327 = vpop.f32.mrb[0].mxu0
      %v3328 = vadd.f32 %v2984, %v3327
      %3329 = vmatprep.mubr.bf16.mxu0 %v2940
      %3330 = vmatmul.mubr.bf16.gmra.mrb[0].mxu0 %v2939
      %v3331 = vpop.f32.mrb[0].mxu0
      %v3332 = vadd.f32 %v2980, %v3331
      %v3333 = vpop.f32.mrb[0].mxu0
      %v3334 = vadd.f32 %v2984, %v3333
      %v3335 = vpop.f32.mrb[0].mxu0
      %v3336 = vadd.f32 %v2980, %v3335
      %v3337 = vpop.f32.mrb[0].mxu0
      %v3338 = vadd.f32 %v2984, %v3337
      %3339 = vdwg.mxu0
      %v3340 = vmax.f32 %v3182, 0.0
      %v3341 = vmax.f32 %v3184, 0.0
      %v3342 = vmax.f32 %v3186, 0.0
      %v3343 = vmax.f32 %v3188, 0.0
      %v3344 = vmax.f32 %v3192, 0.0
      %v3345 = vmax.f32 %v3194, 0.0
      %v3346 = vmax.f32 %v3196, 0.0
      %v3347 = vmax.f32 %v3198, 0.0
      %v3348 = vmax.f32 %v3202, 0.0
      %v3349 = vmax.f32 %v3204, 0.0
      %v3350 = vmax.f32 %v3206, 0.0
      %v3351 = vmax.f32 %v3208, 0.0
      %v3352 = vmax.f32 %v3212, 0.0
      %v3353 = vmax.f32 %v3214, 0.0
      %v3354 = vmax.f32 %v3216, 0.0
      %v3355 = vmax.f32 %v3218, 0.0
      %v3356 = vmax.f32 %v3222, 0.0
      %v3357 = vmax.f32 %v3224, 0.0
      %v3358 = vmax.f32 %v3226, 0.0
      %v3359 = vmax.f32 %v3228, 0.0
      %v3360 = vmax.f32 %v3232, 0.0
      %v3361 = vmax.f32 %v3234, 0.0
      %v3362 = vmax.f32 %v3236, 0.0
      %v3363 = vmax.f32 %v3238, 0.0
      %v3364 = vmax.f32 %v3242, 0.0
      %v3365 = vmax.f32 %v3244, 0.0
      %v3366 = vmax.f32 %v3246, 0.0
      %v3367 = vmax.f32 %v3248, 0.0
      %v3368 = vmax.f32 %v3252, 0.0
      %v3369 = vmax.f32 %v3254, 0.0
      %v3370 = vmax.f32 %v3256, 0.0
      %v3371 = vmax.f32 %v3258, 0.0
      %v3372 = vmax.f32 %v3262, 0.0
      %v3373 = vmax.f32 %v3264, 0.0
      %v3374 = vmax.f32 %v3266, 0.0
      %v3375 = vmax.f32 %v3268, 0.0
      %v3376 = vmax.f32 %v3272, 0.0
      %v3377 = vmax.f32 %v3274, 0.0
      %v3378 = vmax.f32 %v3276, 0.0
      %v3379 = vmax.f32 %v3278, 0.0
      %v3380 = vmax.f32 %v3282, 0.0
      %v3381 = vmax.f32 %v3284, 0.0
      %v3382 = vmax.f32 %v3286, 0.0
      %v3383 = vmax.f32 %v3288, 0.0
      %v3384 = vmax.f32 %v3292, 0.0
      %v3385 = vmax.f32 %v3294, 0.0
      %v3386 = vmax.f32 %v3296, 0.0
      %v3387 = vmax.f32 %v3298, 0.0
      %v3388 = vmax.f32 %v3302, 0.0
      %v3389 = vmax.f32 %v3304, 0.0
      %v3390 = vmax.f32 %v3306, 0.0
      %v3391 = vmax.f32 %v3308, 0.0
      %v3392 = vmax.f32 %v3312, 0.0
      %v3393 = vmax.f32 %v3314, 0.0
      %v3394 = vmax.f32 %v3316, 0.0
      %v3395 = vmax.f32 %v3318, 0.0
      %v3396 = vmax.f32 %v3322, 0.0
      %v3397 = vmax.f32 %v3324, 0.0
      %v3398 = vmax.f32 %v3326, 0.0
      %v3399 = vmax.f32 %v3328, 0.0
      %v3400 = vmax.f32 %v3332, 0.0
      %v3401 = vmax.f32 %v3334, 0.0
      %v3402 = vmax.f32 %v3336, 0.0
      %v3403 = vmax.f32 %v3338, 0.0
      %v3404 = vpack.c.bf16 %v3342, %v3340
      %v3405 = vpack.c.bf16 %v3343, %v3341
      %v3406 = vpack.c.bf16 %v3346, %v3344
      %v3407 = vpack.c.bf16 %v3347, %v3345
      %v3408 = vpack.c.bf16 %v3350, %v3348
      %v3409 = vpack.c.bf16 %v3351, %v3349
      %v3410 = vpack.c.bf16 %v3354, %v3352
      %v3411 = vpack.c.bf16 %v3355, %v3353
      %v3412 = vpack.c.bf16 %v3358, %v3356
      %v3413 = vpack.c.bf16 %v3359, %v3357
      %v3414 = vpack.c.bf16 %v3362, %v3360
      %v3415 = vpack.c.bf16 %v3363, %v3361
      %v3416 = vpack.c.bf16 %v3366, %v3364
      %v3417 = vpack.c.bf16 %v3367, %v3365
      %v3418 = vpack.c.bf16 %v3370, %v3368
      %v3419 = vpack.c.bf16 %v3371, %v3369
      %v3420 = vpack.c.bf16 %v3374, %v3372
      %v3421 = vpack.c.bf16 %v3375, %v3373
      %v3422 = vpack.c.bf16 %v3378, %v3376
      %v3423 = vpack.c.bf16 %v3379, %v3377
      %v3424 = vpack.c.bf16 %v3382, %v3380
      %v3425 = vpack.c.bf16 %v3383, %v3381
      %v3426 = vpack.c.bf16 %v3386, %v3384
      %v3427 = vpack.c.bf16 %v3387, %v3385
      %v3428 = vpack.c.bf16 %v3390, %v3388
      %v3429 = vpack.c.bf16 %v3391, %v3389
      %v3430 = vpack.c.bf16 %v3394, %v3392
      %v3431 = vpack.c.bf16 %v3395, %v3393
      %v3432 = vpack.c.bf16 %v3398, %v3396
      %v3433 = vpack.c.bf16 %v3399, %v3397
      %v3434 = vpack.c.bf16 %v3402, %v3400
      %v3435 = vpack.c.bf16 %v3403, %v3401
      %s3436 = scalar_lea.vmem %s1, 2160
      %v3437 = vld [vmem:[%s3436] sm:$0xff]
      %v3438 = vld [vmem:[%s3436 + $0x8] sm:$0xf]
      %v3439 = vld [vmem:[%s3436 + $0xc] sm:$0xff]
      %v3440 = vld [vmem:[%s3436 + $0x14] sm:$0xf]
      %v3441 = vld [vmem:[%s3436 + $0x18] sm:$0xff]
      %v3442 = vld [vmem:[%s3436 + $0x20] sm:$0xf]
      %v3443 = vld [vmem:[%s3436 + $0x24] sm:$0xff]
      %v3444 = vld [vmem:[%s3436 + $0x2c] sm:$0xf]
      %v3445 = vld [vmem:[%s3436 + $0x30] sm:$0xff]
      %v3446 = vld [vmem:[%s3436 + $0x38] sm:$0xf]
      %v3447 = vld [vmem:[%s3436 + $0x3c] sm:$0xff]
      %v3448 = vld [vmem:[%s3436 + $0x44] sm:$0xf]
      %v3449 = vld [vmem:[%s3436 + $0x48] sm:$0xff]
      %v3450 = vld [vmem:[%s3436 + $0x50] sm:$0xf]
      %v3451 = vld [vmem:[%s3436 + $0x54] sm:$0xff]
      %v3452 = vld [vmem:[%s3436 + $0x5c] sm:$0xf]
      %v3453 = vld [vmem:[%s3436 + $0x60] sm:$0xff]
      %v3454 = vld [vmem:[%s3436 + $0x68] sm:$0xf]
      %v3455 = vld [vmem:[%s3436 + $0x6c] sm:$0xff]
      %v3456 = vld [vmem:[%s3436 + $0x74] sm:$0xf]
      %v3457 = vld [vmem:[%s3436 + $0x78] sm:$0xff]
      %v3458 = vld [vmem:[%s3436 + $0x80] sm:$0xf]
      %v3459 = vld [vmem:[%s3436 + $0x84] sm:$0xff]
      %v3460 = vld [vmem:[%s3436 + $0x8c] sm:$0xf]
      %v3461 = vld [vmem:[%s3436 + $0x90] sm:$0xff]
      %v3462 = vld [vmem:[%s3436 + $0x98] sm:$0xf]
      %v3463 = vld [vmem:[%s3436 + $0x9c] sm:$0xff]
      %v3464 = vld [vmem:[%s3436 + $0xa4] sm:$0xf]
      %v3465 = vld [vmem:[%s3436 + $0xa8] sm:$0xff]
      %v3466 = vld [vmem:[%s3436 + $0xb0] sm:$0xf]
      %v3467 = vld [vmem:[%s3436 + $0xb4] sm:$0xff]
      %v3468 = vld [vmem:[%s3436 + $0xbc] sm:$0xf]
      %v3469 = vld [vmem:[%s3436 + $0xc0] sm:$0xff]
      %v3470 = vld [vmem:[%s3436 + $0xc8] sm:$0xf]
      %v3471 = vld [vmem:[%s3436 + $0xcc] sm:$0xff]
      %v3472 = vld [vmem:[%s3436 + $0xd4] sm:$0xf]
      %v3473 = vld [vmem:[%s3436 + $0xd8] sm:$0xff]
      %v3474 = vld [vmem:[%s3436 + $0xe0] sm:$0xf]
      %v3475 = vld [vmem:[%s3436 + $0xe4] sm:$0xff]
      %v3476 = vld [vmem:[%s3436 + $0xec] sm:$0xf]
      %v3477 = vld [vmem:[%s3436 + $0xf0] sm:$0xff]
      %v3478 = vld [vmem:[%s3436 + $0xf8] sm:$0xf]
      %v3479 = vld [vmem:[%s3436 + $0xfc] sm:$0xff]
      %v3480 = vld [vmem:[%s3436 + $0x104] sm:$0xf]
      %v3481 = vld [vmem:[%s3436 + $0x108] sm:$0xff]
      %v3482 = vld [vmem:[%s3436 + $0x110] sm:$0xf]
      %v3483 = vld [vmem:[%s3436 + $0x114] sm:$0xff]
      %v3484 = vld [vmem:[%s3436 + $0x11c] sm:$0xf]
      %v3485 = vld [vmem:[%s3436 + $0x120] sm:$0xff]
      %v3486 = vld [vmem:[%s3436 + $0x128] sm:$0xf]
      %v3487 = vld [vmem:[%s3436 + $0x12c] sm:$0xff]
      %v3488 = vld [vmem:[%s3436 + $0x134] sm:$0xf]
      %v3489 = vld [vmem:[%s3436 + $0x138] sm:$0xff]
      %v3490 = vld [vmem:[%s3436 + $0x140] sm:$0xf]
      %v3491 = vld [vmem:[%s3436 + $0x144] sm:$0xff]
      %v3492 = vld [vmem:[%s3436 + $0x14c] sm:$0xf]
      %v3493 = vld [vmem:[%s3436 + $0x150] sm:$0xff]
      %v3494 = vld [vmem:[%s3436 + $0x158] sm:$0xf]
      %v3495 = vld [vmem:[%s3436 + $0x15c] sm:$0xff]
      %v3496 = vld [vmem:[%s3436 + $0x164] sm:$0xf]
      %v3497 = vld [vmem:[%s3436 + $0x168] sm:$0xff]
      %v3498 = vld [vmem:[%s3436 + $0x170] sm:$0xf]
      %v3499 = vld [vmem:[%s3436 + $0x174] sm:$0xff]
      %v3500 = vld [vmem:[%s3436 + $0x17c] sm:$0xf]
      %s3501 = scalar_lea.vmem %s2, 4
      %v3502 = vld [vmem:[%s3501] ss:$8 sm:$0x7]
      %v3504 = vlaneseq
      %v3505 = vshrl.u32 %v3504, 7
      %v3506 = vsub.s32 0, %v3505
      %v3507 = vrot.slane %v3502, %v3506
      %v3508 = vlaneseq
      %v3509 = vshrl.u32 %v3508, 7
      %v3510 = vsub.s32 1, %v3509
      %v3511 = vrot.slane %v3502, %v3510
      %v3512 = vlaneseq
      %v3513 = vshrl.u32 %v3512, 7
      %v3514 = vsub.s32 2, %v3513
      %v3515 = vrot.slane %v3502, %v3514
      %v3583 = vunpack.c.l.b16 %v3437
      %v3584 = vunpack.c.h.b16 %v3437
      %v3585 = vunpack.c.l.b16 %v3438
      %v3586 = vunpack.c.l.b16 %v3439
      %v3587 = vunpack.c.h.b16 %v3439
      %v3588 = vunpack.c.l.b16 %v3440
      %v3589 = vunpack.c.l.b16 %v3441
      %v3590 = vunpack.c.h.b16 %v3441
      %v3591 = vunpack.c.l.b16 %v3442
      %v3592 = vunpack.c.l.b16 %v3443
      %v3593 = vunpack.c.h.b16 %v3443
      %v3594 = vunpack.c.l.b16 %v3444
      %v3595 = vunpack.c.l.b16 %v3445
      %v3596 = vunpack.c.h.b16 %v3445
      %v3597 = vunpack.c.l.b16 %v3446
      %v3598 = vunpack.c.l.b16 %v3447
      %v3599 = vunpack.c.h.b16 %v3447
      %v3600 = vunpack.c.l.b16 %v3448
      %v3601 = vunpack.c.l.b16 %v3449
      %v3602 = vunpack.c.h.b16 %v3449
      %v3603 = vunpack.c.l.b16 %v3450
      %v3604 = vunpack.c.l.b16 %v3451
      %v3605 = vunpack.c.h.b16 %v3451
      %v3606 = vunpack.c.l.b16 %v3452
      %v3607 = vunpack.c.l.b16 %v3453
      %v3608 = vunpack.c.h.b16 %v3453
      %v3609 = vunpack.c.l.b16 %v3454
      %v3610 = vunpack.c.l.b16 %v3455
      %v3611 = vunpack.c.h.b16 %v3455
      %v3612 = vunpack.c.l.b16 %v3456
      %v3613 = vunpack.c.l.b16 %v3457
      %v3614 = vunpack.c.h.b16 %v3457
      %v3615 = vunpack.c.l.b16 %v3458
      %v3616 = vunpack.c.l.b16 %v3459
      %v3617 = vunpack.c.h.b16 %v3459
      %v3618 = vunpack.c.l.b16 %v3460
      %v3619 = vunpack.c.l.b16 %v3461
      %v3620 = vunpack.c.h.b16 %v3461
      %v3621 = vunpack.c.l.b16 %v3462
      %v3622 = vunpack.c.l.b16 %v3463
      %v3623 = vunpack.c.h.b16 %v3463
      %v3624 = vunpack.c.l.b16 %v3464
      %v3625 = vunpack.c.l.b16 %v3465
      %v3626 = vunpack.c.h.b16 %v3465
      %v3627 = vunpack.c.l.b16 %v3466
      %v3628 = vunpack.c.l.b16 %v3467
      %v3629 = vunpack.c.h.b16 %v3467
      %v3630 = vunpack.c.l.b16 %v3468
      %v3631 = vunpack.c.l.b16 %v3469
      %v3632 = vunpack.c.h.b16 %v3469
      %v3633 = vunpack.c.l.b16 %v3470
      %v3634 = vunpack.c.l.b16 %v3471
      %v3635 = vunpack.c.h.b16 %v3471
      %v3636 = vunpack.c.l.b16 %v3472
      %v3637 = vunpack.c.l.b16 %v3473
      %v3638 = vunpack.c.h.b16 %v3473
      %v3639 = vunpack.c.l.b16 %v3474
      %v3640 = vunpack.c.l.b16 %v3475
      %v3641 = vunpack.c.h.b16 %v3475
      %v3642 = vunpack.c.l.b16 %v3476
      %v3643 = vunpack.c.l.b16 %v3477
      %v3644 = vunpack.c.h.b16 %v3477
      %v3645 = vunpack.c.l.b16 %v3478
      %v3646 = vunpack.c.l.b16 %v3479
      %v3647 = vunpack.c.h.b16 %v3479
      %v3648 = vunpack.c.l.b16 %v3480
      %v3649 = vunpack.c.l.b16 %v3481
      %v3650 = vunpack.c.h.b16 %v3481
      %v3651 = vunpack.c.l.b16 %v3482
      %v3652 = vunpack.c.l.b16 %v3483
      %v3653 = vunpack.c.h.b16 %v3483
      %v3654 = vunpack.c.l.b16 %v3484
      %v3655 = vunpack.c.l.b16 %v3485
      %v3656 = vunpack.c.h.b16 %v3485
      %v3657 = vunpack.c.l.b16 %v3486
      %v3658 = vunpack.c.l.b16 %v3487
      %v3659 = vunpack.c.h.b16 %v3487
      %v3660 = vunpack.c.l.b16 %v3488
      %v3661 = vunpack.c.l.b16 %v3489
      %v3662 = vunpack.c.h.b16 %v3489
      %v3663 = vunpack.c.l.b16 %v3490
      %v3664 = vunpack.c.l.b16 %v3491
      %v3665 = vunpack.c.h.b16 %v3491
      %v3666 = vunpack.c.l.b16 %v3492
      %v3667 = vunpack.c.l.b16 %v3493
      %v3668 = vunpack.c.h.b16 %v3493
      %v3669 = vunpack.c.l.b16 %v3494
      %v3670 = vunpack.c.l.b16 %v3495
      %v3671 = vunpack.c.h.b16 %v3495
      %v3672 = vunpack.c.l.b16 %v3496
      %v3673 = vunpack.c.l.b16 %v3497
      %v3674 = vunpack.c.h.b16 %v3497
      %v3675 = vunpack.c.l.b16 %v3498
      %v3676 = vunpack.c.l.b16 %v3499
      %v3677 = vunpack.c.h.b16 %v3499
      %v3678 = vunpack.c.l.b16 %v3500
      %v3679 = vpack.c.b16 %v3586, %v3583
      %v3680 = vpack.c.b16 %v3587, %v3584
      %v3681 = vpack.c.b16 %v3588, %v3585
      %v3682 = vpack.c.b16 %v3592, %v3589
      %v3683 = vpack.c.b16 %v3593, %v3590
      %v3684 = vpack.c.b16 %v3594, %v3591
      %v3685 = vpack.c.b16 %v3598, %v3595
      %v3686 = vpack.c.b16 %v3599, %v3596
      %v3687 = vpack.c.b16 %v3600, %v3597
      %v3688 = vpack.c.b16 %v3604, %v3601
      %v3689 = vpack.c.b16 %v3605, %v3602
      %v3690 = vpack.c.b16 %v3606, %v3603
      %v3691 = vpack.c.b16 %v3610, %v3607
      %v3692 = vpack.c.b16 %v3611, %v3608
      %v3693 = vpack.c.b16 %v3612, %v3609
      %v3694 = vpack.c.b16 %v3616, %v3613
      %v3695 = vpack.c.b16 %v3617, %v3614
      %v3696 = vpack.c.b16 %v3618, %v3615
      %v3697 = vpack.c.b16 %v3622, %v3619
      %v3698 = vpack.c.b16 %v3623, %v3620
      %v3699 = vpack.c.b16 %v3624, %v3621
      %v3700 = vpack.c.b16 %v3628, %v3625
      %v3701 = vpack.c.b16 %v3629, %v3626
      %v3702 = vpack.c.b16 %v3630, %v3627
      %v3703 = vpack.c.b16 %v3634, %v3631
      %v3704 = vpack.c.b16 %v3635, %v3632
      %v3705 = vpack.c.b16 %v3636, %v3633
      %v3706 = vpack.c.b16 %v3640, %v3637
      %v3707 = vpack.c.b16 %v3641, %v3638
      %v3708 = vpack.c.b16 %v3642, %v3639
      %v3709 = vpack.c.b16 %v3646, %v3643
      %v3710 = vpack.c.b16 %v3647, %v3644
      %v3711 = vpack.c.b16 %v3648, %v3645
      %v3712 = vpack.c.b16 %v3652, %v3649
      %v3713 = vpack.c.b16 %v3653, %v3650
      %v3714 = vpack.c.b16 %v3654, %v3651
      %v3715 = vpack.c.b16 %v3658, %v3655
      %v3716 = vpack.c.b16 %v3659, %v3656
      %v3717 = vpack.c.b16 %v3660, %v3657
      %v3718 = vpack.c.b16 %v3664, %v3661
      %v3719 = vpack.c.b16 %v3665, %v3662
      %v3720 = vpack.c.b16 %v3666, %v3663
      %v3721 = vpack.c.b16 %v3670, %v3667
      %v3722 = vpack.c.b16 %v3671, %v3668
      %v3723 = vpack.c.b16 %v3672, %v3669
      %v3724 = vpack.c.b16 %v3676, %v3673
      %v3725 = vpack.c.b16 %v3677, %v3674
      %v3726 = vpack.c.b16 %v3678, %v3675
      %3775 = vmatprep.subr.bf16.mxu0 %v3680
      %3776 = vmatpush1.bf16.msra.mxu0 %v3679
      %3777 = vmatprep.subr.bf16.mxu0 %v3683
      %3778 = vmatpush1.bf16.msra.mxu0 %v3682
      %3779 = vmatprep.subr.bf16.mxu0 %v3686
      %3780 = vmatpush1.bf16.msra.mxu0 %v3685
      %3781 = vmatprep.subr.bf16.mxu0 %v3689
      %3782 = vmatpush1.bf16.msra.mxu0 %v3688
      %3783 = vmatprep.subr.bf16.mxu0 %v3692
      %3784 = vmatpush1.bf16.msra.mxu0 %v3691
      %3785 = vmatprep.subr.bf16.mxu0 %v3695
      %3786 = vmatpush1.bf16.msra.mxu0 %v3694
      %3787 = vmatprep.subr.bf16.mxu0 %v3698
      %3788 = vmatpush1.bf16.msra.mxu0 %v3697
      %3789 = vmatprep.subr.bf16.mxu0 %v3701
      %3790 = vmatpush1.bf16.msra.mxu0 %v3700
      %3791 = vmatprep.subr.bf16.mxu0 %v3704
      %3792 = vmatpush1.bf16.msra.mxu0 %v3703
      %3793 = vmatprep.subr.bf16.mxu0 %v3707
      %3794 = vmatpush1.bf16.msra.mxu0 %v3706
      %3795 = vmatprep.subr.bf16.mxu0 %v3710
      %3796 = vmatpush1.bf16.msra.mxu0 %v3709
      %3797 = vmatprep.subr.bf16.mxu0 %v3713
      %3798 = vmatpush1.bf16.msra.mxu0 %v3712
      %3799 = vmatprep.subr.bf16.mxu0 %v3716
      %3800 = vmatpush1.bf16.msra.mxu0 %v3715
      %3801 = vmatprep.subr.bf16.mxu0 %v3719
      %3802 = vmatpush1.bf16.msra.mxu0 %v3718
      %3803 = vmatprep.subr.bf16.mxu0 %v3722
      %3804 = vmatpush1.bf16.msra.mxu0 %v3721
      %3805 = vmatprep.subr.bf16.mxu0 %v3725
      %3806 = vmatpush1.bf16.msra.mxu0 %v3724
      %3807 = vmatprep.mubr.bf16.mxu0 %v3405
      %3808 = vmatmul.mubr.bf16.gmra.mrb[0].mxu0 %v3404
      %v3809 = vpop.f32.mrb[0].mxu0
      %v3810 = vadd.f32 %v3507, %v3809
      %v3811 = vpop.f32.mrb[0].mxu0
      %v3812 = vadd.f32 %v3511, %v3811
      %v3813 = vpop.f32.mrb[0].mxu0
      %v3814 = vadd.f32 %v3507, %v3813
      %v3815 = vpop.f32.mrb[0].mxu0
      %v3816 = vadd.f32 %v3511, %v3815
      %3817 = vmatprep.mubr.bf16.mxu0 %v3407
      %3818 = vmatmul.mubr.bf16.gmra.mrb[0].mxu0 %v3406
      %v3819 = vpop.f32.mrb[0].mxu0
      %v3820 = vadd.f32 %v3507, %v3819
      %v3821 = vpop.f32.mrb[0].mxu0
      %v3822 = vadd.f32 %v3511, %v3821
      %v3823 = vpop.f32.mrb[0].mxu0
      %v3824 = vadd.f32 %v3507, %v3823
      %v3825 = vpop.f32.mrb[0].mxu0
      %v3826 = vadd.f32 %v3511, %v3825
      %3827 = vmatprep.mubr.bf16.mxu0 %v3409
      %3828 = vmatmul.mubr.bf16.gmra.mrb[0].mxu0 %v3408
      %v3829 = vpop.f32.mrb[0].mxu0
      %v3830 = vadd.f32 %v3507, %v3829
      %v3831 = vpop.f32.mrb[0].mxu0
      %v3832 = vadd.f32 %v3511, %v3831
      %v3833 = vpop.f32.mrb[0].mxu0
      %v3834 = vadd.f32 %v3507, %v3833
      %v3835 = vpop.f32.mrb[0].mxu0
      %v3836 = vadd.f32 %v3511, %v3835
      %3837 = vmatprep.mubr.bf16.mxu0 %v3411
      %3838 = vmatmul.mubr.bf16.gmra.mrb[0].mxu0 %v3410
      %v3839 = vpop.f32.mrb[0].mxu0
      %v3840 = vadd.f32 %v3507, %v3839
      %v3841 = vpop.f32.mrb[0].mxu0
      %v3842 = vadd.f32 %v3511, %v3841
      %v3843 = vpop.f32.mrb[0].mxu0
      %v3844 = vadd.f32 %v3507, %v3843
      %v3845 = vpop.f32.mrb[0].mxu0
      %v3846 = vadd.f32 %v3511, %v3845
      %3847 = vmatprep.mubr.bf16.mxu0 %v3413
      %3848 = vmatmul.mubr.bf16.gmra.mrb[0].mxu0 %v3412
      %v3849 = vpop.f32.mrb[0].mxu0
      %v3850 = vadd.f32 %v3507, %v3849
      %v3851 = vpop.f32.mrb[0].mxu0
      %v3852 = vadd.f32 %v3511, %v3851
      %v3853 = vpop.f32.mrb[0].mxu0
      %v3854 = vadd.f32 %v3507, %v3853
      %v3855 = vpop.f32.mrb[0].mxu0
      %v3856 = vadd.f32 %v3511, %v3855
      %3857 = vmatprep.mubr.bf16.mxu0 %v3415
      %3858 = vmatmul.mubr.bf16.gmra.mrb[0].mxu0 %v3414
      %v3859 = vpop.f32.mrb[0].mxu0
      %v3860 = vadd.f32 %v3507, %v3859
      %v3861 = vpop.f32.mrb[0].mxu0
      %v3862 = vadd.f32 %v3511, %v3861
      %v3863 = vpop.f32.mrb[0].mxu0
      %v3864 = vadd.f32 %v3507, %v3863
      %v3865 = vpop.f32.mrb[0].mxu0
      %v3866 = vadd.f32 %v3511, %v3865
      %3867 = vmatprep.mubr.bf16.mxu0 %v3417
      %3868 = vmatmul.mubr.bf16.gmra.mrb[0].mxu0 %v3416
      %v3869 = vpop.f32.mrb[0].mxu0
      %v3870 = vadd.f32 %v3507, %v3869
      %v3871 = vpop.f32.mrb[0].mxu0
      %v3872 = vadd.f32 %v3511, %v3871
      %v3873 = vpop.f32.mrb[0].mxu0
      %v3874 = vadd.f32 %v3507, %v3873
      %v3875 = vpop.f32.mrb[0].mxu0
      %v3876 = vadd.f32 %v3511, %v3875
      %3877 = vmatprep.mubr.bf16.mxu0 %v3419
      %3878 = vmatmul.mubr.bf16.gmra.mrb[0].mxu0 %v3418
      %v3879 = vpop.f32.mrb[0].mxu0
      %v3880 = vadd.f32 %v3507, %v3879
      %v3881 = vpop.f32.mrb[0].mxu0
      %v3882 = vadd.f32 %v3511, %v3881
      %v3883 = vpop.f32.mrb[0].mxu0
      %v3884 = vadd.f32 %v3507, %v3883
      %v3885 = vpop.f32.mrb[0].mxu0
      %v3886 = vadd.f32 %v3511, %v3885
      %3887 = vmatprep.mubr.bf16.mxu0 %v3421
      %3888 = vmatmul.mubr.bf16.gmra.mrb[0].mxu0 %v3420
      %v3889 = vpop.f32.mrb[0].mxu0
      %v3890 = vadd.f32 %v3507, %v3889
      %v3891 = vpop.f32.mrb[0].mxu0
      %v3892 = vadd.f32 %v3511, %v3891
      %v3893 = vpop.f32.mrb[0].mxu0
      %v3894 = vadd.f32 %v3507, %v3893
      %v3895 = vpop.f32.mrb[0].mxu0
      %v3896 = vadd.f32 %v3511, %v3895
      %3897 = vmatprep.mubr.bf16.mxu0 %v3423
      %3898 = vmatmul.mubr.bf16.gmra.mrb[0].mxu0 %v3422
      %v3899 = vpop.f32.mrb[0].mxu0
      %v3900 = vadd.f32 %v3507, %v3899
      %v3901 = vpop.f32.mrb[0].mxu0
      %v3902 = vadd.f32 %v3511, %v3901
      %v3903 = vpop.f32.mrb[0].mxu0
      %v3904 = vadd.f32 %v3507, %v3903
      %v3905 = vpop.f32.mrb[0].mxu0
      %v3906 = vadd.f32 %v3511, %v3905
      %3907 = vmatprep.mubr.bf16.mxu0 %v3425
      %3908 = vmatmul.mubr.bf16.gmra.mrb[0].mxu0 %v3424
      %v3909 = vpop.f32.mrb[0].mxu0
      %v3910 = vadd.f32 %v3507, %v3909
      %v3911 = vpop.f32.mrb[0].mxu0
      %v3912 = vadd.f32 %v3511, %v3911
      %v3913 = vpop.f32.mrb[0].mxu0
      %v3914 = vadd.f32 %v3507, %v3913
      %v3915 = vpop.f32.mrb[0].mxu0
      %v3916 = vadd.f32 %v3511, %v3915
      %3917 = vmatprep.mubr.bf16.mxu0 %v3427
      %3918 = vmatmul.mubr.bf16.gmra.mrb[0].mxu0 %v3426
      %v3919 = vpop.f32.mrb[0].mxu0
      %v3920 = vadd.f32 %v3507, %v3919
      %v3921 = vpop.f32.mrb[0].mxu0
      %v3922 = vadd.f32 %v3511, %v3921
      %v3923 = vpop.f32.mrb[0].mxu0
      %v3924 = vadd.f32 %v3507, %v3923
      %v3925 = vpop.f32.mrb[0].mxu0
      %v3926 = vadd.f32 %v3511, %v3925
      %3927 = vmatprep.mubr.bf16.mxu0 %v3429
      %3928 = vmatmul.mubr.bf16.gmra.mrb[0].mxu0 %v3428
      %v3929 = vpop.f32.mrb[0].mxu0
      %v3930 = vadd.f32 %v3507, %v3929
      %v3931 = vpop.f32.mrb[0].mxu0
      %v3932 = vadd.f32 %v3511, %v3931
      %v3933 = vpop.f32.mrb[0].mxu0
      %v3934 = vadd.f32 %v3507, %v3933
      %v3935 = vpop.f32.mrb[0].mxu0
      %v3936 = vadd.f32 %v3511, %v3935
      %3937 = vmatprep.mubr.bf16.mxu0 %v3431
      %3938 = vmatmul.mubr.bf16.gmra.mrb[0].mxu0 %v3430
      %v3939 = vpop.f32.mrb[0].mxu0
      %v3940 = vadd.f32 %v3507, %v3939
      %v3941 = vpop.f32.mrb[0].mxu0
      %v3942 = vadd.f32 %v3511, %v3941
      %v3943 = vpop.f32.mrb[0].mxu0
      %v3944 = vadd.f32 %v3507, %v3943
      %v3945 = vpop.f32.mrb[0].mxu0
      %v3946 = vadd.f32 %v3511, %v3945
      %3947 = vmatprep.mubr.bf16.mxu0 %v3433
      %3948 = vmatmul.mubr.bf16.gmra.mrb[0].mxu0 %v3432
      %v3949 = vpop.f32.mrb[0].mxu0
      %v3950 = vadd.f32 %v3507, %v3949
      %v3951 = vpop.f32.mrb[0].mxu0
      %v3952 = vadd.f32 %v3511, %v3951
      %v3953 = vpop.f32.mrb[0].mxu0
      %v3954 = vadd.f32 %v3507, %v3953
      %v3955 = vpop.f32.mrb[0].mxu0
      %v3956 = vadd.f32 %v3511, %v3955
      %3957 = vmatprep.mubr.bf16.mxu0 %v3435
      %3958 = vmatmul.mubr.bf16.gmra.mrb[0].mxu0 %v3434
      %v3959 = vpop.f32.mrb[0].mxu0
      %v3960 = vadd.f32 %v3507, %v3959
      %v3961 = vpop.f32.mrb[0].mxu0
      %v3962 = vadd.f32 %v3511, %v3961
      %v3963 = vpop.f32.mrb[0].mxu0
      %v3964 = vadd.f32 %v3507, %v3963
      %v3965 = vpop.f32.mrb[0].mxu0
      %v3966 = vadd.f32 %v3511, %v3965
      %3967 = vdwg.mxu0
      %3968 = vmatprep.subr.bf16.mxu0 0
      %3969 = vmatpush1.bf16.msra.mxu0 %v3681
      %3970 = vmatprep.subr.bf16.mxu0 0
      %3971 = vmatpush1.bf16.msra.mxu0 %v3684
      %3972 = vmatprep.subr.bf16.mxu0 0
      %3973 = vmatpush1.bf16.msra.mxu0 %v3687
      %3974 = vmatprep.subr.bf16.mxu0 0
      %3975 = vmatpush1.bf16.msra.mxu0 %v3690
      %3976 = vmatprep.subr.bf16.mxu0 0
      %3977 = vmatpush1.bf16.msra.mxu0 %v3693
      %3978 = vmatprep.subr.bf16.mxu0 0
      %3979 = vmatpush1.bf16.msra.mxu0 %v3696
      %3980 = vmatprep.subr.bf16.mxu0 0
      %3981 = vmatpush1.bf16.msra.mxu0 %v3699
      %3982 = vmatprep.subr.bf16.mxu0 0
      %3983 = vmatpush1.bf16.msra.mxu0 %v3702
      %3984 = vmatprep.subr.bf16.mxu0 0
      %3985 = vmatpush1.bf16.msra.mxu0 %v3705
      %3986 = vmatprep.subr.bf16.mxu0 0
      %3987 = vmatpush1.bf16.msra.mxu0 %v3708
      %3988 = vmatprep.subr.bf16.mxu0 0
      %3989 = vmatpush1.bf16.msra.mxu0 %v3711
      %3990 = vmatprep.subr.bf16.mxu0 0
      %3991 = vmatpush1.bf16.msra.mxu0 %v3714
      %3992 = vmatprep.subr.bf16.mxu0 0
      %3993 = vmatpush1.bf16.msra.mxu0 %v3717
      %3994 = vmatprep.subr.bf16.mxu0 0
      %3995 = vmatpush1.bf16.msra.mxu0 %v3720
      %3996 = vmatprep.subr.bf16.mxu0 0
      %3997 = vmatpush1.bf16.msra.mxu0 %v3723
      %3998 = vmatprep.subr.bf16.mxu0 0
      %3999 = vmatpush1.bf16.msra.mxu0 %v3726
      %4000 = vmatprep.mubr.bf16.mxu0 %v3405
      %4001 = vmatmul.mubr.bf16.gmra.mrb[0].mxu0 %v3404
      %v4002 = vpop.f32.mrb[0].mxu0
      %v4003 = vadd.f32 %v3515, %v4002
      %v4004 = vpop.f32.mrb[0].mxu0
      %v4005 = vpop.f32.mrb[0].mxu0
      %v4006 = vadd.f32 %v3515, %v4005
      %v4007 = vpop.f32.mrb[0].mxu0
      %4008 = vmatprep.mubr.bf16.mxu0 %v3407
      %4009 = vmatmul.mubr.bf16.gmra.mrb[0].mxu0 %v3406
      %v4010 = vpop.f32.mrb[0].mxu0
      %v4011 = vadd.f32 %v3515, %v4010
      %v4012 = vpop.f32.mrb[0].mxu0
      %v4013 = vpop.f32.mrb[0].mxu0
      %v4014 = vadd.f32 %v3515, %v4013
      %v4015 = vpop.f32.mrb[0].mxu0
      %4016 = vmatprep.mubr.bf16.mxu0 %v3409
      %4017 = vmatmul.mubr.bf16.gmra.mrb[0].mxu0 %v3408
      %v4018 = vpop.f32.mrb[0].mxu0
      %v4019 = vadd.f32 %v3515, %v4018
      %v4020 = vpop.f32.mrb[0].mxu0
      %v4021 = vpop.f32.mrb[0].mxu0
      %v4022 = vadd.f32 %v3515, %v4021
      %v4023 = vpop.f32.mrb[0].mxu0
      %4024 = vmatprep.mubr.bf16.mxu0 %v3411
      %4025 = vmatmul.mubr.bf16.gmra.mrb[0].mxu0 %v3410
      %v4026 = vpop.f32.mrb[0].mxu0
      %v4027 = vadd.f32 %v3515, %v4026
      %v4028 = vpop.f32.mrb[0].mxu0
      %v4029 = vpop.f32.mrb[0].mxu0
      %v4030 = vadd.f32 %v3515, %v4029
      %v4031 = vpop.f32.mrb[0].mxu0
      %4032 = vmatprep.mubr.bf16.mxu0 %v3413
      %4033 = vmatmul.mubr.bf16.gmra.mrb[0].mxu0 %v3412
      %v4034 = vpop.f32.mrb[0].mxu0
      %v4035 = vadd.f32 %v3515, %v4034
      %v4036 = vpop.f32.mrb[0].mxu0
      %v4037 = vpop.f32.mrb[0].mxu0
      %v4038 = vadd.f32 %v3515, %v4037
      %v4039 = vpop.f32.mrb[0].mxu0
      %4040 = vmatprep.mubr.bf16.mxu0 %v3415
      %4041 = vmatmul.mubr.bf16.gmra.mrb[0].mxu0 %v3414
      %v4042 = vpop.f32.mrb[0].mxu0
      %v4043 = vadd.f32 %v3515, %v4042
      %v4044 = vpop.f32.mrb[0].mxu0
      %v4045 = vpop.f32.mrb[0].mxu0
      %v4046 = vadd.f32 %v3515, %v4045
      %v4047 = vpop.f32.mrb[0].mxu0
      %4048 = vmatprep.mubr.bf16.mxu0 %v3417
      %4049 = vmatmul.mubr.bf16.gmra.mrb[0].mxu0 %v3416
      %v4050 = vpop.f32.mrb[0].mxu0
      %v4051 = vadd.f32 %v3515, %v4050
      %v4052 = vpop.f32.mrb[0].mxu0
      %v4053 = vpop.f32.mrb[0].mxu0
      %v4054 = vadd.f32 %v3515, %v4053
      %v4055 = vpop.f32.mrb[0].mxu0
      %4056 = vmatprep.mubr.bf16.mxu0 %v3419
      %4057 = vmatmul.mubr.bf16.gmra.mrb[0].mxu0 %v3418
      %v4058 = vpop.f32.mrb[0].mxu0
      %v4059 = vadd.f32 %v3515, %v4058
      %v4060 = vpop.f32.mrb[0].mxu0
      %v4061 = vpop.f32.mrb[0].mxu0
      %v4062 = vadd.f32 %v3515, %v4061
      %v4063 = vpop.f32.mrb[0].mxu0
      %4064 = vmatprep.mubr.bf16.mxu0 %v3421
      %4065 = vmatmul.mubr.bf16.gmra.mrb[0].mxu0 %v3420
      %v4066 = vpop.f32.mrb[0].mxu0
      %v4067 = vadd.f32 %v3515, %v4066
      %v4068 = vpop.f32.mrb[0].mxu0
      %v4069 = vpop.f32.mrb[0].mxu0
      %v4070 = vadd.f32 %v3515, %v4069
      %v4071 = vpop.f32.mrb[0].mxu0
      %4072 = vmatprep.mubr.bf16.mxu0 %v3423
      %4073 = vmatmul.mubr.bf16.gmra.mrb[0].mxu0 %v3422
      %v4074 = vpop.f32.mrb[0].mxu0
      %v4075 = vadd.f32 %v3515, %v4074
      %v4076 = vpop.f32.mrb[0].mxu0
      %v4077 = vpop.f32.mrb[0].mxu0
      %v4078 = vadd.f32 %v3515, %v4077
      %v4079 = vpop.f32.mrb[0].mxu0
      %4080 = vmatprep.mubr.bf16.mxu0 %v3425
      %4081 = vmatmul.mubr.bf16.gmra.mrb[0].mxu0 %v3424
      %v4082 = vpop.f32.mrb[0].mxu0
      %v4083 = vadd.f32 %v3515, %v4082
      %v4084 = vpop.f32.mrb[0].mxu0
      %v4085 = vpop.f32.mrb[0].mxu0
      %v4086 = vadd.f32 %v3515, %v4085
      %v4087 = vpop.f32.mrb[0].mxu0
      %4088 = vmatprep.mubr.bf16.mxu0 %v3427
      %4089 = vmatmul.mubr.bf16.gmra.mrb[0].mxu0 %v3426
      %v4090 = vpop.f32.mrb[0].mxu0
      %v4091 = vadd.f32 %v3515, %v4090
      %v4092 = vpop.f32.mrb[0].mxu0
      %v4093 = vpop.f32.mrb[0].mxu0
      %v4094 = vadd.f32 %v3515, %v4093
      %v4095 = vpop.f32.mrb[0].mxu0
      %4096 = vmatprep.mubr.bf16.mxu0 %v3429
      %4097 = vmatmul.mubr.bf16.gmra.mrb[0].mxu0 %v3428
      %v4098 = vpop.f32.mrb[0].mxu0
      %v4099 = vadd.f32 %v3515, %v4098
      %v4100 = vpop.f32.mrb[0].mxu0
      %v4101 = vpop.f32.mrb[0].mxu0
      %v4102 = vadd.f32 %v3515, %v4101
      %v4103 = vpop.f32.mrb[0].mxu0
      %4104 = vmatprep.mubr.bf16.mxu0 %v3431
      %4105 = vmatmul.mubr.bf16.gmra.mrb[0].mxu0 %v3430
      %v4106 = vpop.f32.mrb[0].mxu0
      %v4107 = vadd.f32 %v3515, %v4106
      %v4108 = vpop.f32.mrb[0].mxu0
      %v4109 = vpop.f32.mrb[0].mxu0
      %v4110 = vadd.f32 %v3515, %v4109
      %v4111 = vpop.f32.mrb[0].mxu0
      %4112 = vmatprep.mubr.bf16.mxu0 %v3433
      %4113 = vmatmul.mubr.bf16.gmra.mrb[0].mxu0 %v3432
      %v4114 = vpop.f32.mrb[0].mxu0
      %v4115 = vadd.f32 %v3515, %v4114
      %v4116 = vpop.f32.mrb[0].mxu0
      %v4117 = vpop.f32.mrb[0].mxu0
      %v4118 = vadd.f32 %v3515, %v4117
      %v4119 = vpop.f32.mrb[0].mxu0
      %4120 = vmatprep.mubr.bf16.mxu0 %v3435
      %4121 = vmatmul.mubr.bf16.gmra.mrb[0].mxu0 %v3434
      %v4122 = vpop.f32.mrb[0].mxu0
      %v4123 = vadd.f32 %v3515, %v4122
      %v4124 = vpop.f32.mrb[0].mxu0
      %v4125 = vpop.f32.mrb[0].mxu0
      %v4126 = vadd.f32 %v3515, %v4125
      %v4127 = vpop.f32.mrb[0].mxu0
      %4128 = vdwg.mxu0
      %v4129 = vpack.c.bf16 %v3814, %v3810
      %v4130 = vpack.c.bf16 %v3816, %v3812
      %v4131 = vpack.c.bf16 %v4006, %v4003
      %v4132 = vpack.c.bf16 %v3824, %v3820
      %v4133 = vpack.c.bf16 %v3826, %v3822
      %v4134 = vpack.c.bf16 %v4014, %v4011
      %v4135 = vpack.c.bf16 %v3834, %v3830
      %v4136 = vpack.c.bf16 %v3836, %v3832
      %v4137 = vpack.c.bf16 %v4022, %v4019
      %v4138 = vpack.c.bf16 %v3844, %v3840
      %v4139 = vpack.c.bf16 %v3846, %v3842
      %v4140 = vpack.c.bf16 %v4030, %v4027
      %v4141 = vpack.c.bf16 %v3854, %v3850
      %v4142 = vpack.c.bf16 %v3856, %v3852
      %v4143 = vpack.c.bf16 %v4038, %v4035
      %v4144 = vpack.c.bf16 %v3864, %v3860
      %v4145 = vpack.c.bf16 %v3866, %v3862
      %v4146 = vpack.c.bf16 %v4046, %v4043
      %v4147 = vpack.c.bf16 %v3874, %v3870
      %v4148 = vpack.c.bf16 %v3876, %v3872
      %v4149 = vpack.c.bf16 %v4054, %v4051
      %v4150 = vpack.c.bf16 %v3884, %v3880
      %v4151 = vpack.c.bf16 %v3886, %v3882
      %v4152 = vpack.c.bf16 %v4062, %v4059
      %v4153 = vpack.c.bf16 %v3894, %v3890
      %v4154 = vpack.c.bf16 %v3896, %v3892
      %v4155 = vpack.c.bf16 %v4070, %v4067
      %v4156 = vpack.c.bf16 %v3904, %v3900
      %v4157 = vpack.c.bf16 %v3906, %v3902
      %v4158 = vpack.c.bf16 %v4078, %v4075
      %v4159 = vpack.c.bf16 %v3914, %v3910
      %v4160 = vpack.c.bf16 %v3916, %v3912
      %v4161 = vpack.c.bf16 %v4086, %v4083
      %v4162 = vpack.c.bf16 %v3924, %v3920
      %v4163 = vpack.c.bf16 %v3926, %v3922
      %v4164 = vpack.c.bf16 %v4094, %v4091
      %v4165 = vpack.c.bf16 %v3934, %v3930
      %v4166 = vpack.c.bf16 %v3936, %v3932
      %v4167 = vpack.c.bf16 %v4102, %v4099
      %v4168 = vpack.c.bf16 %v3944, %v3940
      %v4169 = vpack.c.bf16 %v3946, %v3942
      %v4170 = vpack.c.bf16 %v4110, %v4107
      %v4171 = vpack.c.bf16 %v3954, %v3950
      %v4172 = vpack.c.bf16 %v3956, %v3952
      %v4173 = vpack.c.bf16 %v4118, %v4115
      %v4174 = vpack.c.bf16 %v3964, %v3960
      %v4175 = vpack.c.bf16 %v3966, %v3962
      %v4176 = vpack.c.bf16 %v4126, %v4123
      %v4225 = vunpack.c.l.b16 %v4129
      %v4226 = vunpack.c.l.b16 %v4130
      %v4227 = vunpack.c.l.b16 %v4131
      %v4228 = vunpack.c.h.b16 %v4129
      %v4229 = vunpack.c.h.b16 %v4130
      %v4230 = vunpack.c.h.b16 %v4131
      %v4231 = vunpack.c.l.b16 %v4132
      %v4232 = vunpack.c.l.b16 %v4133
      %v4233 = vunpack.c.l.b16 %v4134
      %v4234 = vunpack.c.h.b16 %v4132
      %v4235 = vunpack.c.h.b16 %v4133
      %v4236 = vunpack.c.h.b16 %v4134
      %v4237 = vunpack.c.l.b16 %v4135
      %v4238 = vunpack.c.l.b16 %v4136
      %v4239 = vunpack.c.l.b16 %v4137
      %v4240 = vunpack.c.h.b16 %v4135
      %v4241 = vunpack.c.h.b16 %v4136
      %v4242 = vunpack.c.h.b16 %v4137
      %v4243 = vunpack.c.l.b16 %v4138
      %v4244 = vunpack.c.l.b16 %v4139
      %v4245 = vunpack.c.l.b16 %v4140
      %v4246 = vunpack.c.h.b16 %v4138
      %v4247 = vunpack.c.h.b16 %v4139
      %v4248 = vunpack.c.h.b16 %v4140
      %v4249 = vunpack.c.l.b16 %v4141
      %v4250 = vunpack.c.l.b16 %v4142
      %v4251 = vunpack.c.l.b16 %v4143
      %v4252 = vunpack.c.h.b16 %v4141
      %v4253 = vunpack.c.h.b16 %v4142
      %v4254 = vunpack.c.h.b16 %v4143
      %v4255 = vunpack.c.l.b16 %v4144
      %v4256 = vunpack.c.l.b16 %v4145
      %v4257 = vunpack.c.l.b16 %v4146
      %v4258 = vunpack.c.h.b16 %v4144
      %v4259 = vunpack.c.h.b16 %v4145
      %v4260 = vunpack.c.h.b16 %v4146
      %v4261 = vunpack.c.l.b16 %v4147
      %v4262 = vunpack.c.l.b16 %v4148
      %v4263 = vunpack.c.l.b16 %v4149
      %v4264 = vunpack.c.h.b16 %v4147
      %v4265 = vunpack.c.h.b16 %v4148
      %v4266 = vunpack.c.h.b16 %v4149
      %v4267 = vunpack.c.l.b16 %v4150
      %v4268 = vunpack.c.l.b16 %v4151
      %v4269 = vunpack.c.l.b16 %v4152
      %v4270 = vunpack.c.h.b16 %v4150
      %v4271 = vunpack.c.h.b16 %v4151
      %v4272 = vunpack.c.h.b16 %v4152
      %v4273 = vunpack.c.l.b16 %v4153
      %v4274 = vunpack.c.l.b16 %v4154
      %v4275 = vunpack.c.l.b16 %v4155
      %v4276 = vunpack.c.h.b16 %v4153
      %v4277 = vunpack.c.h.b16 %v4154
      %v4278 = vunpack.c.h.b16 %v4155
      %v4279 = vunpack.c.l.b16 %v4156
      %v4280 = vunpack.c.l.b16 %v4157
      %v4281 = vunpack.c.l.b16 %v4158
      %v4282 = vunpack.c.h.b16 %v4156
      %v4283 = vunpack.c.h.b16 %v4157
      %v4284 = vunpack.c.h.b16 %v4158
      %v4285 = vunpack.c.l.b16 %v4159
      %v4286 = vunpack.c.l.b16 %v4160
      %v4287 = vunpack.c.l.b16 %v4161
      %v4288 = vunpack.c.h.b16 %v4159
      %v4289 = vunpack.c.h.b16 %v4160
      %v4290 = vunpack.c.h.b16 %v4161
      %v4291 = vunpack.c.l.b16 %v4162
      %v4292 = vunpack.c.l.b16 %v4163
      %v4293 = vunpack.c.l.b16 %v4164
      %v4294 = vunpack.c.h.b16 %v4162
      %v4295 = vunpack.c.h.b16 %v4163
      %v4296 = vunpack.c.h.b16 %v4164
      %v4297 = vunpack.c.l.b16 %v4165
      %v4298 = vunpack.c.l.b16 %v4166
      %v4299 = vunpack.c.l.b16 %v4167
      %v4300 = vunpack.c.h.b16 %v4165
      %v4301 = vunpack.c.h.b16 %v4166
      %v4302 = vunpack.c.h.b16 %v4167
      %v4303 = vunpack.c.l.b16 %v4168
      %v4304 = vunpack.c.l.b16 %v4169
      %v4305 = vunpack.c.l.b16 %v4170
      %v4306 = vunpack.c.h.b16 %v4168
      %v4307 = vunpack.c.h.b16 %v4169
      %v4308 = vunpack.c.h.b16 %v4170
      %v4309 = vunpack.c.l.b16 %v4171
      %v4310 = vunpack.c.l.b16 %v4172
      %v4311 = vunpack.c.l.b16 %v4173
      %v4312 = vunpack.c.h.b16 %v4171
      %v4313 = vunpack.c.h.b16 %v4172
      %v4314 = vunpack.c.h.b16 %v4173
      %v4315 = vunpack.c.l.b16 %v4174
      %v4316 = vunpack.c.l.b16 %v4175
      %v4317 = vunpack.c.l.b16 %v4176
      %v4318 = vunpack.c.h.b16 %v4174
      %v4319 = vunpack.c.h.b16 %v4175
      %v4320 = vunpack.c.h.b16 %v4176
      %v4321 = vpack.c.b16 %v4226, %v4225
      %v4322 = vpack.c.b16 %v4227, %v4227
      %v4323 = vpack.c.b16 %v4229, %v4228
      %v4324 = vpack.c.b16 %v4230, %v4230
      %v4325 = vpack.c.b16 %v4232, %v4231
      %v4326 = vpack.c.b16 %v4233, %v4233
      %v4327 = vpack.c.b16 %v4235, %v4234
      %v4328 = vpack.c.b16 %v4236, %v4236
      %v4329 = vpack.c.b16 %v4238, %v4237
      %v4330 = vpack.c.b16 %v4239, %v4239
      %v4331 = vpack.c.b16 %v4241, %v4240
      %v4332 = vpack.c.b16 %v4242, %v4242
      %v4333 = vpack.c.b16 %v4244, %v4243
      %v4334 = vpack.c.b16 %v4245, %v4245
      %v4335 = vpack.c.b16 %v4247, %v4246
      %v4336 = vpack.c.b16 %v4248, %v4248
      %v4337 = vpack.c.b16 %v4250, %v4249
      %v4338 = vpack.c.b16 %v4251, %v4251
      %v4339 = vpack.c.b16 %v4253, %v4252
      %v4340 = vpack.c.b16 %v4254, %v4254
      %v4341 = vpack.c.b16 %v4256, %v4255
      %v4342 = vpack.c.b16 %v4257, %v4257
      %v4343 = vpack.c.b16 %v4259, %v4258
      %v4344 = vpack.c.b16 %v4260, %v4260
      %v4345 = vpack.c.b16 %v4262, %v4261
      %v4346 = vpack.c.b16 %v4263, %v4263
      %v4347 = vpack.c.b16 %v4265, %v4264
      %v4348 = vpack.c.b16 %v4266, %v4266
      %v4349 = vpack.c.b16 %v4268, %v4267
      %v4350 = vpack.c.b16 %v4269, %v4269
      %v4351 = vpack.c.b16 %v4271, %v4270
      %v4352 = vpack.c.b16 %v4272, %v4272
      %v4353 = vpack.c.b16 %v4274, %v4273
      %v4354 = vpack.c.b16 %v4275, %v4275
      %v4355 = vpack.c.b16 %v4277, %v4276
      %v4356 = vpack.c.b16 %v4278, %v4278
      %v4357 = vpack.c.b16 %v4280, %v4279
      %v4358 = vpack.c.b16 %v4281, %v4281
      %v4359 = vpack.c.b16 %v4283, %v4282
      %v4360 = vpack.c.b16 %v4284, %v4284
      %v4361 = vpack.c.b16 %v4286, %v4285
      %v4362 = vpack.c.b16 %v4287, %v4287
      %v4363 = vpack.c.b16 %v4289, %v4288
      %v4364 = vpack.c.b16 %v4290, %v4290
      %v4365 = vpack.c.b16 %v4292, %v4291
      %v4366 = vpack.c.b16 %v4293, %v4293
      %v4367 = vpack.c.b16 %v4295, %v4294
      %v4368 = vpack.c.b16 %v4296, %v4296
      %v4369 = vpack.c.b16 %v4298, %v4297
      %v4370 = vpack.c.b16 %v4299, %v4299
      %v4371 = vpack.c.b16 %v4301, %v4300
      %v4372 = vpack.c.b16 %v4302, %v4302
      %v4373 = vpack.c.b16 %v4304, %v4303
      %v4374 = vpack.c.b16 %v4305, %v4305
      %v4375 = vpack.c.b16 %v4307, %v4306
      %v4376 = vpack.c.b16 %v4308, %v4308
      %v4377 = vpack.c.b16 %v4310, %v4309
      %v4378 = vpack.c.b16 %v4311, %v4311
      %v4379 = vpack.c.b16 %v4313, %v4312
      %v4380 = vpack.c.b16 %v4314, %v4314
      %v4381 = vpack.c.b16 %v4316, %v4315
      %v4382 = vpack.c.b16 %v4317, %v4317
      %v4383 = vpack.c.b16 %v4319, %v4318
      %v4384 = vpack.c.b16 %v4320, %v4320
      %4449 = vst [vmem:[%s212] sm:$0xff] %v4321
      %vm4450 = vcmask 60416
      %4451 = vst.msk [vmem:[%s212 + $0x8] sm:$0xf] %vm4450, %v4322
      %4452 = vst [vmem:[%s212 + $0xc] sm:$0xff] %v4323
      %4453 = vst.msk [vmem:[%s212 + $0x14] sm:$0xf] %vm4450, %v4324
      %4454 = vst [vmem:[%s212 + $0x18] sm:$0xff] %v4325
      %4455 = vst.msk [vmem:[%s212 + $0x20] sm:$0xf] %vm4450, %v4326
      %4456 = vst [vmem:[%s212 + $0x24] sm:$0xff] %v4327
      %4457 = vst.msk [vmem:[%s212 + $0x2c] sm:$0xf] %vm4450, %v4328
      %4458 = vst [vmem:[%s212 + $0x30] sm:$0xff] %v4329
      %4459 = vst.msk [vmem:[%s212 + $0x38] sm:$0xf] %vm4450, %v4330
      %4460 = vst [vmem:[%s212 + $0x3c] sm:$0xff] %v4331
      %4461 = vst.msk [vmem:[%s212 + $0x44] sm:$0xf] %vm4450, %v4332
      %4462 = vst [vmem:[%s212 + $0x48] sm:$0xff] %v4333
      %4463 = vst.msk [vmem:[%s212 + $0x50] sm:$0xf] %vm4450, %v4334
      %4464 = vst [vmem:[%s212 + $0x54] sm:$0xff] %v4335
      %4465 = vst.msk [vmem:[%s212 + $0x5c] sm:$0xf] %vm4450, %v4336
      %4466 = vst [vmem:[%s212 + $0x60] sm:$0xff] %v4337
      %4467 = vst.msk [vmem:[%s212 + $0x68] sm:$0xf] %vm4450, %v4338
      %4468 = vst [vmem:[%s212 + $0x6c] sm:$0xff] %v4339
      %4469 = vst.msk [vmem:[%s212 + $0x74] sm:$0xf] %vm4450, %v4340
      %4470 = vst [vmem:[%s212 + $0x78] sm:$0xff] %v4341
      %4471 = vst.msk [vmem:[%s212 + $0x80] sm:$0xf] %vm4450, %v4342
      %4472 = vst [vmem:[%s212 + $0x84] sm:$0xff] %v4343
      %4473 = vst.msk [vmem:[%s212 + $0x8c] sm:$0xf] %vm4450, %v4344
      %4474 = vst [vmem:[%s212 + $0x90] sm:$0xff] %v4345
      %4475 = vst.msk [vmem:[%s212 + $0x98] sm:$0xf] %vm4450, %v4346
      %4476 = vst [vmem:[%s212 + $0x9c] sm:$0xff] %v4347
      %4477 = vst.msk [vmem:[%s212 + $0xa4] sm:$0xf] %vm4450, %v4348
      %4478 = vst [vmem:[%s212 + $0xa8] sm:$0xff] %v4349
      %4479 = vst.msk [vmem:[%s212 + $0xb0] sm:$0xf] %vm4450, %v4350
      %4480 = vst [vmem:[%s212 + $0xb4] sm:$0xff] %v4351
      %4481 = vst.msk [vmem:[%s212 + $0xbc] sm:$0xf] %vm4450, %v4352
      %4482 = vst [vmem:[%s212 + $0xc0] sm:$0xff] %v4353
      %4483 = vst.msk [vmem:[%s212 + $0xc8] sm:$0xf] %vm4450, %v4354
      %4484 = vst [vmem:[%s212 + $0xcc] sm:$0xff] %v4355
      %4485 = vst.msk [vmem:[%s212 + $0xd4] sm:$0xf] %vm4450, %v4356
      %4486 = vst [vmem:[%s212 + $0xd8] sm:$0xff] %v4357
      %4487 = vst.msk [vmem:[%s212 + $0xe0] sm:$0xf] %vm4450, %v4358
      %4488 = vst [vmem:[%s212 + $0xe4] sm:$0xff] %v4359
      %4489 = vst.msk [vmem:[%s212 + $0xec] sm:$0xf] %vm4450, %v4360
      %4490 = vst [vmem:[%s212 + $0xf0] sm:$0xff] %v4361
      %4491 = vst.msk [vmem:[%s212 + $0xf8] sm:$0xf] %vm4450, %v4362
      %4492 = vst [vmem:[%s212 + $0xfc] sm:$0xff] %v4363
      %4493 = vst.msk [vmem:[%s212 + $0x104] sm:$0xf] %vm4450, %v4364
      %4494 = vst [vmem:[%s212 + $0x108] sm:$0xff] %v4365
      %4495 = vst.msk [vmem:[%s212 + $0x110] sm:$0xf] %vm4450, %v4366
      %4496 = vst [vmem:[%s212 + $0x114] sm:$0xff] %v4367
      %4497 = vst.msk [vmem:[%s212 + $0x11c] sm:$0xf] %vm4450, %v4368
      %4498 = vst [vmem:[%s212 + $0x120] sm:$0xff] %v4369
      %4499 = vst.msk [vmem:[%s212 + $0x128] sm:$0xf] %vm4450, %v4370
      %4500 = vst [vmem:[%s212 + $0x12c] sm:$0xff] %v4371
      %4501 = vst.msk [vmem:[%s212 + $0x134] sm:$0xf] %vm4450, %v4372
      %4502 = vst [vmem:[%s212 + $0x138] sm:$0xff] %v4373
      %4503 = vst.msk [vmem:[%s212 + $0x140] sm:$0xf] %vm4450, %v4374
      %4504 = vst [vmem:[%s212 + $0x144] sm:$0xff] %v4375
      %4505 = vst.msk [vmem:[%s212 + $0x14c] sm:$0xf] %vm4450, %v4376
      %4506 = vst [vmem:[%s212 + $0x150] sm:$0xff] %v4377
      %4507 = vst.msk [vmem:[%s212 + $0x158] sm:$0xf] %vm4450, %v4378
      %4508 = vst [vmem:[%s212 + $0x15c] sm:$0xff] %v4379
      %4509 = vst.msk [vmem:[%s212 + $0x164] sm:$0xf] %vm4450, %v4380
      %4510 = vst [vmem:[%s212 + $0x168] sm:$0xff] %v4381
      %4511 = vst.msk [vmem:[%s212 + $0x170] sm:$0xf] %vm4450, %v4382
      %4512 = vst [vmem:[%s212 + $0x174] sm:$0xff] %v4383
      %4513 = vst.msk [vmem:[%s212 + $0x17c] sm:$0xf] %vm4450, %v4384
      %s4514 = scalar_lea.vmem %s1, 2592
      %v4515 = vld [vmem:[%s4514] sm:$0xf]
      %v4516 = vld [vmem:[%s4514 + $0xc] sm:$0xf]
      %v4517 = vld [vmem:[%s4514 + $0x18] sm:$0xf]
      %v4518 = vld [vmem:[%s4514 + $0x24] sm:$0xf]
      %v4519 = vld [vmem:[%s4514 + $0x30] sm:$0xf]
      %v4520 = vld [vmem:[%s4514 + $0x3c] sm:$0xf]
      %v4521 = vld [vmem:[%s4514 + $0x48] sm:$0xf]
      %v4522 = vld [vmem:[%s4514 + $0x54] sm:$0xf]
      %v4523 = vld [vmem:[%s4514 + $0x60] sm:$0xf]
      %v4524 = vld [vmem:[%s4514 + $0x6c] sm:$0xf]
      %v4525 = vld [vmem:[%s4514 + $0x78] sm:$0xf]
      %v4526 = vld [vmem:[%s4514 + $0x84] sm:$0xf]
      %v4527 = vld [vmem:[%s4514 + $0x90] sm:$0xf]
      %v4528 = vld [vmem:[%s4514 + $0x9c] sm:$0xf]
      %v4529 = vld [vmem:[%s4514 + $0xa8] sm:$0xf]
      %v4530 = vld [vmem:[%s4514 + $0xb4] sm:$0xf]
      %v4531 = vld [vmem:[%s4514 + $0xc0] sm:$0xf]
      %v4532 = vld [vmem:[%s4514 + $0xcc] sm:$0xf]
      %v4533 = vld [vmem:[%s4514 + $0xd8] sm:$0xf]
      %v4534 = vld [vmem:[%s4514 + $0xe4] sm:$0xf]
      %v4535 = vld [vmem:[%s4514 + $0xf0] sm:$0xf]
      %v4536 = vld [vmem:[%s4514 + $0xfc] sm:$0xf]
      %v4537 = vld [vmem:[%s4514 + $0x108] sm:$0xf]
      %v4538 = vld [vmem:[%s4514 + $0x114] sm:$0xf]
      %v4539 = vld [vmem:[%s4514 + $0x120] sm:$0xf]
      %v4540 = vld [vmem:[%s4514 + $0x12c] sm:$0xf]
      %v4541 = vld [vmem:[%s4514 + $0x138] sm:$0xf]
      %v4542 = vld [vmem:[%s4514 + $0x144] sm:$0xf]
      %v4543 = vld [vmem:[%s4514 + $0x150] sm:$0xf]
      %v4544 = vld [vmem:[%s4514 + $0x15c] sm:$0xf]
      %v4545 = vld [vmem:[%s4514 + $0x168] sm:$0xf]
      %v4546 = vld [vmem:[%s4514 + $0x174] sm:$0xf]
      %v4547 = vld [vmem:[%s205] sm:$0xff]
      %v4548 = vld [vmem:[%s205 + $0x8] sm:$0xf]
      %v4549 = vld [vmem:[%s205 + $0xc] sm:$0xff]
      %v4550 = vld [vmem:[%s205 + $0x14] sm:$0xf]
      %v4551 = vld [vmem:[%s205 + $0x18] sm:$0xff]
      %v4552 = vld [vmem:[%s205 + $0x20] sm:$0xf]
      %v4553 = vld [vmem:[%s205 + $0x24] sm:$0xff]
      %v4554 = vld [vmem:[%s205 + $0x2c] sm:$0xf]
      %v4555 = vld [vmem:[%s205 + $0x30] sm:$0xff]
      %v4556 = vld [vmem:[%s205 + $0x38] sm:$0xf]
      %v4557 = vld [vmem:[%s205 + $0x3c] sm:$0xff]
      %v4558 = vld [vmem:[%s205 + $0x44] sm:$0xf]
      %v4559 = vld [vmem:[%s205 + $0x48] sm:$0xff]
      %v4560 = vld [vmem:[%s205 + $0x50] sm:$0xf]
      %v4561 = vld [vmem:[%s205 + $0x54] sm:$0xff]
      %v4562 = vld [vmem:[%s205 + $0x5c] sm:$0xf]
      %v4563 = vld [vmem:[%s205 + $0x60] sm:$0xff]
      %v4564 = vld [vmem:[%s205 + $0x68] sm:$0xf]
      %v4565 = vld [vmem:[%s205 + $0x6c] sm:$0xff]
      %v4566 = vld [vmem:[%s205 + $0x74] sm:$0xf]
      %v4567 = vld [vmem:[%s205 + $0x78] sm:$0xff]
      %v4568 = vld [vmem:[%s205 + $0x80] sm:$0xf]
      %v4569 = vld [vmem:[%s205 + $0x84] sm:$0xff]
      %v4570 = vld [vmem:[%s205 + $0x8c] sm:$0xf]
      %v4571 = vld [vmem:[%s205 + $0x90] sm:$0xff]
      %v4572 = vld [vmem:[%s205 + $0x98] sm:$0xf]
      %v4573 = vld [vmem:[%s205 + $0x9c] sm:$0xff]
      %v4574 = vld [vmem:[%s205 + $0xa4] sm:$0xf]
      %v4575 = vld [vmem:[%s205 + $0xa8] sm:$0xff]
      %v4576 = vld [vmem:[%s205 + $0xb0] sm:$0xf]
      %v4577 = vld [vmem:[%s205 + $0xb4] sm:$0xff]
      %v4578 = vld [vmem:[%s205 + $0xbc] sm:$0xf]
      %v4579 = vld [vmem:[%s205 + $0xc0] sm:$0xff]
      %v4580 = vld [vmem:[%s205 + $0xc8] sm:$0xf]
      %v4581 = vld [vmem:[%s205 + $0xcc] sm:$0xff]
      %v4582 = vld [vmem:[%s205 + $0xd4] sm:$0xf]
      %v4583 = vld [vmem:[%s205 + $0xd8] sm:$0xff]
      %v4584 = vld [vmem:[%s205 + $0xe0] sm:$0xf]
      %v4585 = vld [vmem:[%s205 + $0xe4] sm:$0xff]
      %v4586 = vld [vmem:[%s205 + $0xec] sm:$0xf]
      %v4587 = vld [vmem:[%s205 + $0xf0] sm:$0xff]
      %v4588 = vld [vmem:[%s205 + $0xf8] sm:$0xf]
      %v4589 = vld [vmem:[%s205 + $0xfc] sm:$0xff]
      %v4590 = vld [vmem:[%s205 + $0x104] sm:$0xf]
      %v4591 = vld [vmem:[%s205 + $0x108] sm:$0xff]
      %v4592 = vld [vmem:[%s205 + $0x110] sm:$0xf]
      %v4593 = vld [vmem:[%s205 + $0x114] sm:$0xff]
      %v4594 = vld [vmem:[%s205 + $0x11c] sm:$0xf]
      %v4595 = vld [vmem:[%s205 + $0x120] sm:$0xff]
      %v4596 = vld [vmem:[%s205 + $0x128] sm:$0xf]
      %v4597 = vld [vmem:[%s205 + $0x12c] sm:$0xff]
      %v4598 = vld [vmem:[%s205 + $0x134] sm:$0xf]
      %v4599 = vld [vmem:[%s205 + $0x138] sm:$0xff]
      %v4600 = vld [vmem:[%s205 + $0x140] sm:$0xf]
      %v4601 = vld [vmem:[%s205 + $0x144] sm:$0xff]
      %v4602 = vld [vmem:[%s205 + $0x14c] sm:$0xf]
      %v4603 = vld [vmem:[%s205 + $0x150] sm:$0xff]
      %v4604 = vld [vmem:[%s205 + $0x158] sm:$0xf]
      %v4605 = vld [vmem:[%s205 + $0x15c] sm:$0xff]
      %v4606 = vld [vmem:[%s205 + $0x164] sm:$0xf]
      %v4607 = vld [vmem:[%s205 + $0x168] sm:$0xff]
      %v4608 = vld [vmem:[%s205 + $0x170] sm:$0xf]
      %v4609 = vld [vmem:[%s205 + $0x174] sm:$0xff]
      %v4610 = vld [vmem:[%s205 + $0x17c] sm:$0xf]
      %s4611 = scalar_lea.vmem %s1, 3024
      %v4612 = vld [vmem:[%s4611] sm:$0xf]
      %v4613 = vld [vmem:[%s4611 + $0xc] sm:$0xf]
      %v4614 = vld [vmem:[%s4611 + $0x18] sm:$0xf]
      %v4615 = vld [vmem:[%s4611 + $0x24] sm:$0xf]
      %v4616 = vld [vmem:[%s4611 + $0x30] sm:$0xf]
      %v4617 = vld [vmem:[%s4611 + $0x3c] sm:$0xf]
      %v4618 = vld [vmem:[%s4611 + $0x48] sm:$0xf]
      %v4619 = vld [vmem:[%s4611 + $0x54] sm:$0xf]
      %v4620 = vld [vmem:[%s4611 + $0x60] sm:$0xf]
      %v4621 = vld [vmem:[%s4611 + $0x6c] sm:$0xf]
      %v4622 = vld [vmem:[%s4611 + $0x78] sm:$0xf]
      %v4623 = vld [vmem:[%s4611 + $0x84] sm:$0xf]
      %v4624 = vld [vmem:[%s4611 + $0x90] sm:$0xf]
      %v4625 = vld [vmem:[%s4611 + $0x9c] sm:$0xf]
      %v4626 = vld [vmem:[%s4611 + $0xa8] sm:$0xf]
      %v4627 = vld [vmem:[%s4611 + $0xb4] sm:$0xf]
      %v4628 = vld [vmem:[%s4611 + $0xc0] sm:$0xf]
      %v4629 = vld [vmem:[%s4611 + $0xcc] sm:$0xf]
      %v4630 = vld [vmem:[%s4611 + $0xd8] sm:$0xf]
      %v4631 = vld [vmem:[%s4611 + $0xe4] sm:$0xf]
      %v4632 = vld [vmem:[%s4611 + $0xf0] sm:$0xf]
      %v4633 = vld [vmem:[%s4611 + $0xfc] sm:$0xf]
      %v4634 = vld [vmem:[%s4611 + $0x108] sm:$0xf]
      %v4635 = vld [vmem:[%s4611 + $0x114] sm:$0xf]
      %v4636 = vld [vmem:[%s4611 + $0x120] sm:$0xf]
      %v4637 = vld [vmem:[%s4611 + $0x12c] sm:$0xf]
      %v4638 = vld [vmem:[%s4611 + $0x138] sm:$0xf]
      %v4639 = vld [vmem:[%s4611 + $0x144] sm:$0xf]
      %v4640 = vld [vmem:[%s4611 + $0x150] sm:$0xf]
      %v4641 = vld [vmem:[%s4611 + $0x15c] sm:$0xf]
      %v4642 = vld [vmem:[%s4611 + $0x168] sm:$0xf]
      %v4643 = vld [vmem:[%s4611 + $0x174] sm:$0xf]
      %v4644 = vld [vmem:[%s4611 + $0x180] sm:$0xf]
      %v4645 = vld [vmem:[%s4611 + $0x18c] sm:$0xf]
      %v4646 = vld [vmem:[%s4611 + $0x198] sm:$0xf]
      %v4647 = vld [vmem:[%s4611 + $0x1a4] sm:$0xf]
      %v4712 = vunpack.c.l.b16 %v4547
      %v4713 = vunpack.c.h.b16 %v4547
      %v4714 = vunpack.c.l.b16 %v4548
      %v4715 = vunpack.c.l.b16 %v4549
      %v4716 = vunpack.c.h.b16 %v4549
      %v4717 = vunpack.c.l.b16 %v4550
      %v4718 = vunpack.c.l.b16 %v4551
      %v4719 = vunpack.c.h.b16 %v4551
      %v4720 = vunpack.c.l.b16 %v4552
      %v4721 = vunpack.c.l.b16 %v4553
      %v4722 = vunpack.c.h.b16 %v4553
      %v4723 = vunpack.c.l.b16 %v4554
      %v4724 = vunpack.c.l.b16 %v4555
      %v4725 = vunpack.c.h.b16 %v4555
      %v4726 = vunpack.c.l.b16 %v4556
      %v4727 = vunpack.c.l.b16 %v4557
      %v4728 = vunpack.c.h.b16 %v4557
      %v4729 = vunpack.c.l.b16 %v4558
      %v4730 = vunpack.c.l.b16 %v4559
      %v4731 = vunpack.c.h.b16 %v4559
      %v4732 = vunpack.c.l.b16 %v4560
      %v4733 = vunpack.c.l.b16 %v4561
      %v4734 = vunpack.c.h.b16 %v4561
      %v4735 = vunpack.c.l.b16 %v4562
      %v4736 = vunpack.c.l.b16 %v4563
      %v4737 = vunpack.c.h.b16 %v4563
      %v4738 = vunpack.c.l.b16 %v4564
      %v4739 = vunpack.c.l.b16 %v4565
      %v4740 = vunpack.c.h.b16 %v4565
      %v4741 = vunpack.c.l.b16 %v4566
      %v4742 = vunpack.c.l.b16 %v4567
      %v4743 = vunpack.c.h.b16 %v4567
      %v4744 = vunpack.c.l.b16 %v4568
      %v4745 = vunpack.c.l.b16 %v4569
      %v4746 = vunpack.c.h.b16 %v4569
      %v4747 = vunpack.c.l.b16 %v4570
      %v4748 = vunpack.c.l.b16 %v4571
      %v4749 = vunpack.c.h.b16 %v4571
      %v4750 = vunpack.c.l.b16 %v4572
      %v4751 = vunpack.c.l.b16 %v4573
      %v4752 = vunpack.c.h.b16 %v4573
      %v4753 = vunpack.c.l.b16 %v4574
      %v4754 = vunpack.c.l.b16 %v4575
      %v4755 = vunpack.c.h.b16 %v4575
      %v4756 = vunpack.c.l.b16 %v4576
      %v4757 = vunpack.c.l.b16 %v4577
      %v4758 = vunpack.c.h.b16 %v4577
      %v4759 = vunpack.c.l.b16 %v4578
      %v4760 = vunpack.c.l.b16 %v4579
      %v4761 = vunpack.c.h.b16 %v4579
      %v4762 = vunpack.c.l.b16 %v4580
      %v4763 = vunpack.c.l.b16 %v4581
      %v4764 = vunpack.c.h.b16 %v4581
      %v4765 = vunpack.c.l.b16 %v4582
      %v4766 = vunpack.c.l.b16 %v4583
      %v4767 = vunpack.c.h.b16 %v4583
      %v4768 = vunpack.c.l.b16 %v4584
      %v4769 = vunpack.c.l.b16 %v4585
      %v4770 = vunpack.c.h.b16 %v4585
      %v4771 = vunpack.c.l.b16 %v4586
      %v4772 = vunpack.c.l.b16 %v4587
      %v4773 = vunpack.c.h.b16 %v4587
      %v4774 = vunpack.c.l.b16 %v4588
      %v4775 = vunpack.c.l.b16 %v4589
      %v4776 = vunpack.c.h.b16 %v4589
      %v4777 = vunpack.c.l.b16 %v4590
      %v4778 = vunpack.c.l.b16 %v4591
      %v4779 = vunpack.c.h.b16 %v4591
      %v4780 = vunpack.c.l.b16 %v4592
      %v4781 = vunpack.c.l.b16 %v4593
      %v4782 = vunpack.c.h.b16 %v4593
      %v4783 = vunpack.c.l.b16 %v4594
      %v4784 = vunpack.c.l.b16 %v4595
      %v4785 = vunpack.c.h.b16 %v4595
      %v4786 = vunpack.c.l.b16 %v4596
      %v4787 = vunpack.c.l.b16 %v4597
      %v4788 = vunpack.c.h.b16 %v4597
      %v4789 = vunpack.c.l.b16 %v4598
      %v4790 = vunpack.c.l.b16 %v4599
      %v4791 = vunpack.c.h.b16 %v4599
      %v4792 = vunpack.c.l.b16 %v4600
      %v4793 = vunpack.c.l.b16 %v4601
      %v4794 = vunpack.c.h.b16 %v4601
      %v4795 = vunpack.c.l.b16 %v4602
      %v4796 = vunpack.c.l.b16 %v4603
      %v4797 = vunpack.c.h.b16 %v4603
      %v4798 = vunpack.c.l.b16 %v4604
      %v4799 = vunpack.c.l.b16 %v4605
      %v4800 = vunpack.c.h.b16 %v4605
      %v4801 = vunpack.c.l.b16 %v4606
      %v4802 = vunpack.c.l.b16 %v4607
      %v4803 = vunpack.c.h.b16 %v4607
      %v4804 = vunpack.c.l.b16 %v4608
      %v4805 = vunpack.c.l.b16 %v4609
      %v4806 = vunpack.c.h.b16 %v4609
      %v4807 = vunpack.c.l.b16 %v4610
      %v4808 = vpack.c.b16 %v4715, %v4712
      %v4809 = vpack.c.b16 %v4716, %v4713
      %v4810 = vpack.c.b16 %v4717, %v4714
      %v4811 = vpack.c.b16 %v4721, %v4718
      %v4812 = vpack.c.b16 %v4722, %v4719
      %v4813 = vpack.c.b16 %v4723, %v4720
      %v4814 = vpack.c.b16 %v4727, %v4724
      %v4815 = vpack.c.b16 %v4728, %v4725
      %v4816 = vpack.c.b16 %v4729, %v4726
      %v4817 = vpack.c.b16 %v4733, %v4730
      %v4818 = vpack.c.b16 %v4734, %v4731
      %v4819 = vpack.c.b16 %v4735, %v4732
      %v4820 = vpack.c.b16 %v4739, %v4736
      %v4821 = vpack.c.b16 %v4740, %v4737
      %v4822 = vpack.c.b16 %v4741, %v4738
      %v4823 = vpack.c.b16 %v4745, %v4742
      %v4824 = vpack.c.b16 %v4746, %v4743
      %v4825 = vpack.c.b16 %v4747, %v4744
      %v4826 = vpack.c.b16 %v4751, %v4748
      %v4827 = vpack.c.b16 %v4752, %v4749
      %v4828 = vpack.c.b16 %v4753, %v4750
      %v4829 = vpack.c.b16 %v4757, %v4754
      %v4830 = vpack.c.b16 %v4758, %v4755
      %v4831 = vpack.c.b16 %v4759, %v4756
      %v4832 = vpack.c.b16 %v4763, %v4760
      %v4833 = vpack.c.b16 %v4764, %v4761
      %v4834 = vpack.c.b16 %v4765, %v4762
      %v4835 = vpack.c.b16 %v4769, %v4766
      %v4836 = vpack.c.b16 %v4770, %v4767
      %v4837 = vpack.c.b16 %v4771, %v4768
      %v4838 = vpack.c.b16 %v4775, %v4772
      %v4839 = vpack.c.b16 %v4776, %v4773
      %v4840 = vpack.c.b16 %v4777, %v4774
      %v4841 = vpack.c.b16 %v4781, %v4778
      %v4842 = vpack.c.b16 %v4782, %v4779
      %v4843 = vpack.c.b16 %v4783, %v4780
      %v4844 = vpack.c.b16 %v4787, %v4784
      %v4845 = vpack.c.b16 %v4788, %v4785
      %v4846 = vpack.c.b16 %v4789, %v4786
      %v4847 = vpack.c.b16 %v4793, %v4790
      %v4848 = vpack.c.b16 %v4794, %v4791
      %v4849 = vpack.c.b16 %v4795, %v4792
      %v4850 = vpack.c.b16 %v4799, %v4796
      %v4851 = vpack.c.b16 %v4800, %v4797
      %v4852 = vpack.c.b16 %v4801, %v4798
      %v4853 = vpack.c.b16 %v4805, %v4802
      %v4854 = vpack.c.b16 %v4806, %v4803
      %v4855 = vpack.c.b16 %v4807, %v4804
      %v4924 = vunpack.c.l.b16 %v4612
      %v4925 = vunpack.c.l.b16 %v4613
      %v4926 = vunpack.c.l.b16 %v4614
      %v4927 = vunpack.c.l.b16 %v4615
      %v4928 = vunpack.c.l.b16 %v4616
      %v4929 = vunpack.c.l.b16 %v4617
      %v4930 = vunpack.c.l.b16 %v4618
      %v4931 = vunpack.c.l.b16 %v4619
      %v4932 = vunpack.c.l.b16 %v4620
      %v4933 = vunpack.c.l.b16 %v4621
      %v4934 = vunpack.c.l.b16 %v4622
      %v4935 = vunpack.c.l.b16 %v4623
      %v4936 = vunpack.c.l.b16 %v4624
      %v4937 = vunpack.c.l.b16 %v4625
      %v4938 = vunpack.c.l.b16 %v4626
      %v4939 = vunpack.c.l.b16 %v4627
      %v4940 = vunpack.c.l.b16 %v4628
      %v4941 = vunpack.c.l.b16 %v4629
      %v4942 = vunpack.c.l.b16 %v4630
      %v4943 = vunpack.c.l.b16 %v4631
      %v4944 = vunpack.c.l.b16 %v4632
      %v4945 = vunpack.c.l.b16 %v4633
      %v4946 = vunpack.c.l.b16 %v4634
      %v4947 = vunpack.c.l.b16 %v4635
      %v4948 = vunpack.c.l.b16 %v4636
      %v4949 = vunpack.c.l.b16 %v4637
      %v4950 = vunpack.c.l.b16 %v4638
      %v4951 = vunpack.c.l.b16 %v4639
      %v4952 = vunpack.c.l.b16 %v4640
      %v4953 = vunpack.c.l.b16 %v4641
      %v4954 = vunpack.c.l.b16 %v4642
      %v4955 = vunpack.c.l.b16 %v4643
      %v4956 = vunpack.c.l.b16 %v4644
      %v4957 = vunpack.c.l.b16 %v4645
      %v4958 = vunpack.c.l.b16 %v4646
      %v4959 = vunpack.c.l.b16 %v4647
      %v4960 = vpack.c.b16 %v4925, %v4924
      %v4961 = vpack.c.b16 %v4927, %v4926
      %v4962 = vpack.c.b16 %v4929, %v4928
      %v4963 = vpack.c.b16 %v4931, %v4930
      %v4964 = vpack.c.b16 %v4933, %v4932
      %v4965 = vpack.c.b16 %v4935, %v4934
      %v4966 = vpack.c.b16 %v4937, %v4936
      %v4967 = vpack.c.b16 %v4939, %v4938
      %v4968 = vpack.c.b16 %v4941, %v4940
      %v4969 = vpack.c.b16 %v4943, %v4942
      %v4970 = vpack.c.b16 %v4945, %v4944
      %v4971 = vpack.c.b16 %v4947, %v4946
      %v4972 = vpack.c.b16 %v4949, %v4948
      %v4973 = vpack.c.b16 %v4951, %v4950
      %v4974 = vpack.c.b16 %v4953, %v4952
      %v4975 = vpack.c.b16 %v4955, %v4954
      %v4976 = vpack.c.b16 %v4957, %v4956
      %v4977 = vpack.c.b16 %v4959, %v4958
      %v4997 = vsel %vm753, %v4810, 0
      %v5000 = vsel %vm753, %v4813, 0
      %v5003 = vsel %vm753, %v4816, 0
      %v5006 = vsel %vm753, %v4819, 0
      %v5009 = vsel %vm753, %v4822, 0
      %v5012 = vsel %vm753, %v4825, 0
      %v5015 = vsel %vm753, %v4828, 0
      %v5018 = vsel %vm753, %v4831, 0
      %v5021 = vsel %vm753, %v4834, 0
      %v5024 = vsel %vm753, %v4837, 0
      %v5027 = vsel %vm753, %v4840, 0
      %v5030 = vsel %vm753, %v4843, 0
      %v5033 = vsel %vm753, %v4846, 0
      %v5036 = vsel %vm753, %v4849, 0
      %v5039 = vsel %vm753, %v4852, 0
      %v5042 = vsel %vm753, %v4855, 0
      %5044 = vmatprep.subr.bf16.mxu0 0
      %5045 = vmatpush1.bf16.msra.mxu0 %v4960
      %5046 = vmatprep.subr.bf16.mxu0 0
      %5047 = vmatpush1.bf16.msra.mxu0 %v4961
      %5048 = vmatprep.subr.bf16.mxu0 0
      %5049 = vmatpush1.bf16.msra.mxu0 %v4962
      %5050 = vmatprep.subr.bf16.mxu0 0
      %5051 = vmatpush1.bf16.msra.mxu0 %v4963
      %5052 = vmatprep.subr.bf16.mxu0 0
      %5053 = vmatpush1.bf16.msra.mxu0 %v4964
      %5054 = vmatprep.subr.bf16.mxu0 0
      %5055 = vmatpush1.bf16.msra.mxu0 %v4965
      %5056 = vmatprep.subr.bf16.mxu0 0
      %5057 = vmatpush1.bf16.msra.mxu0 %v4966
      %5058 = vmatprep.subr.bf16.mxu0 0
      %5059 = vmatpush1.bf16.msra.mxu0 %v4967
      %5060 = vmatprep.subr.bf16.mxu0 0
      %5061 = vmatpush1.bf16.msra.mxu0 %v4968
      %5062 = vmatprep.subr.bf16.mxu0 0
      %5063 = vmatpush1.bf16.msra.mxu0 %v4969
      %5064 = vmatprep.subr.bf16.mxu0 0
      %5065 = vmatpush1.bf16.msra.mxu0 %v4970
      %5066 = vmatprep.subr.bf16.mxu0 0
      %5067 = vmatpush1.bf16.msra.mxu0 %v4971
      %5068 = vmatprep.subr.bf16.mxu0 0
      %5069 = vmatpush1.bf16.msra.mxu0 %v4972
      %5070 = vmatprep.subr.bf16.mxu0 0
      %5071 = vmatpush1.bf16.msra.mxu0 %v4973
      %5072 = vmatprep.subr.bf16.mxu0 0
      %5073 = vmatpush1.bf16.msra.mxu0 %v4974
      %5074 = vmatprep.subr.bf16.mxu0 0
      %5075 = vmatpush1.bf16.msra.mxu0 %v4975
      %5076 = vmatprep.mubr.bf16.mxu0 %v4809
      %5077 = vmatmul.mubr.bf16.gmra.mrb[0].mxu0 %v4808
      %v5078 = vpop.f32.mrb[0].mxu0
      %v5079 = vadd.f32 0.0, %v5078
      %v5080 = vpop.f32.mrb[0].mxu0
      %v5081 = vpop.f32.mrb[0].mxu0
      %v5082 = vadd.f32 0.0, %v5081
      %v5083 = vpop.f32.mrb[0].mxu0
      %5084 = vmatprep.mubr.bf16.mxu0 %v4812
      %5085 = vmatmul.mubr.bf16.gmra.mrb[0].mxu0 %v4811
      %v5086 = vpop.f32.mrb[0].mxu0
      %v5087 = vadd.f32 0.0, %v5086
      %v5088 = vpop.f32.mrb[0].mxu0
      %v5089 = vpop.f32.mrb[0].mxu0
      %v5090 = vadd.f32 0.0, %v5089
      %v5091 = vpop.f32.mrb[0].mxu0
      %5092 = vmatprep.mubr.bf16.mxu0 %v4815
      %5093 = vmatmul.mubr.bf16.gmra.mrb[0].mxu0 %v4814
      %v5094 = vpop.f32.mrb[0].mxu0
      %v5095 = vadd.f32 0.0, %v5094
      %v5096 = vpop.f32.mrb[0].mxu0
      %v5097 = vpop.f32.mrb[0].mxu0
      %v5098 = vadd.f32 0.0, %v5097
      %v5099 = vpop.f32.mrb[0].mxu0
      %5100 = vmatprep.mubr.bf16.mxu0 %v4818
      %5101 = vmatmul.mubr.bf16.gmra.mrb[0].mxu0 %v4817
      %v5102 = vpop.f32.mrb[0].mxu0
      %v5103 = vadd.f32 0.0, %v5102
      %v5104 = vpop.f32.mrb[0].mxu0
      %v5105 = vpop.f32.mrb[0].mxu0
      %v5106 = vadd.f32 0.0, %v5105
      %v5107 = vpop.f32.mrb[0].mxu0
      %5108 = vmatprep.mubr.bf16.mxu0 %v4821
      %5109 = vmatmul.mubr.bf16.gmra.mrb[0].mxu0 %v4820
      %v5110 = vpop.f32.mrb[0].mxu0
      %v5111 = vadd.f32 0.0, %v5110
      %v5112 = vpop.f32.mrb[0].mxu0
      %v5113 = vpop.f32.mrb[0].mxu0
      %v5114 = vadd.f32 0.0, %v5113
      %v5115 = vpop.f32.mrb[0].mxu0
      %5116 = vmatprep.mubr.bf16.mxu0 %v4824
      %5117 = vmatmul.mubr.bf16.gmra.mrb[0].mxu0 %v4823
      %v5118 = vpop.f32.mrb[0].mxu0
      %v5119 = vadd.f32 0.0, %v5118
      %v5120 = vpop.f32.mrb[0].mxu0
      %v5121 = vpop.f32.mrb[0].mxu0
      %v5122 = vadd.f32 0.0, %v5121
      %v5123 = vpop.f32.mrb[0].mxu0
      %5124 = vmatprep.mubr.bf16.mxu0 %v4827
      %5125 = vmatmul.mubr.bf16.gmra.mrb[0].mxu0 %v4826
      %v5126 = vpop.f32.mrb[0].mxu0
      %v5127 = vadd.f32 0.0, %v5126
      %v5128 = vpop.f32.mrb[0].mxu0
      %v5129 = vpop.f32.mrb[0].mxu0
      %v5130 = vadd.f32 0.0, %v5129
      %v5131 = vpop.f32.mrb[0].mxu0
      %5132 = vmatprep.mubr.bf16.mxu0 %v4830
      %5133 = vmatmul.mubr.bf16.gmra.mrb[0].mxu0 %v4829
      %v5134 = vpop.f32.mrb[0].mxu0
      %v5135 = vadd.f32 0.0, %v5134
      %v5136 = vpop.f32.mrb[0].mxu0
      %v5137 = vpop.f32.mrb[0].mxu0
      %v5138 = vadd.f32 0.0, %v5137
      %v5139 = vpop.f32.mrb[0].mxu0
      %5140 = vmatprep.mubr.bf16.mxu0 %v4833
      %5141 = vmatmul.mubr.bf16.gmra.mrb[0].mxu0 %v4832
      %v5142 = vpop.f32.mrb[0].mxu0
      %v5143 = vadd.f32 0.0, %v5142
      %v5144 = vpop.f32.mrb[0].mxu0
      %v5145 = vpop.f32.mrb[0].mxu0
      %v5146 = vadd.f32 0.0, %v5145
      %v5147 = vpop.f32.mrb[0].mxu0
      %5148 = vmatprep.mubr.bf16.mxu0 %v4836
      %5149 = vmatmul.mubr.bf16.gmra.mrb[0].mxu0 %v4835
      %v5150 = vpop.f32.mrb[0].mxu0
      %v5151 = vadd.f32 0.0, %v5150
      %v5152 = vpop.f32.mrb[0].mxu0
      %v5153 = vpop.f32.mrb[0].mxu0
      %v5154 = vadd.f32 0.0, %v5153
      %v5155 = vpop.f32.mrb[0].mxu0
      %5156 = vmatprep.mubr.bf16.mxu0 %v4839
      %5157 = vmatmul.mubr.bf16.gmra.mrb[0].mxu0 %v4838
      %v5158 = vpop.f32.mrb[0].mxu0
      %v5159 = vadd.f32 0.0, %v5158
      %v5160 = vpop.f32.mrb[0].mxu0
      %v5161 = vpop.f32.mrb[0].mxu0
      %v5162 = vadd.f32 0.0, %v5161
      %v5163 = vpop.f32.mrb[0].mxu0
      %5164 = vmatprep.mubr.bf16.mxu0 %v4842
      %5165 = vmatmul.mubr.bf16.gmra.mrb[0].mxu0 %v4841
      %v5166 = vpop.f32.mrb[0].mxu0
      %v5167 = vadd.f32 0.0, %v5166
      %v5168 = vpop.f32.mrb[0].mxu0
      %v5169 = vpop.f32.mrb[0].mxu0
      %v5170 = vadd.f32 0.0, %v5169
      %v5171 = vpop.f32.mrb[0].mxu0
      %5172 = vmatprep.mubr.bf16.mxu0 %v4845
      %5173 = vmatmul.mubr.bf16.gmra.mrb[0].mxu0 %v4844
      %v5174 = vpop.f32.mrb[0].mxu0
      %v5175 = vadd.f32 0.0, %v5174
      %v5176 = vpop.f32.mrb[0].mxu0
      %v5177 = vpop.f32.mrb[0].mxu0
      %v5178 = vadd.f32 0.0, %v5177
      %v5179 = vpop.f32.mrb[0].mxu0
      %5180 = vmatprep.mubr.bf16.mxu0 %v4848
      %5181 = vmatmul.mubr.bf16.gmra.mrb[0].mxu0 %v4847
      %v5182 = vpop.f32.mrb[0].mxu0
      %v5183 = vadd.f32 0.0, %v5182
      %v5184 = vpop.f32.mrb[0].mxu0
      %v5185 = vpop.f32.mrb[0].mxu0
      %v5186 = vadd.f32 0.0, %v5185
      %v5187 = vpop.f32.mrb[0].mxu0
      %5188 = vmatprep.mubr.bf16.mxu0 %v4851
      %5189 = vmatmul.mubr.bf16.gmra.mrb[0].mxu0 %v4850
      %v5190 = vpop.f32.mrb[0].mxu0
      %v5191 = vadd.f32 0.0, %v5190
      %v5192 = vpop.f32.mrb[0].mxu0
      %v5193 = vpop.f32.mrb[0].mxu0
      %v5194 = vadd.f32 0.0, %v5193
      %v5195 = vpop.f32.mrb[0].mxu0
      %5196 = vmatprep.mubr.bf16.mxu0 %v4854
      %5197 = vmatmul.mubr.bf16.gmra.mrb[0].mxu0 %v4853
      %v5198 = vpop.f32.mrb[0].mxu0
      %v5199 = vadd.f32 0.0, %v5198
      %v5200 = vpop.f32.mrb[0].mxu0
      %v5201 = vpop.f32.mrb[0].mxu0
      %v5202 = vadd.f32 0.0, %v5201
      %v5203 = vpop.f32.mrb[0].mxu0
      %5204 = vdwg.mxu0
      %5205 = vmatprep.subr.bf16.mxu0 0
      %5206 = vmatpush1.bf16.msra.mxu0 %v4976
      %5207 = vmatprep.subr.bf16.mxu0 0
      %5208 = vmatpush1.bf16.msra.mxu0 %v4977
      %5209 = vmatprep.subr.bf16.mxu0 0
      %5210 = vmatpush1.bf16.msra.mxu0 0
      %5211 = vmatprep.subr.bf16.mxu0 0
      %5212 = vmatpush1.bf16.msra.mxu0 0
      %5213 = vmatprep.subr.bf16.mxu0 0
      %5214 = vmatpush1.bf16.msra.mxu0 0
      %5215 = vmatprep.subr.bf16.mxu0 0
      %5216 = vmatpush1.bf16.msra.mxu0 0
      %5217 = vmatprep.subr.bf16.mxu0 0
      %5218 = vmatpush1.bf16.msra.mxu0 0
      %5219 = vmatprep.subr.bf16.mxu0 0
      %5220 = vmatpush1.bf16.msra.mxu0 0
      %5221 = vmatprep.subr.bf16.mxu0 0
      %5222 = vmatpush1.bf16.msra.mxu0 0
      %5223 = vmatprep.subr.bf16.mxu0 0
      %5224 = vmatpush1.bf16.msra.mxu0 0
      %5225 = vmatprep.subr.bf16.mxu0 0
      %5226 = vmatpush1.bf16.msra.mxu0 0
      %5227 = vmatprep.subr.bf16.mxu0 0
      %5228 = vmatpush1.bf16.msra.mxu0 0
      %5229 = vmatprep.subr.bf16.mxu0 0
      %5230 = vmatpush1.bf16.msra.mxu0 0
      %5231 = vmatprep.subr.bf16.mxu0 0
      %5232 = vmatpush1.bf16.msra.mxu0 0
      %5233 = vmatprep.subr.bf16.mxu0 0
      %5234 = vmatpush1.bf16.msra.mxu0 0
      %5235 = vmatprep.subr.bf16.mxu0 0
      %5236 = vmatpush1.bf16.msra.mxu0 0
      %5237 = vmatprep.mubr.bf16.mxu0 0
      %5238 = vmatmul.mubr.bf16.gmra.mrb[0].mxu0 %v4997
      %v5239 = vpop.f32.mrb[0].mxu0
      %v5240 = vadd.f32 %v5079, %v5239
      %v5241 = vpop.f32.mrb[0].mxu0
      %v5242 = vpop.f32.mrb[0].mxu0
      %v5243 = vadd.f32 %v5082, %v5242
      %v5244 = vpop.f32.mrb[0].mxu0
      %5245 = vmatprep.mubr.bf16.mxu0 0
      %5246 = vmatmul.mubr.bf16.gmra.mrb[0].mxu0 %v5000
      %v5247 = vpop.f32.mrb[0].mxu0
      %v5248 = vadd.f32 %v5087, %v5247
      %v5249 = vpop.f32.mrb[0].mxu0
      %v5250 = vpop.f32.mrb[0].mxu0
      %v5251 = vadd.f32 %v5090, %v5250
      %v5252 = vpop.f32.mrb[0].mxu0
      %5253 = vmatprep.mubr.bf16.mxu0 0
      %5254 = vmatmul.mubr.bf16.gmra.mrb[0].mxu0 %v5003
      %v5255 = vpop.f32.mrb[0].mxu0
      %v5256 = vadd.f32 %v5095, %v5255
      %v5257 = vpop.f32.mrb[0].mxu0
      %v5258 = vpop.f32.mrb[0].mxu0
      %v5259 = vadd.f32 %v5098, %v5258
      %v5260 = vpop.f32.mrb[0].mxu0
      %5261 = vmatprep.mubr.bf16.mxu0 0
      %5262 = vmatmul.mubr.bf16.gmra.mrb[0].mxu0 %v5006
      %v5263 = vpop.f32.mrb[0].mxu0
      %v5264 = vadd.f32 %v5103, %v5263
      %v5265 = vpop.f32.mrb[0].mxu0
      %v5266 = vpop.f32.mrb[0].mxu0
      %v5267 = vadd.f32 %v5106, %v5266
      %v5268 = vpop.f32.mrb[0].mxu0
      %5269 = vmatprep.mubr.bf16.mxu0 0
      %5270 = vmatmul.mubr.bf16.gmra.mrb[0].mxu0 %v5009
      %v5271 = vpop.f32.mrb[0].mxu0
      %v5272 = vadd.f32 %v5111, %v5271
      %v5273 = vpop.f32.mrb[0].mxu0
      %v5274 = vpop.f32.mrb[0].mxu0
      %v5275 = vadd.f32 %v5114, %v5274
      %v5276 = vpop.f32.mrb[0].mxu0
      %5277 = vmatprep.mubr.bf16.mxu0 0
      %5278 = vmatmul.mubr.bf16.gmra.mrb[0].mxu0 %v5012
      %v5279 = vpop.f32.mrb[0].mxu0
      %v5280 = vadd.f32 %v5119, %v5279
      %v5281 = vpop.f32.mrb[0].mxu0
      %v5282 = vpop.f32.mrb[0].mxu0
      %v5283 = vadd.f32 %v5122, %v5282
      %v5284 = vpop.f32.mrb[0].mxu0
      %5285 = vmatprep.mubr.bf16.mxu0 0
      %5286 = vmatmul.mubr.bf16.gmra.mrb[0].mxu0 %v5015
      %v5287 = vpop.f32.mrb[0].mxu0
      %v5288 = vadd.f32 %v5127, %v5287
      %v5289 = vpop.f32.mrb[0].mxu0
      %v5290 = vpop.f32.mrb[0].mxu0
      %v5291 = vadd.f32 %v5130, %v5290
      %v5292 = vpop.f32.mrb[0].mxu0
      %5293 = vmatprep.mubr.bf16.mxu0 0
      %5294 = vmatmul.mubr.bf16.gmra.mrb[0].mxu0 %v5018
      %v5295 = vpop.f32.mrb[0].mxu0
      %v5296 = vadd.f32 %v5135, %v5295
      %v5297 = vpop.f32.mrb[0].mxu0
      %v5298 = vpop.f32.mrb[0].mxu0
      %v5299 = vadd.f32 %v5138, %v5298
      %v5300 = vpop.f32.mrb[0].mxu0
      %5301 = vmatprep.mubr.bf16.mxu0 0
      %5302 = vmatmul.mubr.bf16.gmra.mrb[0].mxu0 %v5021
      %v5303 = vpop.f32.mrb[0].mxu0
      %v5304 = vadd.f32 %v5143, %v5303
      %v5305 = vpop.f32.mrb[0].mxu0
      %v5306 = vpop.f32.mrb[0].mxu0
      %v5307 = vadd.f32 %v5146, %v5306
      %v5308 = vpop.f32.mrb[0].mxu0
      %5309 = vmatprep.mubr.bf16.mxu0 0
      %5310 = vmatmul.mubr.bf16.gmra.mrb[0].mxu0 %v5024
      %v5311 = vpop.f32.mrb[0].mxu0
      %v5312 = vadd.f32 %v5151, %v5311
      %v5313 = vpop.f32.mrb[0].mxu0
      %v5314 = vpop.f32.mrb[0].mxu0
      %v5315 = vadd.f32 %v5154, %v5314
      %v5316 = vpop.f32.mrb[0].mxu0
      %5317 = vmatprep.mubr.bf16.mxu0 0
      %5318 = vmatmul.mubr.bf16.gmra.mrb[0].mxu0 %v5027
      %v5319 = vpop.f32.mrb[0].mxu0
      %v5320 = vadd.f32 %v5159, %v5319
      %v5321 = vpop.f32.mrb[0].mxu0
      %v5322 = vpop.f32.mrb[0].mxu0
      %v5323 = vadd.f32 %v5162, %v5322
      %v5324 = vpop.f32.mrb[0].mxu0
      %5325 = vmatprep.mubr.bf16.mxu0 0
      %5326 = vmatmul.mubr.bf16.gmra.mrb[0].mxu0 %v5030
      %v5327 = vpop.f32.mrb[0].mxu0
      %v5328 = vadd.f32 %v5167, %v5327
      %v5329 = vpop.f32.mrb[0].mxu0
      %v5330 = vpop.f32.mrb[0].mxu0
      %v5331 = vadd.f32 %v5170, %v5330
      %v5332 = vpop.f32.mrb[0].mxu0
      %5333 = vmatprep.mubr.bf16.mxu0 0
      %5334 = vmatmul.mubr.bf16.gmra.mrb[0].mxu0 %v5033
      %v5335 = vpop.f32.mrb[0].mxu0
      %v5336 = vadd.f32 %v5175, %v5335
      %v5337 = vpop.f32.mrb[0].mxu0
      %v5338 = vpop.f32.mrb[0].mxu0
      %v5339 = vadd.f32 %v5178, %v5338
      %v5340 = vpop.f32.mrb[0].mxu0
      %5341 = vmatprep.mubr.bf16.mxu0 0
      %5342 = vmatmul.mubr.bf16.gmra.mrb[0].mxu0 %v5036
      %v5343 = vpop.f32.mrb[0].mxu0
      %v5344 = vadd.f32 %v5183, %v5343
      %v5345 = vpop.f32.mrb[0].mxu0
      %v5346 = vpop.f32.mrb[0].mxu0
      %v5347 = vadd.f32 %v5186, %v5346
      %v5348 = vpop.f32.mrb[0].mxu0
      %5349 = vmatprep.mubr.bf16.mxu0 0
      %5350 = vmatmul.mubr.bf16.gmra.mrb[0].mxu0 %v5039
      %v5351 = vpop.f32.mrb[0].mxu0
      %v5352 = vadd.f32 %v5191, %v5351
      %v5353 = vpop.f32.mrb[0].mxu0
      %v5354 = vpop.f32.mrb[0].mxu0
      %v5355 = vadd.f32 %v5194, %v5354
      %v5356 = vpop.f32.mrb[0].mxu0
      %5357 = vmatprep.mubr.bf16.mxu0 0
      %5358 = vmatmul.mubr.bf16.gmra.mrb[0].mxu0 %v5042
      %v5359 = vpop.f32.mrb[0].mxu0
      %v5360 = vadd.f32 %v5199, %v5359
      %v5361 = vpop.f32.mrb[0].mxu0
      %v5362 = vpop.f32.mrb[0].mxu0
      %v5363 = vadd.f32 %v5202, %v5362
      %v5364 = vpop.f32.mrb[0].mxu0
      %5365 = vdwg.mxu0
      %v5398 = vunpack.c.l.b16 %v4515
      %v5399 = vunpack.c.l.b16 %v4516
      %v5400 = vunpack.c.l.b16 %v4517
      %v5401 = vunpack.c.l.b16 %v4518
      %v5402 = vunpack.c.l.b16 %v4519
      %v5403 = vunpack.c.l.b16 %v4520
      %v5404 = vunpack.c.l.b16 %v4521
      %v5405 = vunpack.c.l.b16 %v4522
      %v5406 = vunpack.c.l.b16 %v4523
      %v5407 = vunpack.c.l.b16 %v4524
      %v5408 = vunpack.c.l.b16 %v4525
      %v5409 = vunpack.c.l.b16 %v4526
      %v5410 = vunpack.c.l.b16 %v4527
      %v5411 = vunpack.c.l.b16 %v4528
      %v5412 = vunpack.c.l.b16 %v4529
      %v5413 = vunpack.c.l.b16 %v4530
      %v5414 = vunpack.c.l.b16 %v4531
      %v5415 = vunpack.c.l.b16 %v4532
      %v5416 = vunpack.c.l.b16 %v4533
      %v5417 = vunpack.c.l.b16 %v4534
      %v5418 = vunpack.c.l.b16 %v4535
      %v5419 = vunpack.c.l.b16 %v4536
      %v5420 = vunpack.c.l.b16 %v4537
      %v5421 = vunpack.c.l.b16 %v4538
      %v5422 = vunpack.c.l.b16 %v4539
      %v5423 = vunpack.c.l.b16 %v4540
      %v5424 = vunpack.c.l.b16 %v4541
      %v5425 = vunpack.c.l.b16 %v4542
      %v5426 = vunpack.c.l.b16 %v4543
      %v5427 = vunpack.c.l.b16 %v4544
      %v5428 = vunpack.c.l.b16 %v4545
      %v5429 = vunpack.c.l.b16 %v4546
      %v5430 = vpack.c.b16 %v5399, %v5398
      %v5431 = vpack.c.b16 %v5401, %v5400
      %v5432 = vpack.c.b16 %v5403, %v5402
      %v5433 = vpack.c.b16 %v5405, %v5404
      %v5434 = vpack.c.b16 %v5407, %v5406
      %v5435 = vpack.c.b16 %v5409, %v5408
      %v5436 = vpack.c.b16 %v5411, %v5410
      %v5437 = vpack.c.b16 %v5413, %v5412
      %v5438 = vpack.c.b16 %v5415, %v5414
      %v5439 = vpack.c.b16 %v5417, %v5416
      %v5440 = vpack.c.b16 %v5419, %v5418
      %v5441 = vpack.c.b16 %v5421, %v5420
      %v5442 = vpack.c.b16 %v5423, %v5422
      %v5443 = vpack.c.b16 %v5425, %v5424
      %v5444 = vpack.c.b16 %v5427, %v5426
      %v5445 = vpack.c.b16 %v5429, %v5428
      %5462 = vmatprep.subr.bf16.mxu0 0
      %5463 = vmatpush1.bf16.msra.mxu0 %v5430
      %5464 = vmatprep.subr.bf16.mxu0 0
      %5465 = vmatpush1.bf16.msra.mxu0 %v5431
      %5466 = vmatprep.subr.bf16.mxu0 0
      %5467 = vmatpush1.bf16.msra.mxu0 %v5432
      %5468 = vmatprep.subr.bf16.mxu0 0
      %5469 = vmatpush1.bf16.msra.mxu0 %v5433
      %5470 = vmatprep.subr.bf16.mxu0 0
      %5471 = vmatpush1.bf16.msra.mxu0 %v5434
      %5472 = vmatprep.subr.bf16.mxu0 0
      %5473 = vmatpush1.bf16.msra.mxu0 %v5435
      %5474 = vmatprep.subr.bf16.mxu0 0
      %5475 = vmatpush1.bf16.msra.mxu0 %v5436
      %5476 = vmatprep.subr.bf16.mxu0 0
      %5477 = vmatpush1.bf16.msra.mxu0 %v5437
      %5478 = vmatprep.subr.bf16.mxu0 0
      %5479 = vmatpush1.bf16.msra.mxu0 %v5438
      %5480 = vmatprep.subr.bf16.mxu0 0
      %5481 = vmatpush1.bf16.msra.mxu0 %v5439
      %5482 = vmatprep.subr.bf16.mxu0 0
      %5483 = vmatpush1.bf16.msra.mxu0 %v5440
      %5484 = vmatprep.subr.bf16.mxu0 0
      %5485 = vmatpush1.bf16.msra.mxu0 %v5441
      %5486 = vmatprep.subr.bf16.mxu0 0
      %5487 = vmatpush1.bf16.msra.mxu0 %v5442
      %5488 = vmatprep.subr.bf16.mxu0 0
      %5489 = vmatpush1.bf16.msra.mxu0 %v5443
      %5490 = vmatprep.subr.bf16.mxu0 0
      %5491 = vmatpush1.bf16.msra.mxu0 %v5444
      %5492 = vmatprep.subr.bf16.mxu0 0
      %5493 = vmatpush1.bf16.msra.mxu0 %v5445
      %5494 = vmatprep.mubr.bf16.mxu0 %v4130
      %5495 = vmatmul.mubr.bf16.gmra.mrb[0].mxu0 %v4129
      %v5496 = vpop.f32.mrb[0].mxu0
      %v5497 = vadd.f32 %v5240, %v5496
      %v5498 = vpop.f32.mrb[0].mxu0
      %v5499 = vpop.f32.mrb[0].mxu0
      %v5500 = vadd.f32 %v5243, %v5499
      %v5501 = vpop.f32.mrb[0].mxu0
      %5502 = vmatprep.mubr.bf16.mxu0 %v4133
      %5503 = vmatmul.mubr.bf16.gmra.mrb[0].mxu0 %v4132
      %v5504 = vpop.f32.mrb[0].mxu0
      %v5505 = vadd.f32 %v5248, %v5504
      %v5506 = vpop.f32.mrb[0].mxu0
      %v5507 = vpop.f32.mrb[0].mxu0
      %v5508 = vadd.f32 %v5251, %v5507
      %v5509 = vpop.f32.mrb[0].mxu0
      %5510 = vmatprep.mubr.bf16.mxu0 %v4136
      %5511 = vmatmul.mubr.bf16.gmra.mrb[0].mxu0 %v4135
      %v5512 = vpop.f32.mrb[0].mxu0
      %v5513 = vadd.f32 %v5256, %v5512
      %v5514 = vpop.f32.mrb[0].mxu0
      %v5515 = vpop.f32.mrb[0].mxu0
      %v5516 = vadd.f32 %v5259, %v5515
      %v5517 = vpop.f32.mrb[0].mxu0
      %5518 = vmatprep.mubr.bf16.mxu0 %v4139
      %5519 = vmatmul.mubr.bf16.gmra.mrb[0].mxu0 %v4138
      %v5520 = vpop.f32.mrb[0].mxu0
      %v5521 = vadd.f32 %v5264, %v5520
      %v5522 = vpop.f32.mrb[0].mxu0
      %v5523 = vpop.f32.mrb[0].mxu0
      %v5524 = vadd.f32 %v5267, %v5523
      %v5525 = vpop.f32.mrb[0].mxu0
      %5526 = vmatprep.mubr.bf16.mxu0 %v4142
      %5527 = vmatmul.mubr.bf16.gmra.mrb[0].mxu0 %v4141
      %v5528 = vpop.f32.mrb[0].mxu0
      %v5529 = vadd.f32 %v5272, %v5528
      %v5530 = vpop.f32.mrb[0].mxu0
      %v5531 = vpop.f32.mrb[0].mxu0
      %v5532 = vadd.f32 %v5275, %v5531
      %v5533 = vpop.f32.mrb[0].mxu0
      %5534 = vmatprep.mubr.bf16.mxu0 %v4145
      %5535 = vmatmul.mubr.bf16.gmra.mrb[0].mxu0 %v4144
      %v5536 = vpop.f32.mrb[0].mxu0
      %v5537 = vadd.f32 %v5280, %v5536
      %v5538 = vpop.f32.mrb[0].mxu0
      %v5539 = vpop.f32.mrb[0].mxu0
      %v5540 = vadd.f32 %v5283, %v5539
      %v5541 = vpop.f32.mrb[0].mxu0
      %5542 = vmatprep.mubr.bf16.mxu0 %v4148
      %5543 = vmatmul.mubr.bf16.gmra.mrb[0].mxu0 %v4147
      %v5544 = vpop.f32.mrb[0].mxu0
      %v5545 = vadd.f32 %v5288, %v5544
      %v5546 = vpop.f32.mrb[0].mxu0
      %v5547 = vpop.f32.mrb[0].mxu0
      %v5548 = vadd.f32 %v5291, %v5547
      %v5549 = vpop.f32.mrb[0].mxu0
      %5550 = vmatprep.mubr.bf16.mxu0 %v4151
      %5551 = vmatmul.mubr.bf16.gmra.mrb[0].mxu0 %v4150
      %v5552 = vpop.f32.mrb[0].mxu0
      %v5553 = vadd.f32 %v5296, %v5552
      %v5554 = vpop.f32.mrb[0].mxu0
      %v5555 = vpop.f32.mrb[0].mxu0
      %v5556 = vadd.f32 %v5299, %v5555
      %v5557 = vpop.f32.mrb[0].mxu0
      %5558 = vmatprep.mubr.bf16.mxu0 %v4154
      %5559 = vmatmul.mubr.bf16.gmra.mrb[0].mxu0 %v4153
      %v5560 = vpop.f32.mrb[0].mxu0
      %v5561 = vadd.f32 %v5304, %v5560
      %v5562 = vpop.f32.mrb[0].mxu0
      %v5563 = vpop.f32.mrb[0].mxu0
      %v5564 = vadd.f32 %v5307, %v5563
      %v5565 = vpop.f32.mrb[0].mxu0
      %5566 = vmatprep.mubr.bf16.mxu0 %v4157
      %5567 = vmatmul.mubr.bf16.gmra.mrb[0].mxu0 %v4156
      %v5568 = vpop.f32.mrb[0].mxu0
      %v5569 = vadd.f32 %v5312, %v5568
      %v5570 = vpop.f32.mrb[0].mxu0
      %v5571 = vpop.f32.mrb[0].mxu0
      %v5572 = vadd.f32 %v5315, %v5571
      %v5573 = vpop.f32.mrb[0].mxu0
      %5574 = vmatprep.mubr.bf16.mxu0 %v4160
      %5575 = vmatmul.mubr.bf16.gmra.mrb[0].mxu0 %v4159
      %v5576 = vpop.f32.mrb[0].mxu0
      %v5577 = vadd.f32 %v5320, %v5576
      %v5578 = vpop.f32.mrb[0].mxu0
      %v5579 = vpop.f32.mrb[0].mxu0
      %v5580 = vadd.f32 %v5323, %v5579
      %v5581 = vpop.f32.mrb[0].mxu0
      %5582 = vmatprep.mubr.bf16.mxu0 %v4163
      %5583 = vmatmul.mubr.bf16.gmra.mrb[0].mxu0 %v4162
      %v5584 = vpop.f32.mrb[0].mxu0
      %v5585 = vadd.f32 %v5328, %v5584
      %v5586 = vpop.f32.mrb[0].mxu0
      %v5587 = vpop.f32.mrb[0].mxu0
      %v5588 = vadd.f32 %v5331, %v5587
      %v5589 = vpop.f32.mrb[0].mxu0
      %5590 = vmatprep.mubr.bf16.mxu0 %v4166
      %5591 = vmatmul.mubr.bf16.gmra.mrb[0].mxu0 %v4165
      %v5592 = vpop.f32.mrb[0].mxu0
      %v5593 = vadd.f32 %v5336, %v5592
      %v5594 = vpop.f32.mrb[0].mxu0
      %v5595 = vpop.f32.mrb[0].mxu0
      %v5596 = vadd.f32 %v5339, %v5595
      %v5597 = vpop.f32.mrb[0].mxu0
      %5598 = vmatprep.mubr.bf16.mxu0 %v4169
      %5599 = vmatmul.mubr.bf16.gmra.mrb[0].mxu0 %v4168
      %v5600 = vpop.f32.mrb[0].mxu0
      %v5601 = vadd.f32 %v5344, %v5600
      %v5602 = vpop.f32.mrb[0].mxu0
      %v5603 = vpop.f32.mrb[0].mxu0
      %v5604 = vadd.f32 %v5347, %v5603
      %v5605 = vpop.f32.mrb[0].mxu0
      %5606 = vmatprep.mubr.bf16.mxu0 %v4172
      %5607 = vmatmul.mubr.bf16.gmra.mrb[0].mxu0 %v4171
      %v5608 = vpop.f32.mrb[0].mxu0
      %v5609 = vadd.f32 %v5352, %v5608
      %v5610 = vpop.f32.mrb[0].mxu0
      %v5611 = vpop.f32.mrb[0].mxu0
      %v5612 = vadd.f32 %v5355, %v5611
      %v5613 = vpop.f32.mrb[0].mxu0
      %5614 = vmatprep.mubr.bf16.mxu0 %v4175
      %5615 = vmatmul.mubr.bf16.gmra.mrb[0].mxu0 %v4174
      %v5616 = vpop.f32.mrb[0].mxu0
      %v5617 = vadd.f32 %v5360, %v5616
      %v5618 = vpop.f32.mrb[0].mxu0
      %v5619 = vpop.f32.mrb[0].mxu0
      %v5620 = vadd.f32 %v5363, %v5619
      %v5621 = vpop.f32.mrb[0].mxu0
      %5622 = vdwg.mxu0
      %v5623 = vld [vmem:[%s2 + $0x5] ss:$0 sm:$0xff]
      %v5624 = vadd.f32 %v5497, %v5623
      %v5625 = vadd.f32 %v5500, %v5623
      %v5626 = vadd.f32 %v5505, %v5623
      %v5627 = vadd.f32 %v5508, %v5623
      %v5628 = vadd.f32 %v5513, %v5623
      %v5629 = vadd.f32 %v5516, %v5623
      %v5630 = vadd.f32 %v5521, %v5623
      %v5631 = vadd.f32 %v5524, %v5623
      %v5632 = vadd.f32 %v5529, %v5623
      %v5633 = vadd.f32 %v5532, %v5623
      %v5634 = vadd.f32 %v5537, %v5623
      %v5635 = vadd.f32 %v5540, %v5623
      %v5636 = vadd.f32 %v5545, %v5623
      %v5637 = vadd.f32 %v5548, %v5623
      %v5638 = vadd.f32 %v5553, %v5623
      %v5639 = vadd.f32 %v5556, %v5623
      %v5640 = vadd.f32 %v5561, %v5623
      %v5641 = vadd.f32 %v5564, %v5623
      %v5642 = vadd.f32 %v5569, %v5623
      %v5643 = vadd.f32 %v5572, %v5623
      %v5644 = vadd.f32 %v5577, %v5623
      %v5645 = vadd.f32 %v5580, %v5623
      %v5646 = vadd.f32 %v5585, %v5623
      %v5647 = vadd.f32 %v5588, %v5623
      %v5648 = vadd.f32 %v5593, %v5623
      %v5649 = vadd.f32 %v5596, %v5623
      %v5650 = vadd.f32 %v5601, %v5623
      %v5651 = vadd.f32 %v5604, %v5623
      %v5652 = vadd.f32 %v5609, %v5623
      %v5653 = vadd.f32 %v5612, %v5623
      %v5654 = vadd.f32 %v5617, %v5623
      %v5655 = vadd.f32 %v5620, %v5623
      %v5656 = vmax.f32 %v5624, 0.0
      %v5657 = vmax.f32 %v5625, 0.0
      %v5658 = vmax.f32 %v5626, 0.0
      %v5659 = vmax.f32 %v5627, 0.0
      %v5660 = vmax.f32 %v5628, 0.0
      %v5661 = vmax.f32 %v5629, 0.0
      %v5662 = vmax.f32 %v5630, 0.0
      %v5663 = vmax.f32 %v5631, 0.0
      %v5664 = vmax.f32 %v5632, 0.0
      %v5665 = vmax.f32 %v5633, 0.0
      %v5666 = vmax.f32 %v5634, 0.0
      %v5667 = vmax.f32 %v5635, 0.0
      %v5668 = vmax.f32 %v5636, 0.0
      %v5669 = vmax.f32 %v5637, 0.0
      %v5670 = vmax.f32 %v5638, 0.0
      %v5671 = vmax.f32 %v5639, 0.0
      %v5672 = vmax.f32 %v5640, 0.0
      %v5673 = vmax.f32 %v5641, 0.0
      %v5674 = vmax.f32 %v5642, 0.0
      %v5675 = vmax.f32 %v5643, 0.0
      %v5676 = vmax.f32 %v5644, 0.0
      %v5677 = vmax.f32 %v5645, 0.0
      %v5678 = vmax.f32 %v5646, 0.0
      %v5679 = vmax.f32 %v5647, 0.0
      %v5680 = vmax.f32 %v5648, 0.0
      %v5681 = vmax.f32 %v5649, 0.0
      %v5682 = vmax.f32 %v5650, 0.0
      %v5683 = vmax.f32 %v5651, 0.0
      %v5684 = vmax.f32 %v5652, 0.0
      %v5685 = vmax.f32 %v5653, 0.0
      %v5686 = vmax.f32 %v5654, 0.0
      %v5687 = vmax.f32 %v5655, 0.0
      %v5688 = vpack.c.bf16 %v5657, %v5656
      %v5689 = vpack.c.bf16 %v5659, %v5658
      %v5690 = vpack.c.bf16 %v5661, %v5660
      %v5691 = vpack.c.bf16 %v5663, %v5662
      %v5692 = vpack.c.bf16 %v5665, %v5664
      %v5693 = vpack.c.bf16 %v5667, %v5666
      %v5694 = vpack.c.bf16 %v5669, %v5668
      %v5695 = vpack.c.bf16 %v5671, %v5670
      %v5696 = vpack.c.bf16 %v5673, %v5672
      %v5697 = vpack.c.bf16 %v5675, %v5674
      %v5698 = vpack.c.bf16 %v5677, %v5676
      %v5699 = vpack.c.bf16 %v5679, %v5678
      %v5700 = vpack.c.bf16 %v5681, %v5680
      %v5701 = vpack.c.bf16 %v5683, %v5682
      %v5702 = vpack.c.bf16 %v5685, %v5684
      %v5703 = vpack.c.bf16 %v5687, %v5686
      %s5704 = scalar_lea.vmem %s1, 3456
      %v5705 = vld [vmem:[%s5704] sm:$0xf]
      %v5706 = vld [vmem:[%s5704 + $0xc] sm:$0xf]
      %v5707 = vld [vmem:[%s5704 + $0x18] sm:$0xf]
      %v5708 = vld [vmem:[%s5704 + $0x24] sm:$0xf]
      %v5709 = vld [vmem:[%s5704 + $0x30] sm:$0xf]
      %v5710 = vld [vmem:[%s5704 + $0x3c] sm:$0xf]
      %v5711 = vld [vmem:[%s5704 + $0x48] sm:$0xf]
      %v5712 = vld [vmem:[%s5704 + $0x54] sm:$0xf]
      %v5713 = vld [vmem:[%s5704 + $0x60] sm:$0xf]
      %v5714 = vld [vmem:[%s5704 + $0x6c] sm:$0xf]
      %v5715 = vld [vmem:[%s5704 + $0x78] sm:$0xf]
      %v5716 = vld [vmem:[%s5704 + $0x84] sm:$0xf]
      %v5717 = vld [vmem:[%s5704 + $0x90] sm:$0xf]
      %v5718 = vld [vmem:[%s5704 + $0x9c] sm:$0xf]
      %v5719 = vld [vmem:[%s5704 + $0xa8] sm:$0xf]
      %v5720 = vld [vmem:[%s5704 + $0xb4] sm:$0xf]
      %v5721 = vld [vmem:[%s2 + $0x6] ss:$0 sm:$0xff]
      %v5738 = vunpack.c.l.b16 %v5705
      %v5739 = vunpack.c.l.b16 %v5706
      %v5740 = vunpack.c.l.b16 %v5707
      %v5741 = vunpack.c.l.b16 %v5708
      %v5742 = vunpack.c.l.b16 %v5709
      %v5743 = vunpack.c.l.b16 %v5710
      %v5744 = vunpack.c.l.b16 %v5711
      %v5745 = vunpack.c.l.b16 %v5712
      %v5746 = vunpack.c.l.b16 %v5713
      %v5747 = vunpack.c.l.b16 %v5714
      %v5748 = vunpack.c.l.b16 %v5715
      %v5749 = vunpack.c.l.b16 %v5716
      %v5750 = vunpack.c.l.b16 %v5717
      %v5751 = vunpack.c.l.b16 %v5718
      %v5752 = vunpack.c.l.b16 %v5719
      %v5753 = vunpack.c.l.b16 %v5720
      %v5754 = vpack.c.b16 %v5739, %v5738
      %v5755 = vpack.c.b16 %v5741, %v5740
      %v5756 = vpack.c.b16 %v5743, %v5742
      %v5757 = vpack.c.b16 %v5745, %v5744
      %v5758 = vpack.c.b16 %v5747, %v5746
      %v5759 = vpack.c.b16 %v5749, %v5748
      %v5760 = vpack.c.b16 %v5751, %v5750
      %v5761 = vpack.c.b16 %v5753, %v5752
      %5770 = vmatprep.subr.bf16.mxu0 0
      %5771 = vmatpush1.bf16.msra.mxu0 %v5754
      %5772 = vmatprep.subr.bf16.mxu0 0
      %5773 = vmatpush1.bf16.msra.mxu0 %v5755
      %5774 = vmatprep.subr.bf16.mxu0 0
      %5775 = vmatpush1.bf16.msra.mxu0 %v5756
      %5776 = vmatprep.subr.bf16.mxu0 0
      %5777 = vmatpush1.bf16.msra.mxu0 %v5757
      %5778 = vmatprep.subr.bf16.mxu0 0
      %5779 = vmatpush1.bf16.msra.mxu0 %v5758
      %5780 = vmatprep.subr.bf16.mxu0 0
      %5781 = vmatpush1.bf16.msra.mxu0 %v5759
      %5782 = vmatprep.subr.bf16.mxu0 0
      %5783 = vmatpush1.bf16.msra.mxu0 %v5760
      %5784 = vmatprep.subr.bf16.mxu0 0
      %5785 = vmatpush1.bf16.msra.mxu0 %v5761
      %5786 = vmatprep.subr.bf16.mxu0 0
      %5787 = vmatpush1.bf16.msra.mxu0 0
      %5788 = vmatprep.subr.bf16.mxu0 0
      %5789 = vmatpush1.bf16.msra.mxu0 0
      %5790 = vmatprep.subr.bf16.mxu0 0
      %5791 = vmatpush1.bf16.msra.mxu0 0
      %5792 = vmatprep.subr.bf16.mxu0 0
      %5793 = vmatpush1.bf16.msra.mxu0 0
      %5794 = vmatprep.subr.bf16.mxu0 0
      %5795 = vmatpush1.bf16.msra.mxu0 0
      %5796 = vmatprep.subr.bf16.mxu0 0
      %5797 = vmatpush1.bf16.msra.mxu0 0
      %5798 = vmatprep.subr.bf16.mxu0 0
      %5799 = vmatpush1.bf16.msra.mxu0 0
      %5800 = vmatprep.subr.bf16.mxu0 0
      %5801 = vmatpush1.bf16.msra.mxu0 0
      %5802 = vmatprep.mubr.bf16.mxu0 0
      %5803 = vmatmul.mubr.bf16.gmra.mrb[0].mxu0 %v5688
      %v5804 = vpop.f32.mrb[0].mxu0
      %v5805 = vadd.f32 %v5721, %v5804
      %v5806 = vpop.f32.mrb[0].mxu0
      %v5807 = vpop.f32.mrb[0].mxu0
      %v5808 = vadd.f32 %v5721, %v5807
      %v5809 = vpop.f32.mrb[0].mxu0
      %5810 = vmatprep.mubr.bf16.mxu0 0
      %5811 = vmatmul.mubr.bf16.gmra.mrb[0].mxu0 %v5689
      %v5812 = vpop.f32.mrb[0].mxu0
      %v5813 = vadd.f32 %v5721, %v5812
      %v5814 = vpop.f32.mrb[0].mxu0
      %v5815 = vpop.f32.mrb[0].mxu0
      %v5816 = vadd.f32 %v5721, %v5815
      %v5817 = vpop.f32.mrb[0].mxu0
      %5818 = vmatprep.mubr.bf16.mxu0 0
      %5819 = vmatmul.mubr.bf16.gmra.mrb[0].mxu0 %v5690
      %v5820 = vpop.f32.mrb[0].mxu0
      %v5821 = vadd.f32 %v5721, %v5820
      %v5822 = vpop.f32.mrb[0].mxu0
      %v5823 = vpop.f32.mrb[0].mxu0
      %v5824 = vadd.f32 %v5721, %v5823
      %v5825 = vpop.f32.mrb[0].mxu0
      %5826 = vmatprep.mubr.bf16.mxu0 0
      %5827 = vmatmul.mubr.bf16.gmra.mrb[0].mxu0 %v5691
      %v5828 = vpop.f32.mrb[0].mxu0
      %v5829 = vadd.f32 %v5721, %v5828
      %v5830 = vpop.f32.mrb[0].mxu0
      %v5831 = vpop.f32.mrb[0].mxu0
      %v5832 = vadd.f32 %v5721, %v5831
      %v5833 = vpop.f32.mrb[0].mxu0
      %5834 = vmatprep.mubr.bf16.mxu0 0
      %5835 = vmatmul.mubr.bf16.gmra.mrb[0].mxu0 %v5692
      %v5836 = vpop.f32.mrb[0].mxu0
      %v5837 = vadd.f32 %v5721, %v5836
      %v5838 = vpop.f32.mrb[0].mxu0
      %v5839 = vpop.f32.mrb[0].mxu0
      %v5840 = vadd.f32 %v5721, %v5839
      %v5841 = vpop.f32.mrb[0].mxu0
      %5842 = vmatprep.mubr.bf16.mxu0 0
      %5843 = vmatmul.mubr.bf16.gmra.mrb[0].mxu0 %v5693
      %v5844 = vpop.f32.mrb[0].mxu0
      %v5845 = vadd.f32 %v5721, %v5844
      %v5846 = vpop.f32.mrb[0].mxu0
      %v5847 = vpop.f32.mrb[0].mxu0
      %v5848 = vadd.f32 %v5721, %v5847
      %v5849 = vpop.f32.mrb[0].mxu0
      %5850 = vmatprep.mubr.bf16.mxu0 0
      %5851 = vmatmul.mubr.bf16.gmra.mrb[0].mxu0 %v5694
      %v5852 = vpop.f32.mrb[0].mxu0
      %v5853 = vadd.f32 %v5721, %v5852
      %v5854 = vpop.f32.mrb[0].mxu0
      %v5855 = vpop.f32.mrb[0].mxu0
      %v5856 = vadd.f32 %v5721, %v5855
      %v5857 = vpop.f32.mrb[0].mxu0
      %5858 = vmatprep.mubr.bf16.mxu0 0
      %5859 = vmatmul.mubr.bf16.gmra.mrb[0].mxu0 %v5695
      %v5860 = vpop.f32.mrb[0].mxu0
      %v5861 = vadd.f32 %v5721, %v5860
      %v5862 = vpop.f32.mrb[0].mxu0
      %v5863 = vpop.f32.mrb[0].mxu0
      %v5864 = vadd.f32 %v5721, %v5863
      %v5865 = vpop.f32.mrb[0].mxu0
      %5866 = vmatprep.mubr.bf16.mxu0 0
      %5867 = vmatmul.mubr.bf16.gmra.mrb[0].mxu0 %v5696
      %v5868 = vpop.f32.mrb[0].mxu0
      %v5869 = vadd.f32 %v5721, %v5868
      %v5870 = vpop.f32.mrb[0].mxu0
      %v5871 = vpop.f32.mrb[0].mxu0
      %v5872 = vadd.f32 %v5721, %v5871
      %v5873 = vpop.f32.mrb[0].mxu0
      %5874 = vmatprep.mubr.bf16.mxu0 0
      %5875 = vmatmul.mubr.bf16.gmra.mrb[0].mxu0 %v5697
      %v5876 = vpop.f32.mrb[0].mxu0
      %v5877 = vadd.f32 %v5721, %v5876
      %v5878 = vpop.f32.mrb[0].mxu0
      %v5879 = vpop.f32.mrb[0].mxu0
      %v5880 = vadd.f32 %v5721, %v5879
      %v5881 = vpop.f32.mrb[0].mxu0
      %5882 = vmatprep.mubr.bf16.mxu0 0
      %5883 = vmatmul.mubr.bf16.gmra.mrb[0].mxu0 %v5698
      %v5884 = vpop.f32.mrb[0].mxu0
      %v5885 = vadd.f32 %v5721, %v5884
      %v5886 = vpop.f32.mrb[0].mxu0
      %v5887 = vpop.f32.mrb[0].mxu0
      %v5888 = vadd.f32 %v5721, %v5887
      %v5889 = vpop.f32.mrb[0].mxu0
      %5890 = vmatprep.mubr.bf16.mxu0 0
      %5891 = vmatmul.mubr.bf16.gmra.mrb[0].mxu0 %v5699
      %v5892 = vpop.f32.mrb[0].mxu0
      %v5893 = vadd.f32 %v5721, %v5892
      %v5894 = vpop.f32.mrb[0].mxu0
      %v5895 = vpop.f32.mrb[0].mxu0
      %v5896 = vadd.f32 %v5721, %v5895
      %v5897 = vpop.f32.mrb[0].mxu0
      %5898 = vmatprep.mubr.bf16.mxu0 0
      %5899 = vmatmul.mubr.bf16.gmra.mrb[0].mxu0 %v5700
      %v5900 = vpop.f32.mrb[0].mxu0
      %v5901 = vadd.f32 %v5721, %v5900
      %v5902 = vpop.f32.mrb[0].mxu0
      %v5903 = vpop.f32.mrb[0].mxu0
      %v5904 = vadd.f32 %v5721, %v5903
      %v5905 = vpop.f32.mrb[0].mxu0
      %5906 = vmatprep.mubr.bf16.mxu0 0
      %5907 = vmatmul.mubr.bf16.gmra.mrb[0].mxu0 %v5701
      %v5908 = vpop.f32.mrb[0].mxu0
      %v5909 = vadd.f32 %v5721, %v5908
      %v5910 = vpop.f32.mrb[0].mxu0
      %v5911 = vpop.f32.mrb[0].mxu0
      %v5912 = vadd.f32 %v5721, %v5911
      %v5913 = vpop.f32.mrb[0].mxu0
      %5914 = vmatprep.mubr.bf16.mxu0 0
      %5915 = vmatmul.mubr.bf16.gmra.mrb[0].mxu0 %v5702
      %v5916 = vpop.f32.mrb[0].mxu0
      %v5917 = vadd.f32 %v5721, %v5916
      %v5918 = vpop.f32.mrb[0].mxu0
      %v5919 = vpop.f32.mrb[0].mxu0
      %v5920 = vadd.f32 %v5721, %v5919
      %v5921 = vpop.f32.mrb[0].mxu0
      %5922 = vmatprep.mubr.bf16.mxu0 0
      %5923 = vmatmul.mubr.bf16.gmra.mrb[0].mxu0 %v5703
      %v5924 = vpop.f32.mrb[0].mxu0
      %v5925 = vadd.f32 %v5721, %v5924
      %v5926 = vpop.f32.mrb[0].mxu0
      %v5927 = vpop.f32.mrb[0].mxu0
      %v5928 = vadd.f32 %v5721, %v5927
      %v5929 = vpop.f32.mrb[0].mxu0
      %5930 = vdwg.mxu0
      %v5931 = vxor.u32 %v5805, 2147483648
      %v5932 = vxor.u32 %v5808, 2147483648
      %v5933 = vxor.u32 %v5813, 2147483648
      %v5934 = vxor.u32 %v5816, 2147483648
      %v5935 = vxor.u32 %v5821, 2147483648
      %v5936 = vxor.u32 %v5824, 2147483648
      %v5937 = vxor.u32 %v5829, 2147483648
      %v5938 = vxor.u32 %v5832, 2147483648
      %v5939 = vxor.u32 %v5837, 2147483648
      %v5940 = vxor.u32 %v5840, 2147483648
      %v5941 = vxor.u32 %v5845, 2147483648
      %v5942 = vxor.u32 %v5848, 2147483648
      %v5943 = vxor.u32 %v5853, 2147483648
      %v5944 = vxor.u32 %v5856, 2147483648
      %v5945 = vxor.u32 %v5861, 2147483648
      %v5946 = vxor.u32 %v5864, 2147483648
      %v5947 = vxor.u32 %v5869, 2147483648
      %v5948 = vxor.u32 %v5872, 2147483648
      %v5949 = vxor.u32 %v5877, 2147483648
      %v5950 = vxor.u32 %v5880, 2147483648
      %v5951 = vxor.u32 %v5885, 2147483648
      %v5952 = vxor.u32 %v5888, 2147483648
      %v5953 = vxor.u32 %v5893, 2147483648
      %v5954 = vxor.u32 %v5896, 2147483648
      %v5955 = vxor.u32 %v5901, 2147483648
      %v5956 = vxor.u32 %v5904, 2147483648
      %v5957 = vxor.u32 %v5909, 2147483648
      %v5958 = vxor.u32 %v5912, 2147483648
      %v5959 = vxor.u32 %v5917, 2147483648
      %v5960 = vxor.u32 %v5920, 2147483648
      %v5961 = vxor.u32 %v5925, 2147483648
      %v5962 = vxor.u32 %v5928, 2147483648
      %v5963 = vmul.f32 %v5931, 1.442695
      %v5964 = vpow.pop %v5963
      %v5965 = vmul.f32 %v5932, 1.442695
      %v5966 = vpow.pop %v5965
      %v5967 = vmul.f32 %v5933, 1.442695
      %v5968 = vpow.pop %v5967
      %v5969 = vmul.f32 %v5934, 1.442695
      %v5970 = vpow.pop %v5969
      %v5971 = vmul.f32 %v5935, 1.442695
      %v5972 = vpow.pop %v5971
      %v5973 = vmul.f32 %v5936, 1.442695
      %v5974 = vpow.pop %v5973
      %v5975 = vmul.f32 %v5937, 1.442695
      %v5976 = vpow.pop %v5975
      %v5977 = vmul.f32 %v5938, 1.442695
      %v5978 = vpow.pop %v5977
      %v5979 = vmul.f32 %v5939, 1.442695
      %v5980 = vpow.pop %v5979
      %v5981 = vmul.f32 %v5940, 1.442695
      %v5982 = vpow.pop %v5981
      %v5983 = vmul.f32 %v5941, 1.442695
      %v5984 = vpow.pop %v5983
      %v5985 = vmul.f32 %v5942, 1.442695
      %v5986 = vpow.pop %v5985
      %v5987 = vmul.f32 %v5943, 1.442695
      %v5988 = vpow.pop %v5987
      %v5989 = vmul.f32 %v5944, 1.442695
      %v5990 = vpow.pop %v5989
      %v5991 = vmul.f32 %v5945, 1.442695
      %v5992 = vpow.pop %v5991
      %v5993 = vmul.f32 %v5946, 1.442695
      %v5994 = vpow.pop %v5993
      %v5995 = vmul.f32 %v5947, 1.442695
      %v5996 = vpow.pop %v5995
      %v5997 = vmul.f32 %v5948, 1.442695
      %v5998 = vpow.pop %v5997
      %v5999 = vmul.f32 %v5949, 1.442695
      %v6000 = vpow.pop %v5999
      %v6001 = vmul.f32 %v5950, 1.442695
      %v6002 = vpow.pop %v6001
      %v6003 = vmul.f32 %v5951, 1.442695
      %v6004 = vpow.pop %v6003
      %v6005 = vmul.f32 %v5952, 1.442695
      %v6006 = vpow.pop %v6005
      %v6007 = vmul.f32 %v5953, 1.442695
      %v6008 = vpow.pop %v6007
      %v6009 = vmul.f32 %v5954, 1.442695
      %v6010 = vpow.pop %v6009
      %v6011 = vmul.f32 %v5955, 1.442695
      %v6012 = vpow.pop %v6011
      %v6013 = vmul.f32 %v5956, 1.442695
      %v6014 = vpow.pop %v6013
      %v6015 = vmul.f32 %v5957, 1.442695
      %v6016 = vpow.pop %v6015
      %v6017 = vmul.f32 %v5958, 1.442695
      %v6018 = vpow.pop %v6017
      %v6019 = vmul.f32 %v5959, 1.442695
      %v6020 = vpow.pop %v6019
      %v6021 = vmul.f32 %v5960, 1.442695
      %v6022 = vpow.pop %v6021
      %v6023 = vmul.f32 %v5961, 1.442695
      %v6024 = vpow.pop %v6023
      %v6025 = vmul.f32 %v5962, 1.442695
      %v6026 = vpow.pop %v6025
      %v6027 = vadd.f32 %v5964, 1.0
      %v6028 = vadd.f32 %v5966, 1.0
      %v6029 = vadd.f32 %v5968, 1.0
      %v6030 = vadd.f32 %v5970, 1.0
      %v6031 = vadd.f32 %v5972, 1.0
      %v6032 = vadd.f32 %v5974, 1.0
      %v6033 = vadd.f32 %v5976, 1.0
      %v6034 = vadd.f32 %v5978, 1.0
      %v6035 = vadd.f32 %v5980, 1.0
      %v6036 = vadd.f32 %v5982, 1.0
      %v6037 = vadd.f32 %v5984, 1.0
      %v6038 = vadd.f32 %v5986, 1.0
      %v6039 = vadd.f32 %v5988, 1.0
      %v6040 = vadd.f32 %v5990, 1.0
      %v6041 = vadd.f32 %v5992, 1.0
      %v6042 = vadd.f32 %v5994, 1.0
      %v6043 = vadd.f32 %v5996, 1.0
      %v6044 = vadd.f32 %v5998, 1.0
      %v6045 = vadd.f32 %v6000, 1.0
      %v6046 = vadd.f32 %v6002, 1.0
      %v6047 = vadd.f32 %v6004, 1.0
      %v6048 = vadd.f32 %v6006, 1.0
      %v6049 = vadd.f32 %v6008, 1.0
      %v6050 = vadd.f32 %v6010, 1.0
      %v6051 = vadd.f32 %v6012, 1.0
      %v6052 = vadd.f32 %v6014, 1.0
      %v6053 = vadd.f32 %v6016, 1.0
      %v6054 = vadd.f32 %v6018, 1.0
      %v6055 = vadd.f32 %v6020, 1.0
      %v6056 = vadd.f32 %v6022, 1.0
      %v6057 = vadd.f32 %v6024, 1.0
      %v6058 = vadd.f32 %v6026, 1.0
      %v6059 = vrcp.pop %v6027
      %v6060 = vmul.f32 1.0, %v6059
      %v6061 = vrcp.pop %v6028
      %v6062 = vmul.f32 1.0, %v6061
      %v6063 = vrcp.pop %v6029
      %v6064 = vmul.f32 1.0, %v6063
      %v6065 = vrcp.pop %v6030
      %v6066 = vmul.f32 1.0, %v6065
      %v6067 = vrcp.pop %v6031
      %v6068 = vmul.f32 1.0, %v6067
      %v6069 = vrcp.pop %v6032
      %v6070 = vmul.f32 1.0, %v6069
      %v6071 = vrcp.pop %v6033
      %v6072 = vmul.f32 1.0, %v6071
      %v6073 = vrcp.pop %v6034
      %v6074 = vmul.f32 1.0, %v6073
      %v6075 = vrcp.pop %v6035
      %v6076 = vmul.f32 1.0, %v6075
      %v6077 = vrcp.pop %v6036
      %v6078 = vmul.f32 1.0, %v6077
      %v6079 = vrcp.pop %v6037
      %v6080 = vmul.f32 1.0, %v6079
      %v6081 = vrcp.pop %v6038
      %v6082 = vmul.f32 1.0, %v6081
      %v6083 = vrcp.pop %v6039
      %v6084 = vmul.f32 1.0, %v6083
      %v6085 = vrcp.pop %v6040
      %v6086 = vmul.f32 1.0, %v6085
      %v6087 = vrcp.pop %v6041
      %v6088 = vmul.f32 1.0, %v6087
      %v6089 = vrcp.pop %v6042
      %v6090 = vmul.f32 1.0, %v6089
      %v6091 = vrcp.pop %v6043
      %v6092 = vmul.f32 1.0, %v6091
      %v6093 = vrcp.pop %v6044
      %v6094 = vmul.f32 1.0, %v6093
      %v6095 = vrcp.pop %v6045
      %v6096 = vmul.f32 1.0, %v6095
      %v6097 = vrcp.pop %v6046
      %v6098 = vmul.f32 1.0, %v6097
      %v6099 = vrcp.pop %v6047
      %v6100 = vmul.f32 1.0, %v6099
      %v6101 = vrcp.pop %v6048
      %v6102 = vmul.f32 1.0, %v6101
      %v6103 = vrcp.pop %v6049
      %v6104 = vmul.f32 1.0, %v6103
      %v6105 = vrcp.pop %v6050
      %v6106 = vmul.f32 1.0, %v6105
      %v6107 = vrcp.pop %v6051
      %v6108 = vmul.f32 1.0, %v6107
      %v6109 = vrcp.pop %v6052
      %v6110 = vmul.f32 1.0, %v6109
      %v6111 = vrcp.pop %v6053
      %v6112 = vmul.f32 1.0, %v6111
      %v6113 = vrcp.pop %v6054
      %v6114 = vmul.f32 1.0, %v6113
      %v6115 = vrcp.pop %v6055
      %v6116 = vmul.f32 1.0, %v6115
      %v6117 = vrcp.pop %v6056
      %v6118 = vmul.f32 1.0, %v6117
      %v6119 = vrcp.pop %v6057
      %v6120 = vmul.f32 1.0, %v6119
      %v6121 = vrcp.pop %v6058
      %v6122 = vmul.f32 1.0, %v6121
      %v6123 = vpack.c.bf16 %v6062, %v6060
      %v6124 = vpack.c.bf16 %v6066, %v6064
      %v6125 = vpack.c.bf16 %v6070, %v6068
      %v6126 = vpack.c.bf16 %v6074, %v6072
      %v6127 = vpack.c.bf16 %v6078, %v6076
      %v6128 = vpack.c.bf16 %v6082, %v6080
      %v6129 = vpack.c.bf16 %v6086, %v6084
      %v6130 = vpack.c.bf16 %v6090, %v6088
      %v6131 = vpack.c.bf16 %v6094, %v6092
      %v6132 = vpack.c.bf16 %v6098, %v6096
      %v6133 = vpack.c.bf16 %v6102, %v6100
      %v6134 = vpack.c.bf16 %v6106, %v6104
      %v6135 = vpack.c.bf16 %v6110, %v6108
      %v6136 = vpack.c.bf16 %v6114, %v6112
      %v6137 = vpack.c.bf16 %v6118, %v6116
      %v6138 = vpack.c.bf16 %v6122, %v6120
      %v6155 = vunpack.c.l.b16 %v6123
      %v6156 = vunpack.c.h.b16 %v6123
      %v6157 = vunpack.c.l.b16 %v6124
      %v6158 = vunpack.c.h.b16 %v6124
      %v6159 = vunpack.c.l.b16 %v6125
      %v6160 = vunpack.c.h.b16 %v6125
      %v6161 = vunpack.c.l.b16 %v6126
      %v6162 = vunpack.c.h.b16 %v6126
      %v6163 = vunpack.c.l.b16 %v6127
      %v6164 = vunpack.c.h.b16 %v6127
      %v6165 = vunpack.c.l.b16 %v6128
      %v6166 = vunpack.c.h.b16 %v6128
      %v6167 = vunpack.c.l.b16 %v6129
      %v6168 = vunpack.c.h.b16 %v6129
      %v6169 = vunpack.c.l.b16 %v6130
      %v6170 = vunpack.c.h.b16 %v6130
      %v6171 = vunpack.c.l.b16 %v6131
      %v6172 = vunpack.c.h.b16 %v6131
      %v6173 = vunpack.c.l.b16 %v6132
      %v6174 = vunpack.c.h.b16 %v6132
      %v6175 = vunpack.c.l.b16 %v6133
      %v6176 = vunpack.c.h.b16 %v6133
      %v6177 = vunpack.c.l.b16 %v6134
      %v6178 = vunpack.c.h.b16 %v6134
      %v6179 = vunpack.c.l.b16 %v6135
      %v6180 = vunpack.c.h.b16 %v6135
      %v6181 = vunpack.c.l.b16 %v6136
      %v6182 = vunpack.c.h.b16 %v6136
      %v6183 = vunpack.c.l.b16 %v6137
      %v6184 = vunpack.c.h.b16 %v6137
      %v6185 = vunpack.c.l.b16 %v6138
      %v6186 = vunpack.c.h.b16 %v6138
      %v6187 = vpack.c.b16 %v6155, %v6155
      %v6188 = vpack.c.b16 %v6156, %v6156
      %v6189 = vpack.c.b16 %v6157, %v6157
      %v6190 = vpack.c.b16 %v6158, %v6158
      %v6191 = vpack.c.b16 %v6159, %v6159
      %v6192 = vpack.c.b16 %v6160, %v6160
      %v6193 = vpack.c.b16 %v6161, %v6161
      %v6194 = vpack.c.b16 %v6162, %v6162
      %v6195 = vpack.c.b16 %v6163, %v6163
      %v6196 = vpack.c.b16 %v6164, %v6164
      %v6197 = vpack.c.b16 %v6165, %v6165
      %v6198 = vpack.c.b16 %v6166, %v6166
      %v6199 = vpack.c.b16 %v6167, %v6167
      %v6200 = vpack.c.b16 %v6168, %v6168
      %v6201 = vpack.c.b16 %v6169, %v6169
      %v6202 = vpack.c.b16 %v6170, %v6170
      %v6203 = vpack.c.b16 %v6171, %v6171
      %v6204 = vpack.c.b16 %v6172, %v6172
      %v6205 = vpack.c.b16 %v6173, %v6173
      %v6206 = vpack.c.b16 %v6174, %v6174
      %v6207 = vpack.c.b16 %v6175, %v6175
      %v6208 = vpack.c.b16 %v6176, %v6176
      %v6209 = vpack.c.b16 %v6177, %v6177
      %v6210 = vpack.c.b16 %v6178, %v6178
      %v6211 = vpack.c.b16 %v6179, %v6179
      %v6212 = vpack.c.b16 %v6180, %v6180
      %v6213 = vpack.c.b16 %v6181, %v6181
      %v6214 = vpack.c.b16 %v6182, %v6182
      %v6215 = vpack.c.b16 %v6183, %v6183
      %v6216 = vpack.c.b16 %v6184, %v6184
      %v6217 = vpack.c.b16 %v6185, %v6185
      %v6218 = vpack.c.b16 %v6186, %v6186
      %vm6251 = vcmask 191488
      %6252 = vst.msk [vmem:[%s218] sm:$0xf] %vm6251, %v6187
      %6253 = vst.msk [vmem:[%s218 + $0x4] sm:$0xf] %vm6251, %v6188
      %6254 = vst.msk [vmem:[%s218 + $0x8] sm:$0xf] %vm6251, %v6189
      %6255 = vst.msk [vmem:[%s218 + $0xc] sm:$0xf] %vm6251, %v6190
      %6256 = vst.msk [vmem:[%s218 + $0x10] sm:$0xf] %vm6251, %v6191
      %6257 = vst.msk [vmem:[%s218 + $0x14] sm:$0xf] %vm6251, %v6192
      %6258 = vst.msk [vmem:[%s218 + $0x18] sm:$0xf] %vm6251, %v6193
      %6259 = vst.msk [vmem:[%s218 + $0x1c] sm:$0xf] %vm6251, %v6194
      %6260 = vst.msk [vmem:[%s218 + $0x20] sm:$0xf] %vm6251, %v6195
      %6261 = vst.msk [vmem:[%s218 + $0x24] sm:$0xf] %vm6251, %v6196
      %6262 = vst.msk [vmem:[%s218 + $0x28] sm:$0xf] %vm6251, %v6197
      %6263 = vst.msk [vmem:[%s218 + $0x2c] sm:$0xf] %vm6251, %v6198
      %6264 = vst.msk [vmem:[%s218 + $0x30] sm:$0xf] %vm6251, %v6199
      %6265 = vst.msk [vmem:[%s218 + $0x34] sm:$0xf] %vm6251, %v6200
      %6266 = vst.msk [vmem:[%s218 + $0x38] sm:$0xf] %vm6251, %v6201
      %6267 = vst.msk [vmem:[%s218 + $0x3c] sm:$0xf] %vm6251, %v6202
      %6268 = vst.msk [vmem:[%s218 + $0x40] sm:$0xf] %vm6251, %v6203
      %6269 = vst.msk [vmem:[%s218 + $0x44] sm:$0xf] %vm6251, %v6204
      %6270 = vst.msk [vmem:[%s218 + $0x48] sm:$0xf] %vm6251, %v6205
      %6271 = vst.msk [vmem:[%s218 + $0x4c] sm:$0xf] %vm6251, %v6206
      %6272 = vst.msk [vmem:[%s218 + $0x50] sm:$0xf] %vm6251, %v6207
      %6273 = vst.msk [vmem:[%s218 + $0x54] sm:$0xf] %vm6251, %v6208
      %6274 = vst.msk [vmem:[%s218 + $0x58] sm:$0xf] %vm6251, %v6209
      %6275 = vst.msk [vmem:[%s218 + $0x5c] sm:$0xf] %vm6251, %v6210
      %6276 = vst.msk [vmem:[%s218 + $0x60] sm:$0xf] %vm6251, %v6211
      %6277 = vst.msk [vmem:[%s218 + $0x64] sm:$0xf] %vm6251, %v6212
      %6278 = vst.msk [vmem:[%s218 + $0x68] sm:$0xf] %vm6251, %v6213
      %6279 = vst.msk [vmem:[%s218 + $0x6c] sm:$0xf] %vm6251, %v6214
      %6280 = vst.msk [vmem:[%s218 + $0x70] sm:$0xf] %vm6251, %v6215
      %6281 = vst.msk [vmem:[%s218 + $0x74] sm:$0xf] %vm6251, %v6216
      %6282 = vst.msk [vmem:[%s218 + $0x78] sm:$0xf] %vm6251, %v6217
      %6283 = vst.msk [vmem:[%s218 + $0x7c] sm:$0xf] %vm6251, %v6218
      %s6284 = smul.u32 32, %s16
      %p6285 = scmp.lt.s32.totalorder %s6284, 63
      %s6286 = scalar_select %p6285, %s6284, 63
      %s6287 = smul.addr %s6286, 3
      %s6288 = smul.addr %s6287, 4
      %s6289 = scalar_lea.vmem %s3, %s6288
      %s6290 = smul.u32 32, %s16
      %p6291 = scmp.lt.s32.totalorder %s6290, 63
      %s6292 = scalar_select %p6291, %s6290, 63
      %s6293 = smul.addr %s6292, 4
      %s6294 = scalar_lea.vmem %s4, %s6293
      // Predicated region
      $region33: #{tpu_custom_call.1} parent=31 // pred_check
        %p6295 = pneg %p102
      $region34: #{tpu_custom_call.1} parent=31 // pred_check_branch
        %6297 = sbr.rel (%p6295) target = $region36
      $region35: #{tpu_custom_call.1} parent=31 // pred_region
        %s6298 = smul.u32 32, %s16
      $region36: #{tpu_custom_call.1} parent=31 // pred_fallthru
        _
      // Predicated region
      $region37: #{tpu_custom_call.1} parent=31 // pred_check
        %p6299 = pneg %p128
      $region38: #{tpu_custom_call.1} parent=31 // pred_check_branch
        %6301 = sbr.rel (%p6299) target = $region40
      $region39: #{tpu_custom_call.1} parent=31 // pred_region
        %s6302 = smul.u32 32, %s16
      $region40: #{tpu_custom_call.1} parent=31 // pred_fallthru
        _
    $region32: #{tpu_custom_call.1} parent=5 // pred_fallthru
      _
    %p6303 = scmp.le.s32.totalorder 2, %s11
    // Predicated region
    $region41: #{tpu_custom_call.1} parent=5 // pred_check
      %p6304 = pneg %p6303
    $region42: #{tpu_custom_call.1} parent=5 // pred_check_branch
      %6306 = sbr.rel (%p6304) target = $region44
    $region43: #{tpu_custom_call.1} parent=5 // pred_region
      %s6307 = ssub.s32 %s11, 2
      // Predicated region
      $region45: #{tpu_custom_call.1} parent=43 // pred_check
        %p6308 = pneg %p108
      $region46: #{tpu_custom_call.1} parent=43 // pred_check_branch
        %6310 = sbr.rel (%p6308) target = $region48
      $region47: #{tpu_custom_call.1} parent=43 // pred_region
        %s6311 = smul.u32 32, %s17
        %p6312 = scmp.lt.s32.totalorder %s6311, 63
        %s6313 = scalar_select %p6312, %s6311, 63
        %s6314 = smul.addr %s6313, 3
        %s6315 = smul.addr %s6314, 4
        %s6316 = scalar_lea.vmem %s3, %s6315
      $region48: #{tpu_custom_call.1} parent=43 // pred_fallthru
        _
      // Predicated region
      $region49: #{tpu_custom_call.1} parent=43 // pred_check
        %p6317 = pneg %p134
      $region50: #{tpu_custom_call.1} parent=43 // pred_check_branch
        %6319 = sbr.rel (%p6317) target = $region52
      $region51: #{tpu_custom_call.1} parent=43 // pred_region
        %s6320 = smul.u32 32, %s17
        %p6321 = scmp.lt.s32.totalorder %s6320, 63
        %s6322 = scalar_select %p6321, %s6320, 63
        %s6323 = smul.addr %s6322, 4
        %s6324 = scalar_lea.vmem %s4, %s6323
      $region52: #{tpu_custom_call.1} parent=43 // pred_fallthru
        _
    $region44: #{tpu_custom_call.1} parent=5 // pred_fallthru
      _
  $region6: #{tpu_custom_call.1} parent=0 // loop_footer
    %s15 = sadd.s32 1, %s11
  $region7: #{tpu_custom_call.1} parent=0 // loop_footer_branch
    %10 = sbr.rel target = $region3
  $region8: #{tpu_custom_call.1} parent=0 // loop_exit
    _

</llo_original>
